<compile_context>
chip_gen: v7x
topology: tpu7x:2x2x1
jax: 0.10.0
libtpu: 0.0.40
codegen_flags: <defaults>
</compile_context>

<pallas_src>
import functools

import jax
import jax.numpy as jnp
from jax import lax
from jax.experimental import pallas as pl
from jax.experimental.pallas import tpu as pltpu

INPUT_DIM = 20
HIDDEN_DIM = 10
ENC_DIMS = [INPUT_DIM, 130, 120, 110, 100, 90, 80, 70, HIDDEN_DIM]
DEC_DIMS = [HIDDEN_DIM, 70, 80, 90, 100, 110, 120, 130, INPUT_DIM]
BN_EPS = 0.8          # nn.BatchNorm1d(out_feat, 0.8) -> eps=0.8
LEAKY_SLOPE = 0.2

IO_PAD = 128                 # padded lane width of kernel input / output (20 real)
VEC_F = 256                  # lane width of the bias / BN-affine slab (max dout=130)
DEFAULT_TILE_B_CAP = 1024    # cap rows per grid step (VMEM / vreg pressure)


def _round_up(n, m):
    return ((n + m - 1) // m) * m


def _pad_dim(n):
    return 128 if n <= 128 else 256


# ---------------- static layer table: (d_in, d_out, activation, has_bn) -----
LAYERS = []
for _i in range(len(ENC_DIMS) - 1):
    LAYERS.append((ENC_DIMS[_i], ENC_DIMS[_i + 1],
                   "tanh" if _i == len(ENC_DIMS) - 2 else "leaky", False))
for _i in range(len(DEC_DIMS) - 1):
    LAYERS.append((DEC_DIMS[_i], DEC_DIMS[_i + 1],
                   "tanh" if _i == len(DEC_DIMS) - 2 else "leaky",
                   0 < _i < len(DEC_DIMS) - 2))
N_LAYERS = len(LAYERS)                                   # 16

LAYER_KP = [_pad_dim(d) for (d, _, _, _) in LAYERS]      # padded contraction width
LAYER_NP = [_pad_dim(d) for (_, d, _, _) in LAYERS]      # padded output-lane width
LAYER_SLAB = [0 if n == 128 else 1 for n in LAYER_NP]    # 0 -> 128-wide slab, 1 -> 256

# Weight slab row offsets (per slab).
W_ROW_OFF = []
_off = [0, 0]
for _li in range(N_LAYERS):
    W_ROW_OFF.append(_off[LAYER_SLAB[_li]])
    _off[LAYER_SLAB[_li]] += LAYER_KP[_li]
W128_ROWS, W256_ROWS = _off                              # 2048, 256

# Vector slab: 16 bias rows, then 6 gamma rows, then 6 beta rows (pad to 32).
BIAS_ROW = list(range(N_LAYERS))
BN_LAYERS = [li for li in range(N_LAYERS) if LAYERS[li][3]]
N_BN = len(BN_LAYERS)                                    # 6
N_PHASES = N_BN + 1                                      # 6 stats passes + 1 output pass
BN_PHASE = {li: i for i, li in enumerate(BN_LAYERS)}
GAMMA_ROW = {li: N_LAYERS + i for i, li in enumerate(BN_LAYERS)}
BETA_ROW = {li: N_LAYERS + N_BN + i for i, li in enumerate(BN_LAYERS)}
VEC_ROWS = N_LAYERS + 2 * N_BN                           # 28
VEC_ROWS_PAD = _round_up(VEC_ROWS, 8)                    # 32

# BN statistics scratch layout (phased kernel): rows 0..5 = mean, 8..13 = inv-std.
STAT_MEAN_ROW = {li: BN_PHASE[li] for li in BN_LAYERS}
STAT_ISTD_ROW = {li: 8 + BN_PHASE[li] for li in BN_LAYERS}
STATS_ROWS = 16


# ----------------------------- shared layer stack ---------------------------
def _apply_layers(h, w128_ref, w256_ref, vec, bn_fn):
    """Run all 16 Linear(+BN)+activation layers on one activation tile.

    h   : (tile_b, 128) f32 lane-dense padded input tile
    vec : (VEC_ROWS_PAD, VEC_F) f32 value (biases / BN gamma / BN beta)
    bn_fn(li, h, gamma, beta) -> normalized h (BN handling differs per kernel)
    """
    use_bf16 = w128_ref.dtype == jnp.bfloat16
    for li, (din, dout, act, has_bn) in enumerate(LAYERS):
        kp, np_ = LAYER_KP[li], LAYER_NP[li]
        wref = w128_ref if LAYER_SLAB[li] == 0 else w256_ref
        w = wref[pl.ds(W_ROW_OFF[li], kp), :]                 # (kp, np_), static offset
        lhs = h if h.shape[1] == kp else h[:, :kp]
        if use_bf16:
            lhs = lhs.astype(jnp.bfloat16)                    # native bf16 MXU matmul
        h = jnp.dot(lhs, w, preferred_element_type=jnp.float32)
        h = h + vec[BIAS_ROW[li]:BIAS_ROW[li] + 1, :np_]
        if has_bn:
            gamma = vec[GAMMA_ROW[li]:GAMMA_ROW[li] + 1, :np_]
            beta = vec[BETA_ROW[li]:BETA_ROW[li] + 1, :np_]
            h = bn_fn(li, h, gamma, beta)
        if act == "leaky":
            h = jnp.where(h > 0, h, LEAKY_SLOPE * h)
        else:
            h = jnp.tanh(h)
    # TODO(synk): if tile_b is ever raised well past ~256 rows, split this fully
    # unrolled 16-layer body into an inner fori_loop over 128-row sub-blocks to
    # bound vreg pressure (BN stats computed at tile level first).
    return h


# ----------------------------- kernels ---------------------------------------
def _ae_kernel_single(x_ref, w128_ref, w256_ref, v_ref, o_ref, *, b_total, tile_b):
    """Whole (padded) batch in one tile: exact training-mode BN in-tile."""
    vec = v_ref[...]
    if b_total % tile_b != 0:
        # Zero-padded rows at the bottom of the tile: mask them out of BN stats.
        row_ids = lax.broadcasted_iota(jnp.int32, (tile_b, 1), 0)
        mask = row_ids < b_total
    else:
        mask = None
    inv_n = jnp.float32(1.0 / b_total)

    def bn_fn(li, h, gamma, beta):
        hm = h if mask is None else jnp.where(mask, h, 0.0)
        mu = jnp.sum(hm, axis=0, keepdims=True) * inv_n
        d = h - mu
        dsq = d * d if mask is None else jnp.where(mask, d * d, 0.0)
        var = jnp.sum(dsq, axis=0, keepdims=True) * inv_n
        return d * lax.rsqrt(var + BN_EPS) * gamma + beta

    h = _apply_layers(x_ref[...], w128_ref, w256_ref, vec, bn_fn)
    o_ref[...] = h.astype(o_ref.dtype)


def _ae_kernel_phased(x_ref, w128_ref, w256_ref, v_ref, o_ref, stats_ref, acc_ref,
                      *, b_total, tile_b):
    """Multi-tile exact training-mode BatchNorm.

    grid = (N_PHASES, n_tiles).  Phase p < N_BN accumulates the batch sum /
    sum-of-squares of BN layer p's pre-normalization activations over all
    tiles (stats of earlier BN layers are already frozen, so those activations
    are exact); at the phase's last tile the mean / inv-std are frozen into
    stats_ref.  The final phase recomputes the network with all BN statistics
    frozen and writes the output; values written during stats phases are
    overwritten by the final phase.
    """
    p = pl.program_id(0)
    t = pl.program_id(1)
    n_tiles = pl.num_programs(1)
    vec = v_ref[...]

    @pl.when((p == 0) & (t == 0))
    def _init_stats():
        stats_ref[0:8, :] = jnp.zeros((8, VEC_F), jnp.float32)   # means
        stats_ref[8:16, :] = jnp.ones((8, VEC_F), jnp.float32)   # inv-stds

    @pl.when(t == 0)
    def _zero_acc():
        acc_ref[...] = jnp.zeros_like(acc_ref)

    if b_total % tile_b != 0:
        rows_left = b_total - t * tile_b
        row_ids = lax.broadcasted_iota(jnp.int32, (tile_b, 1), 0)
        mask = row_ids < rows_left
    else:
        mask = None
    inv_n = jnp.float32(1.0 / b_total)

    def bn_fn(li, h, gamma, beta):
        np_ = LAYER_NP[li]
        mrow, srow = STAT_MEAN_ROW[li], STAT_ISTD_ROW[li]

        @pl.when(p == BN_PHASE[li])
        def _accumulate():
            hm = h if mask is None else jnp.where(mask, h, 0.0)
            acc_ref[0:1, :np_] += jnp.sum(hm, axis=0, keepdims=True)
            acc_ref[1:2, :np_] += jnp.sum(hm * hm, axis=0, keepdims=True)

            @pl.when(t == n_tiles - 1)
            def _finalize():
                mu = acc_ref[0:1, :np_] * inv_n
                var = acc_ref[1:2, :np_] * inv_n - mu * mu
                stats_ref[mrow:mrow + 1, :np_] = mu
                stats_ref[srow:srow + 1, :np_] = lax.rsqrt(
                    jnp.maximum(var, 0.0) + BN_EPS)

        mu = stats_ref[mrow:mrow + 1, :np_]
        istd = stats_ref[srow:srow + 1, :np_]
        return (h - mu) * istd * gamma + beta

    h = _apply_layers(x_ref[...], w128_ref, w256_ref, vec, bn_fn)
    # Written every phase; the final phase (all stats frozen) writes last and wins.
    o_ref[...] = h.astype(o_ref.dtype)


# ----------------------------- wrappers ---------------------------------------
def pack_params(params, weight_dtype=jnp.bfloat16):
    """Pack the flat per-layer parameter list into three zero-padded slabs.

    Returns (w128_slab (2048,128), w256_slab (256,256), vec_slab (32,256) f32).
    Padded rows / lanes are zero, so they contribute nothing to the matmuls and
    padded feature lanes stay exactly zero through BN / LeakyReLU / tanh.
    weight_dtype=jnp.bfloat16 (default) halves parameter DMA bytes and enables
    native bf16 MXU matmuls; jnp.float32 preserves stored-weight bits.
    """
    p = list(params)
    w128 = jnp.zeros((W128_ROWS, 128), jnp.float32)
    w256 = jnp.zeros((W256_ROWS, 256), jnp.float32)
    vec = jnp.zeros((VEC_ROWS_PAD, VEC_F), jnp.float32)
    idx = 0
    for li, (din, dout, act, has_bn) in enumerate(LAYERS):
        w, b = p[idx], p[idx + 1]
        idx += 2
        wf = jnp.asarray(w, jnp.float32)
        if LAYER_SLAB[li] == 0:
            w128 = w128.at[W_ROW_OFF[li]:W_ROW_OFF[li] + din, :dout].set(wf)
        else:
            w256 = w256.at[W_ROW_OFF[li]:W_ROW_OFF[li] + din, :dout].set(wf)
        vec = vec.at[BIAS_ROW[li], :dout].set(
            jnp.asarray(b, jnp.float32).reshape(-1))
        if has_bn:
            g, be = p[idx], p[idx + 1]
            idx += 2
            vec = vec.at[GAMMA_ROW[li], :dout].set(
                jnp.asarray(g, jnp.float32).reshape(-1))
            vec = vec.at[BETA_ROW[li], :dout].set(
                jnp.asarray(be, jnp.float32).reshape(-1))
    return w128.astype(weight_dtype), w256.astype(weight_dtype), vec


def _param_specs(n_grid_axes, buffered):
    idx = (lambda i: (0, 0)) if n_grid_axes == 1 else (lambda p, t: (0, 0))
    kw = {"pipeline_mode": pl.Buffered(1)} if buffered else {}
    return [
        pl.BlockSpec((W128_ROWS, 128), idx, **kw),
        pl.BlockSpec((W256_ROWS, 256), idx, **kw),
        pl.BlockSpec((VEC_ROWS_PAD, VEC_F), idx, **kw),
    ]


@functools.partial(jax.jit, static_argnames=("b_total", "tile_b", "buffered_params"))
def _forward_impl(x, w128, w256, vec, *, b_total, tile_b, buffered_params):
    b_pad = _round_up(b_total, tile_b)
    n_tiles = b_pad // tile_b

    # Lane-dense, zero-padded input slab (20 -> 128 lanes, batch -> tile multiple).
    x_pad = jnp.zeros((b_pad, IO_PAD), jnp.float32)
    x_pad = x_pad.at[:b_total, :INPUT_DIM].set(x.astype(jnp.float32))

    # Explicit scoped-VMEM budget (review item): tiles + activations + slabs.
    param_bytes = (w128.size * w128.dtype.itemsize
                   + w256.size * w256.dtype.itemsize
                   + vec.size * vec.dtype.itemsize)
    if not buffered_params:
        param_bytes *= 2                               # default double-buffering
    vmem_need = (2 * 2 * tile_b * IO_PAD * 4           # x / out tiles (double-buffered)
                 + 8 * tile_b * 256 * 4                # live activations, unrolled body
                 + param_bytes + (2 << 20))            # slabs + scratch / slack
    vmem_limit = int(min(48 << 20, max(32 << 20, vmem_need)))

    if n_tiles == 1:
        kernel = functools.partial(_ae_kernel_single, b_total=b_total, tile_b=tile_b)
        grid = (1,)
        in_specs = ([pl.BlockSpec((tile_b, IO_PAD), lambda i: (i, 0))]
                    + _param_specs(1, buffered_params))
        out_specs = pl.BlockSpec((tile_b, IO_PAD), lambda i: (i, 0))
        scratch_shapes = []
        dims = ("arbitrary",)
    else:
        kernel = functools.partial(_ae_kernel_phased, b_total=b_total, tile_b=tile_b)
        grid = (N_PHASES, n_tiles)
        in_specs = ([pl.BlockSpec((tile_b, IO_PAD), lambda ph, ti: (ti, 0))]
                    + _param_specs(2, buffered_params))
        out_specs = pl.BlockSpec((tile_b, IO_PAD), lambda ph, ti: (ti, 0))
        scratch_shapes = [pltpu.VMEM((STATS_ROWS, VEC_F), jnp.float32),  # frozen BN stats
                          pltpu.VMEM((8, VEC_F), jnp.float32)]           # sum / sumsq acc
        # Tile axis is sequential ("arbitrary"): the shared BN-stats accumulator
        # forbids megacore-parallel tiles (exactness chosen over v7x parallelism).
        dims = ("arbitrary", "arbitrary")

    out_pad = pl.pallas_call(
        kernel,
        out_shape=jax.ShapeDtypeStruct((b_pad, IO_PAD), jnp.float32),
        grid=grid,
        in_specs=in_specs,
        out_specs=out_specs,
        scratch_shapes=scratch_shapes,
        compiler_params=pltpu.CompilerParams(
            dimension_semantics=dims,
            vmem_limit_bytes=vmem_limit),
    )(x_pad, w128, w256, vec)
    return out_pad[:b_total, :INPUT_DIM]


_BUFFERED_PARAMS_OK = True


def autoencoder_forward(x, w128_slab, w256_slab, vec_slab, *, tile_b=None):
    """Forward pass. x: (batch, 20) f32 -> (batch, 20) f32, training-mode BN."""
    global _BUFFERED_PARAMS_OK
    b_total = int(x.shape[0])
    assert x.shape[1] == INPUT_DIM and b_total > 0
    if tile_b is None:
        # Whole batch in one tile when it fits; otherwise capped tiles + the
        # phased exact-BN kernel.
        tile_b = min(max(8, _round_up(b_total, 8)), DEFAULT_TILE_B_CAP)
    assert tile_b % 8 == 0 and tile_b > 0
    kwargs = dict(b_total=b_total, tile_b=tile_b)
    if _BUFFERED_PARAMS_OK:
        try:
            return _forward_impl(x, w128_slab, w256_slab, vec_slab,
                                 buffered_params=True, **kwargs)
        except Exception:
            # pl.Buffered(1) unsupported by this JAX/Mosaic: fall back once.
            _BUFFERED_PARAMS_OK = False
    return _forward_impl(x, w128_slab, w256_slab, vec_slab,
                         buffered_params=False, **kwargs)


# ----------------------------- test scaffolding ------------------------------
def init_params(key):
    """Deterministic synthetic parameters, flat list in consumption order."""
    params = []

    def linear(key, fan_in, fan_out):
        kw, kb = jax.random.split(key)
        scale = 1.0 / jnp.sqrt(jnp.float32(fan_in))
        w = jax.random.uniform(kw, (fan_in, fan_out), jnp.float32, -scale, scale)
        b = jax.random.uniform(kb, (1, fan_out), jnp.float32, -scale, scale)
        return w, b

    keys = jax.random.split(key, 64)
    k = 0
    for i in range(len(ENC_DIMS) - 1):
        w, b = linear(keys[k], ENC_DIMS[i], ENC_DIMS[i + 1])
        k += 1
        params += [w, b]
    for i in range(len(DEC_DIMS) - 1):
        w, b = linear(keys[k], DEC_DIMS[i], DEC_DIMS[i + 1])
        k += 1
        params += [w, b]
        if 0 < i < len(DEC_DIMS) - 2:
            params += [jnp.ones((1, DEC_DIMS[i + 1]), jnp.float32),
                       jnp.zeros((1, DEC_DIMS[i + 1]), jnp.float32)]
    return params


def reference_forward(x, params, matmul_dtype=None):
    """Pure-JAX reference matching the PyTorch forward (training-mode BN).

    matmul_dtype=jnp.bfloat16 reproduces the kernel's MXU precision (both
    matmul operands rounded to bf16, f32 accumulation); everything else f32.
    """
    def mm(a, w):
        if matmul_dtype is not None:
            a = a.astype(matmul_dtype)
            w = w.astype(matmul_dtype)
        return jnp.dot(a, w, preferred_element_type=jnp.float32)

    p = list(params)
    idx = 0
    h = x
    n_enc = len(ENC_DIMS) - 1
    for i in range(n_enc):
        w, b = p[idx], p[idx + 1]
        idx += 2
        h = mm(h, w) + b
        h = jnp.where(h > 0, h, LEAKY_SLOPE * h) if i < n_enc - 1 else jnp.tanh(h)
    n_dec = len(DEC_DIMS) - 1
    for i in range(n_dec):
        w, b = p[idx], p[idx + 1]
        idx += 2
        h = mm(h, w) + b
        if i == 0:
            h = jnp.where(h > 0, h, LEAKY_SLOPE * h)
        elif i < n_dec - 1:
            gamma, beta = p[idx], p[idx + 1]
            idx += 2
            mu = jnp.mean(h, axis=0, keepdims=True)
            var = jnp.mean((h - mu) ** 2, axis=0, keepdims=True)
            h = (h - mu) / jnp.sqrt(var + BN_EPS) * gamma + beta
            h = jnp.where(h > 0, h, LEAKY_SLOPE * h)
        else:
            h = jnp.tanh(h)
    return h


if __name__ == "__main__":
    key = jax.random.PRNGKey(0)
    kx, kparam = jax.random.split(key)
    params = init_params(kparam)

    w128_bf, w256_bf, vec_bf = pack_params(params)                        # default bf16
    w128_f32, w256_f32, vec_f32 = pack_params(params, weight_dtype=jnp.float32)

    x = jax.random.normal(kx, (32, INPUT_DIM), dtype=jnp.float32)
    ref_f32 = reference_forward(x, params)
    ref_bf16 = reference_forward(x, params, matmul_dtype=jnp.bfloat16)

    # (A) default path: single tile, exact in-tile BN, native bf16 MXU matmuls.
    out = jax.block_until_ready(autoencoder_forward(x, w128_bf, w256_bf, vec_bf))
    assert out.shape == (32, INPUT_DIM)
    assert jnp.allclose(out, ref_bf16, atol=2e-3, rtol=2e-3), "single-tile mismatch"
    assert float(jnp.max(jnp.abs(out - ref_f32))) < 0.1, "bf16 drift vs f32 module"

    # (B) masked single tile (batch not a multiple of 8).
    x_b = jax.random.normal(jax.random.PRNGKey(1), (10, INPUT_DIM), jnp.float32)
    out_b = jax.block_until_ready(autoencoder_forward(x_b, w128_bf, w256_bf, vec_bf))
    ref_b = reference_forward(x_b, params, matmul_dtype=jnp.bfloat16)
    assert jnp.allclose(out_b, ref_b, atol=2e-3, rtol=2e-3), "masked tile mismatch"

    # (C) phased multi-tile path: exact cross-tile BN with a forced small tile.
    out_c = jax.block_until_ready(
        autoencoder_forward(x, w128_bf, w256_bf, vec_bf, tile_b=8))
    assert jnp.allclose(out_c, ref_bf16, atol=2e-3, rtol=2e-3), "phased mismatch"

    # (D) phased path with a ragged last tile.
    x_d = jax.random.normal(jax.random.PRNGKey(2), (30, INPUT_DIM), jnp.float32)
    out_d = jax.block_until_ready(
        autoencoder_forward(x_d, w128_bf, w256_bf, vec_bf, tile_b=8))
    ref_d = reference_forward(x_d, params, matmul_dtype=jnp.bfloat16)
    assert jnp.allclose(out_d, ref_d, atol=2e-3, rtol=2e-3), "phased ragged mismatch"

    # (E) optional f32 weight storage path (loose: matmul precision vs XLA default).
    out_e = jax.block_until_ready(
        autoencoder_forward(x, w128_f32, w256_f32, vec_f32))
    assert float(jnp.max(jnp.abs(out_e - ref_f32))) < 3e-2, "f32-weight path mismatch"

    print("KERNEL_OK")
</pallas_src>

<mosaic_0001>
module attributes {stable_mosaic.version = 11 : i64} {
  func.func @_ae_kernel_single(%arg0: i32, %arg1: memref<32x128xf32, #tpu.memory_space<vmem>>, %arg2: memref<2048x128xbf16, #tpu.memory_space<vmem>>, %arg3: memref<256x256xbf16, #tpu.memory_space<vmem>>, %arg4: memref<32x256xf32, #tpu.memory_space<vmem>>, %arg5: memref<32x128xf32, #tpu.memory_space<vmem>>) attributes {dimension_semantics = [#tpu.dimension_semantics<arbitrary>], iteration_bounds = array<i64: 1>, scalar_prefetch = 0 : i64, scratch_operands = 0 : i64, tpu.core_type = #tpu.core_type<tc>, window_params = [{transform_indices = @transform_0, window_bounds = array<i64: 32, 128>}, {pipeline_mode = #tpu.pipeline_mode<synchronous>, transform_indices = @transform_1, window_bounds = array<i64: 2048, 128>}, {pipeline_mode = #tpu.pipeline_mode<synchronous>, transform_indices = @transform_2, window_bounds = array<i64: 256, 256>}, {pipeline_mode = #tpu.pipeline_mode<synchronous>, transform_indices = @transform_3, window_bounds = array<i64: 32, 256>}, {transform_indices = @transform_4, window_bounds = array<i64: 32, 128>}]} {
    %c0 = arith.constant 0 : index
    %c0_0 = arith.constant 0 : index
    %0 = vector.load %arg4[%c0, %c0_0] : memref<32x256xf32, #tpu.memory_space<vmem>>, vector<32x256xf32>
    %c0_1 = arith.constant 0 : index
    %c0_2 = arith.constant 0 : index
    %1 = vector.load %arg1[%c0_1, %c0_2] : memref<32x128xf32, #tpu.memory_space<vmem>>, vector<32x128xf32>
    %c0_3 = arith.constant 0 : index
    %c0_4 = arith.constant 0 : index
    %2 = vector.load %arg3[%c0_3, %c0_4] : memref<256x256xbf16, #tpu.memory_space<vmem>>, vector<128x256xbf16>
    %3 = arith.truncf %1 : vector<32x128xf32> to vector<32x128xbf16>
    %cst = arith.constant dense<0.000000e+00> : vector<32x256xf32>
    %4 = tpu.matmul %3, %2, %cst {dimension_numbers = #tpu.dot_dimension_numbers<[1], [0], [0], [1], [0, 0, 1, 1], [], []>} : vector<32x128xbf16>, vector<128x256xbf16>, vector<32x256xf32> -> vector<32x256xf32>
    %5 = vector.extract_strided_slice %0 {offsets = [0, 0], sizes = [1, 256], strides = [1, 1]} : vector<32x256xf32> to vector<1x256xf32>
    %6 = vector.broadcast %5 : vector<1x256xf32> to vector<32x256xf32>
    %7 = arith.addf %4, %6 : vector<32x256xf32>
    %cst_5 = arith.constant 0.000000e+00 : f32
    %8 = vector.broadcast %cst_5 : f32 to vector<32x256xf32>
    %9 = arith.cmpf ogt, %7, %8 : vector<32x256xf32>
    %cst_6 = arith.constant 2.000000e-01 : f32
    %10 = vector.broadcast %cst_6 : f32 to vector<32x256xf32>
    %11 = arith.mulf %10, %7 : vector<32x256xf32>
    %12 = arith.select %9, %7, %11 : vector<32x256xi1>, vector<32x256xf32>
    %c0_7 = arith.constant 0 : index
    %c0_8 = arith.constant 0 : index
    %13 = vector.load %arg2[%c0_7, %c0_8] : memref<2048x128xbf16, #tpu.memory_space<vmem>>, vector<256x128xbf16>
    %14 = arith.truncf %12 : vector<32x256xf32> to vector<32x256xbf16>
    %cst_9 = arith.constant dense<0.000000e+00> : vector<32x128xf32>
    %15 = tpu.matmul %14, %13, %cst_9 {dimension_numbers = #tpu.dot_dimension_numbers<[1], [0], [0], [1], [0, 0, 1, 1], [], []>} : vector<32x256xbf16>, vector<256x128xbf16>, vector<32x128xf32> -> vector<32x128xf32>
    %16 = vector.extract_strided_slice %0 {offsets = [1, 0], sizes = [1, 128], strides = [1, 1]} : vector<32x256xf32> to vector<1x128xf32>
    %17 = vector.broadcast %16 : vector<1x128xf32> to vector<32x128xf32>
    %18 = arith.addf %15, %17 : vector<32x128xf32>
    %cst_10 = arith.constant 0.000000e+00 : f32
    %19 = vector.broadcast %cst_10 : f32 to vector<32x128xf32>
    %20 = arith.cmpf ogt, %18, %19 : vector<32x128xf32>
    %cst_11 = arith.constant 2.000000e-01 : f32
    %21 = vector.broadcast %cst_11 : f32 to vector<32x128xf32>
    %22 = arith.mulf %21, %18 : vector<32x128xf32>
    %23 = arith.select %20, %18, %22 : vector<32x128xi1>, vector<32x128xf32>
    %c256 = arith.constant 256 : index
    %c0_12 = arith.constant 0 : index
    %24 = vector.load %arg2[%c256, %c0_12] : memref<2048x128xbf16, #tpu.memory_space<vmem>>, vector<128x128xbf16>
    %25 = arith.truncf %23 : vector<32x128xf32> to vector<32x128xbf16>
    %cst_13 = arith.constant dense<0.000000e+00> : vector<32x128xf32>
    %26 = tpu.matmul %25, %24, %cst_13 {dimension_numbers = #tpu.dot_dimension_numbers<[1], [0], [0], [1], [0, 0, 1, 1], [], []>} : vector<32x128xbf16>, vector<128x128xbf16>, vector<32x128xf32> -> vector<32x128xf32>
    %27 = vector.extract_strided_slice %0 {offsets = [2, 0], sizes = [1, 128], strides = [1, 1]} : vector<32x256xf32> to vector<1x128xf32>
    %28 = vector.broadcast %27 : vector<1x128xf32> to vector<32x128xf32>
    %29 = arith.addf %26, %28 : vector<32x128xf32>
    %cst_14 = arith.constant 0.000000e+00 : f32
    %30 = vector.broadcast %cst_14 : f32 to vector<32x128xf32>
    %31 = arith.cmpf ogt, %29, %30 : vector<32x128xf32>
    %cst_15 = arith.constant 2.000000e-01 : f32
    %32 = vector.broadcast %cst_15 : f32 to vector<32x128xf32>
    %33 = arith.mulf %32, %29 : vector<32x128xf32>
    %34 = arith.select %31, %29, %33 : vector<32x128xi1>, vector<32x128xf32>
    %c384 = arith.constant 384 : index
    %c0_16 = arith.constant 0 : index
    %35 = vector.load %arg2[%c384, %c0_16] : memref<2048x128xbf16, #tpu.memory_space<vmem>>, vector<128x128xbf16>
    %36 = arith.truncf %34 : vector<32x128xf32> to vector<32x128xbf16>
    %cst_17 = arith.constant dense<0.000000e+00> : vector<32x128xf32>
    %37 = tpu.matmul %36, %35, %cst_17 {dimension_numbers = #tpu.dot_dimension_numbers<[1], [0], [0], [1], [0, 0, 1, 1], [], []>} : vector<32x128xbf16>, vector<128x128xbf16>, vector<32x128xf32> -> vector<32x128xf32>
    %38 = vector.extract_strided_slice %0 {offsets = [3, 0], sizes = [1, 128], strides = [1, 1]} : vector<32x256xf32> to vector<1x128xf32>
    %39 = vector.broadcast %38 : vector<1x128xf32> to vector<32x128xf32>
    %40 = arith.addf %37, %39 : vector<32x128xf32>
    %cst_18 = arith.constant 0.000000e+00 : f32
    %41 = vector.broadcast %cst_18 : f32 to vector<32x128xf32>
    %42 = arith.cmpf ogt, %40, %41 : vector<32x128xf32>
    %cst_19 = arith.constant 2.000000e-01 : f32
    %43 = vector.broadcast %cst_19 : f32 to vector<32x128xf32>
    %44 = arith.mulf %43, %40 : vector<32x128xf32>
    %45 = arith.select %42, %40, %44 : vector<32x128xi1>, vector<32x128xf32>
    %c512 = arith.constant 512 : index
    %c0_20 = arith.constant 0 : index
    %46 = vector.load %arg2[%c512, %c0_20] : memref<2048x128xbf16, #tpu.memory_space<vmem>>, vector<128x128xbf16>
    %47 = arith.truncf %45 : vector<32x128xf32> to vector<32x128xbf16>
    %cst_21 = arith.constant dense<0.000000e+00> : vector<32x128xf32>
    %48 = tpu.matmul %47, %46, %cst_21 {dimension_numbers = #tpu.dot_dimension_numbers<[1], [0], [0], [1], [0, 0, 1, 1], [], []>} : vector<32x128xbf16>, vector<128x128xbf16>, vector<32x128xf32> -> vector<32x128xf32>
    %49 = vector.extract_strided_slice %0 {offsets = [4, 0], sizes = [1, 128], strides = [1, 1]} : vector<32x256xf32> to vector<1x128xf32>
    %50 = vector.broadcast %49 : vector<1x128xf32> to vector<32x128xf32>
    %51 = arith.addf %48, %50 : vector<32x128xf32>
    %cst_22 = arith.constant 0.000000e+00 : f32
    %52 = vector.broadcast %cst_22 : f32 to vector<32x128xf32>
    %53 = arith.cmpf ogt, %51, %52 : vector<32x128xf32>
    %cst_23 = arith.constant 2.000000e-01 : f32
    %54 = vector.broadcast %cst_23 : f32 to vector<32x128xf32>
    %55 = arith.mulf %54, %51 : vector<32x128xf32>
    %56 = arith.select %53, %51, %55 : vector<32x128xi1>, vector<32x128xf32>
    %c640 = arith.constant 640 : index
    %c0_24 = arith.constant 0 : index
    %57 = vector.load %arg2[%c640, %c0_24] : memref<2048x128xbf16, #tpu.memory_space<vmem>>, vector<128x128xbf16>
    %58 = arith.truncf %56 : vector<32x128xf32> to vector<32x128xbf16>
    %cst_25 = arith.constant dense<0.000000e+00> : vector<32x128xf32>
    %59 = tpu.matmul %58, %57, %cst_25 {dimension_numbers = #tpu.dot_dimension_numbers<[1], [0], [0], [1], [0, 0, 1, 1], [], []>} : vector<32x128xbf16>, vector<128x128xbf16>, vector<32x128xf32> -> vector<32x128xf32>
    %60 = vector.extract_strided_slice %0 {offsets = [5, 0], sizes = [1, 128], strides = [1, 1]} : vector<32x256xf32> to vector<1x128xf32>
    %61 = vector.broadcast %60 : vector<1x128xf32> to vector<32x128xf32>
    %62 = arith.addf %59, %61 : vector<32x128xf32>
    %cst_26 = arith.constant 0.000000e+00 : f32
    %63 = vector.broadcast %cst_26 : f32 to vector<32x128xf32>
    %64 = arith.cmpf ogt, %62, %63 : vector<32x128xf32>
    %cst_27 = arith.constant 2.000000e-01 : f32
    %65 = vector.broadcast %cst_27 : f32 to vector<32x128xf32>
    %66 = arith.mulf %65, %62 : vector<32x128xf32>
    %67 = arith.select %64, %62, %66 : vector<32x128xi1>, vector<32x128xf32>
    %c768 = arith.constant 768 : index
    %c0_28 = arith.constant 0 : index
    %68 = vector.load %arg2[%c768, %c0_28] : memref<2048x128xbf16, #tpu.memory_space<vmem>>, vector<128x128xbf16>
    %69 = arith.truncf %67 : vector<32x128xf32> to vector<32x128xbf16>
    %cst_29 = arith.constant dense<0.000000e+00> : vector<32x128xf32>
    %70 = tpu.matmul %69, %68, %cst_29 {dimension_numbers = #tpu.dot_dimension_numbers<[1], [0], [0], [1], [0, 0, 1, 1], [], []>} : vector<32x128xbf16>, vector<128x128xbf16>, vector<32x128xf32> -> vector<32x128xf32>
    %71 = vector.extract_strided_slice %0 {offsets = [6, 0], sizes = [1, 128], strides = [1, 1]} : vector<32x256xf32> to vector<1x128xf32>
    %72 = vector.broadcast %71 : vector<1x128xf32> to vector<32x128xf32>
    %73 = arith.addf %70, %72 : vector<32x128xf32>
    %cst_30 = arith.constant 0.000000e+00 : f32
    %74 = vector.broadcast %cst_30 : f32 to vector<32x128xf32>
    %75 = arith.cmpf ogt, %73, %74 : vector<32x128xf32>
    %cst_31 = arith.constant 2.000000e-01 : f32
    %76 = vector.broadcast %cst_31 : f32 to vector<32x128xf32>
    %77 = arith.mulf %76, %73 : vector<32x128xf32>
    %78 = arith.select %75, %73, %77 : vector<32x128xi1>, vector<32x128xf32>
    %c896 = arith.constant 896 : index
    %c0_32 = arith.constant 0 : index
    %79 = vector.load %arg2[%c896, %c0_32] : memref<2048x128xbf16, #tpu.memory_space<vmem>>, vector<128x128xbf16>
    %80 = arith.truncf %78 : vector<32x128xf32> to vector<32x128xbf16>
    %cst_33 = arith.constant dense<0.000000e+00> : vector<32x128xf32>
    %81 = tpu.matmul %80, %79, %cst_33 {dimension_numbers = #tpu.dot_dimension_numbers<[1], [0], [0], [1], [0, 0, 1, 1], [], []>} : vector<32x128xbf16>, vector<128x128xbf16>, vector<32x128xf32> -> vector<32x128xf32>
    %82 = vector.extract_strided_slice %0 {offsets = [7, 0], sizes = [1, 128], strides = [1, 1]} : vector<32x256xf32> to vector<1x128xf32>
    %83 = vector.broadcast %82 : vector<1x128xf32> to vector<32x128xf32>
    %84 = arith.addf %81, %83 : vector<32x128xf32>
    %85 = math.tanh %84 : vector<32x128xf32>
    %c1024 = arith.constant 1024 : index
    %c0_34 = arith.constant 0 : index
    %86 = vector.load %arg2[%c1024, %c0_34] : memref<2048x128xbf16, #tpu.memory_space<vmem>>, vector<128x128xbf16>
    %87 = arith.truncf %85 : vector<32x128xf32> to vector<32x128xbf16>
    %cst_35 = arith.constant dense<0.000000e+00> : vector<32x128xf32>
    %88 = tpu.matmul %87, %86, %cst_35 {dimension_numbers = #tpu.dot_dimension_numbers<[1], [0], [0], [1], [0, 0, 1, 1], [], []>} : vector<32x128xbf16>, vector<128x128xbf16>, vector<32x128xf32> -> vector<32x128xf32>
    %89 = vector.extract_strided_slice %0 {offsets = [8, 0], sizes = [1, 128], strides = [1, 1]} : vector<32x256xf32> to vector<1x128xf32>
    %90 = vector.broadcast %89 : vector<1x128xf32> to vector<32x128xf32>
    %91 = arith.addf %88, %90 : vector<32x128xf32>
    %cst_36 = arith.constant 0.000000e+00 : f32
    %92 = vector.broadcast %cst_36 : f32 to vector<32x128xf32>
    %93 = arith.cmpf ogt, %91, %92 : vector<32x128xf32>
    %cst_37 = arith.constant 2.000000e-01 : f32
    %94 = vector.broadcast %cst_37 : f32 to vector<32x128xf32>
    %95 = arith.mulf %94, %91 : vector<32x128xf32>
    %96 = arith.select %93, %91, %95 : vector<32x128xi1>, vector<32x128xf32>
    %c1152 = arith.constant 1152 : index
    %c0_38 = arith.constant 0 : index
    %97 = vector.load %arg2[%c1152, %c0_38] : memref<2048x128xbf16, #tpu.memory_space<vmem>>, vector<128x128xbf16>
    %98 = arith.truncf %96 : vector<32x128xf32> to vector<32x128xbf16>
    %cst_39 = arith.constant dense<0.000000e+00> : vector<32x128xf32>
    %99 = tpu.matmul %98, %97, %cst_39 {dimension_numbers = #tpu.dot_dimension_numbers<[1], [0], [0], [1], [0, 0, 1, 1], [], []>} : vector<32x128xbf16>, vector<128x128xbf16>, vector<32x128xf32> -> vector<32x128xf32>
    %100 = vector.extract_strided_slice %0 {offsets = [9, 0], sizes = [1, 128], strides = [1, 1]} : vector<32x256xf32> to vector<1x128xf32>
    %101 = vector.broadcast %100 : vector<1x128xf32> to vector<32x128xf32>
    %102 = arith.addf %99, %101 : vector<32x128xf32>
    %103 = vector.extract_strided_slice %0 {offsets = [16, 0], sizes = [1, 128], strides = [1, 1]} : vector<32x256xf32> to vector<1x128xf32>
    %104 = vector.extract_strided_slice %0 {offsets = [22, 0], sizes = [1, 128], strides = [1, 1]} : vector<32x256xf32> to vector<1x128xf32>
    %cst_40 = arith.constant dense<0.000000e+00> : vector<128xf32>
    %105 = vector.multi_reduction <add>, %102, %cst_40 [0] : vector<32x128xf32> to vector<128xf32>
    %106 = vector.shape_cast %105 : vector<128xf32> to vector<1x128xf32>
    %cst_41 = arith.constant 3.125000e-02 : f32
    %107 = vector.broadcast %cst_41 : f32 to vector<1x128xf32>
    %108 = arith.mulf %106, %107 : vector<1x128xf32>
    %109 = vector.broadcast %108 : vector<1x128xf32> to vector<32x128xf32>
    %110 = arith.subf %102, %109 : vector<32x128xf32>
    %111 = arith.mulf %110, %110 : vector<32x128xf32>
    %cst_42 = arith.constant dense<0.000000e+00> : vector<128xf32>
    %112 = vector.multi_reduction <add>, %111, %cst_42 [0] : vector<32x128xf32> to vector<128xf32>
    %113 = vector.shape_cast %112 : vector<128xf32> to vector<1x128xf32>
    %cst_43 = arith.constant 3.125000e-02 : f32
    %114 = vector.broadcast %cst_43 : f32 to vector<1x128xf32>
    %115 = arith.mulf %113, %114 : vector<1x128xf32>
    %cst_44 = arith.constant 8.000000e-01 : f32
    %116 = vector.broadcast %cst_44 : f32 to vector<1x128xf32>
    %117 = arith.addf %115, %116 : vector<1x128xf32>
    %118 = math.rsqrt %117 : vector<1x128xf32>
    %119 = vector.broadcast %118 : vector<1x128xf32> to vector<32x128xf32>
    %120 = arith.mulf %110, %119 : vector<32x128xf32>
    %121 = vector.broadcast %103 : vector<1x128xf32> to vector<32x128xf32>
    %122 = arith.mulf %120, %121 : vector<32x128xf32>
    %123 = vector.broadcast %104 : vector<1x128xf32> to vector<32x128xf32>
    %124 = arith.addf %122, %123 : vector<32x128xf32>
    %cst_45 = arith.constant 0.000000e+00 : f32
    %125 = vector.broadcast %cst_45 : f32 to vector<32x128xf32>
    %126 = arith.cmpf ogt, %124, %125 : vector<32x128xf32>
    %cst_46 = arith.constant 2.000000e-01 : f32
    %127 = vector.broadcast %cst_46 : f32 to vector<32x128xf32>
    %128 = arith.mulf %127, %124 : vector<32x128xf32>
    %129 = arith.select %126, %124, %128 : vector<32x128xi1>, vector<32x128xf32>
    %c1280 = arith.constant 1280 : index
    %c0_47 = arith.constant 0 : index
    %130 = vector.load %arg2[%c1280, %c0_47] : memref<2048x128xbf16, #tpu.memory_space<vmem>>, vector<128x128xbf16>
    %131 = arith.truncf %129 : vector<32x128xf32> to vector<32x128xbf16>
    %cst_48 = arith.constant dense<0.000000e+00> : vector<32x128xf32>
    %132 = tpu.matmul %131, %130, %cst_48 {dimension_numbers = #tpu.dot_dimension_numbers<[1], [0], [0], [1], [0, 0, 1, 1], [], []>} : vector<32x128xbf16>, vector<128x128xbf16>, vector<32x128xf32> -> vector<32x128xf32>
    %133 = vector.extract_strided_slice %0 {offsets = [10, 0], sizes = [1, 128], strides = [1, 1]} : vector<32x256xf32> to vector<1x128xf32>
    %134 = vector.broadcast %133 : vector<1x128xf32> to vector<32x128xf32>
    %135 = arith.addf %132, %134 : vector<32x128xf32>
    %136 = vector.extract_strided_slice %0 {offsets = [17, 0], sizes = [1, 128], strides = [1, 1]} : vector<32x256xf32> to vector<1x128xf32>
    %137 = vector.extract_strided_slice %0 {offsets = [23, 0], sizes = [1, 128], strides = [1, 1]} : vector<32x256xf32> to vector<1x128xf32>
    %cst_49 = arith.constant dense<0.000000e+00> : vector<128xf32>
    %138 = vector.multi_reduction <add>, %135, %cst_49 [0] : vector<32x128xf32> to vector<128xf32>
    %139 = vector.shape_cast %138 : vector<128xf32> to vector<1x128xf32>
    %cst_50 = arith.constant 3.125000e-02 : f32
    %140 = vector.broadcast %cst_50 : f32 to vector<1x128xf32>
    %141 = arith.mulf %139, %140 : vector<1x128xf32>
    %142 = vector.broadcast %141 : vector<1x128xf32> to vector<32x128xf32>
    %143 = arith.subf %135, %142 : vector<32x128xf32>
    %144 = arith.mulf %143, %143 : vector<32x128xf32>
    %cst_51 = arith.constant dense<0.000000e+00> : vector<128xf32>
    %145 = vector.multi_reduction <add>, %144, %cst_51 [0] : vector<32x128xf32> to vector<128xf32>
    %146 = vector.shape_cast %145 : vector<128xf32> to vector<1x128xf32>
    %cst_52 = arith.constant 3.125000e-02 : f32
    %147 = vector.broadcast %cst_52 : f32 to vector<1x128xf32>
    %148 = arith.mulf %146, %147 : vector<1x128xf32>
    %cst_53 = arith.constant 8.000000e-01 : f32
    %149 = vector.broadcast %cst_53 : f32 to vector<1x128xf32>
    %150 = arith.addf %148, %149 : vector<1x128xf32>
    %151 = math.rsqrt %150 : vector<1x128xf32>
    %152 = vector.broadcast %151 : vector<1x128xf32> to vector<32x128xf32>
    %153 = arith.mulf %143, %152 : vector<32x128xf32>
    %154 = vector.broadcast %136 : vector<1x128xf32> to vector<32x128xf32>
    %155 = arith.mulf %153, %154 : vector<32x128xf32>
    %156 = vector.broadcast %137 : vector<1x128xf32> to vector<32x128xf32>
    %157 = arith.addf %155, %156 : vector<32x128xf32>
    %cst_54 = arith.constant 0.000000e+00 : f32
    %158 = vector.broadcast %cst_54 : f32 to vector<32x128xf32>
    %159 = arith.cmpf ogt, %157, %158 : vector<32x128xf32>
    %cst_55 = arith.constant 2.000000e-01 : f32
    %160 = vector.broadcast %cst_55 : f32 to vector<32x128xf32>
    %161 = arith.mulf %160, %157 : vector<32x128xf32>
    %162 = arith.select %159, %157, %161 : vector<32x128xi1>, vector<32x128xf32>
    %c1408 = arith.constant 1408 : index
    %c0_56 = arith.constant 0 : index
    %163 = vector.load %arg2[%c1408, %c0_56] : memref<2048x128xbf16, #tpu.memory_space<vmem>>, vector<128x128xbf16>
    %164 = arith.truncf %162 : vector<32x128xf32> to vector<32x128xbf16>
    %cst_57 = arith.constant dense<0.000000e+00> : vector<32x128xf32>
    %165 = tpu.matmul %164, %163, %cst_57 {dimension_numbers = #tpu.dot_dimension_numbers<[1], [0], [0], [1], [0, 0, 1, 1], [], []>} : vector<32x128xbf16>, vector<128x128xbf16>, vector<32x128xf32> -> vector<32x128xf32>
    %166 = vector.extract_strided_slice %0 {offsets = [11, 0], sizes = [1, 128], strides = [1, 1]} : vector<32x256xf32> to vector<1x128xf32>
    %167 = vector.broadcast %166 : vector<1x128xf32> to vector<32x128xf32>
    %168 = arith.addf %165, %167 : vector<32x128xf32>
    %169 = vector.extract_strided_slice %0 {offsets = [18, 0], sizes = [1, 128], strides = [1, 1]} : vector<32x256xf32> to vector<1x128xf32>
    %170 = vector.extract_strided_slice %0 {offsets = [24, 0], sizes = [1, 128], strides = [1, 1]} : vector<32x256xf32> to vector<1x128xf32>
    %cst_58 = arith.constant dense<0.000000e+00> : vector<128xf32>
    %171 = vector.multi_reduction <add>, %168, %cst_58 [0] : vector<32x128xf32> to vector<128xf32>
    %172 = vector.shape_cast %171 : vector<128xf32> to vector<1x128xf32>
    %cst_59 = arith.constant 3.125000e-02 : f32
    %173 = vector.broadcast %cst_59 : f32 to vector<1x128xf32>
    %174 = arith.mulf %172, %173 : vector<1x128xf32>
    %175 = vector.broadcast %174 : vector<1x128xf32> to vector<32x128xf32>
    %176 = arith.subf %168, %175 : vector<32x128xf32>
    %177 = arith.mulf %176, %176 : vector<32x128xf32>
    %cst_60 = arith.constant dense<0.000000e+00> : vector<128xf32>
    %178 = vector.multi_reduction <add>, %177, %cst_60 [0] : vector<32x128xf32> to vector<128xf32>
    %179 = vector.shape_cast %178 : vector<128xf32> to vector<1x128xf32>
    %cst_61 = arith.constant 3.125000e-02 : f32
    %180 = vector.broadcast %cst_61 : f32 to vector<1x128xf32>
    %181 = arith.mulf %179, %180 : vector<1x128xf32>
    %cst_62 = arith.constant 8.000000e-01 : f32
    %182 = vector.broadcast %cst_62 : f32 to vector<1x128xf32>
    %183 = arith.addf %181, %182 : vector<1x128xf32>
    %184 = math.rsqrt %183 : vector<1x128xf32>
    %185 = vector.broadcast %184 : vector<1x128xf32> to vector<32x128xf32>
    %186 = arith.mulf %176, %185 : vector<32x128xf32>
    %187 = vector.broadcast %169 : vector<1x128xf32> to vector<32x128xf32>
    %188 = arith.mulf %186, %187 : vector<32x128xf32>
    %189 = vector.broadcast %170 : vector<1x128xf32> to vector<32x128xf32>
    %190 = arith.addf %188, %189 : vector<32x128xf32>
    %cst_63 = arith.constant 0.000000e+00 : f32
    %191 = vector.broadcast %cst_63 : f32 to vector<32x128xf32>
    %192 = arith.cmpf ogt, %190, %191 : vector<32x128xf32>
    %cst_64 = arith.constant 2.000000e-01 : f32
    %193 = vector.broadcast %cst_64 : f32 to vector<32x128xf32>
    %194 = arith.mulf %193, %190 : vector<32x128xf32>
    %195 = arith.select %192, %190, %194 : vector<32x128xi1>, vector<32x128xf32>
    %c1536 = arith.constant 1536 : index
    %c0_65 = arith.constant 0 : index
    %196 = vector.load %arg2[%c1536, %c0_65] : memref<2048x128xbf16, #tpu.memory_space<vmem>>, vector<128x128xbf16>
    %197 = arith.truncf %195 : vector<32x128xf32> to vector<32x128xbf16>
    %cst_66 = arith.constant dense<0.000000e+00> : vector<32x128xf32>
    %198 = tpu.matmul %197, %196, %cst_66 {dimension_numbers = #tpu.dot_dimension_numbers<[1], [0], [0], [1], [0, 0, 1, 1], [], []>} : vector<32x128xbf16>, vector<128x128xbf16>, vector<32x128xf32> -> vector<32x128xf32>
    %199 = vector.extract_strided_slice %0 {offsets = [12, 0], sizes = [1, 128], strides = [1, 1]} : vector<32x256xf32> to vector<1x128xf32>
    %200 = vector.broadcast %199 : vector<1x128xf32> to vector<32x128xf32>
    %201 = arith.addf %198, %200 : vector<32x128xf32>
    %202 = vector.extract_strided_slice %0 {offsets = [19, 0], sizes = [1, 128], strides = [1, 1]} : vector<32x256xf32> to vector<1x128xf32>
    %203 = vector.extract_strided_slice %0 {offsets = [25, 0], sizes = [1, 128], strides = [1, 1]} : vector<32x256xf32> to vector<1x128xf32>
    %cst_67 = arith.constant dense<0.000000e+00> : vector<128xf32>
    %204 = vector.multi_reduction <add>, %201, %cst_67 [0] : vector<32x128xf32> to vector<128xf32>
    %205 = vector.shape_cast %204 : vector<128xf32> to vector<1x128xf32>
    %cst_68 = arith.constant 3.125000e-02 : f32
    %206 = vector.broadcast %cst_68 : f32 to vector<1x128xf32>
    %207 = arith.mulf %205, %206 : vector<1x128xf32>
    %208 = vector.broadcast %207 : vector<1x128xf32> to vector<32x128xf32>
    %209 = arith.subf %201, %208 : vector<32x128xf32>
    %210 = arith.mulf %209, %209 : vector<32x128xf32>
    %cst_69 = arith.constant dense<0.000000e+00> : vector<128xf32>
    %211 = vector.multi_reduction <add>, %210, %cst_69 [0] : vector<32x128xf32> to vector<128xf32>
    %212 = vector.shape_cast %211 : vector<128xf32> to vector<1x128xf32>
    %cst_70 = arith.constant 3.125000e-02 : f32
    %213 = vector.broadcast %cst_70 : f32 to vector<1x128xf32>
    %214 = arith.mulf %212, %213 : vector<1x128xf32>
    %cst_71 = arith.constant 8.000000e-01 : f32
    %215 = vector.broadcast %cst_71 : f32 to vector<1x128xf32>
    %216 = arith.addf %214, %215 : vector<1x128xf32>
    %217 = math.rsqrt %216 : vector<1x128xf32>
    %218 = vector.broadcast %217 : vector<1x128xf32> to vector<32x128xf32>
    %219 = arith.mulf %209, %218 : vector<32x128xf32>
    %220 = vector.broadcast %202 : vector<1x128xf32> to vector<32x128xf32>
    %221 = arith.mulf %219, %220 : vector<32x128xf32>
    %222 = vector.broadcast %203 : vector<1x128xf32> to vector<32x128xf32>
    %223 = arith.addf %221, %222 : vector<32x128xf32>
    %cst_72 = arith.constant 0.000000e+00 : f32
    %224 = vector.broadcast %cst_72 : f32 to vector<32x128xf32>
    %225 = arith.cmpf ogt, %223, %224 : vector<32x128xf32>
    %cst_73 = arith.constant 2.000000e-01 : f32
    %226 = vector.broadcast %cst_73 : f32 to vector<32x128xf32>
    %227 = arith.mulf %226, %223 : vector<32x128xf32>
    %228 = arith.select %225, %223, %227 : vector<32x128xi1>, vector<32x128xf32>
    %c1664 = arith.constant 1664 : index
    %c0_74 = arith.constant 0 : index
    %229 = vector.load %arg2[%c1664, %c0_74] : memref<2048x128xbf16, #tpu.memory_space<vmem>>, vector<128x128xbf16>
    %230 = arith.truncf %228 : vector<32x128xf32> to vector<32x128xbf16>
    %cst_75 = arith.constant dense<0.000000e+00> : vector<32x128xf32>
    %231 = tpu.matmul %230, %229, %cst_75 {dimension_numbers = #tpu.dot_dimension_numbers<[1], [0], [0], [1], [0, 0, 1, 1], [], []>} : vector<32x128xbf16>, vector<128x128xbf16>, vector<32x128xf32> -> vector<32x128xf32>
    %232 = vector.extract_strided_slice %0 {offsets = [13, 0], sizes = [1, 128], strides = [1, 1]} : vector<32x256xf32> to vector<1x128xf32>
    %233 = vector.broadcast %232 : vector<1x128xf32> to vector<32x128xf32>
    %234 = arith.addf %231, %233 : vector<32x128xf32>
    %235 = vector.extract_strided_slice %0 {offsets = [20, 0], sizes = [1, 128], strides = [1, 1]} : vector<32x256xf32> to vector<1x128xf32>
    %236 = vector.extract_strided_slice %0 {offsets = [26, 0], sizes = [1, 128], strides = [1, 1]} : vector<32x256xf32> to vector<1x128xf32>
    %cst_76 = arith.constant dense<0.000000e+00> : vector<128xf32>
    %237 = vector.multi_reduction <add>, %234, %cst_76 [0] : vector<32x128xf32> to vector<128xf32>
    %238 = vector.shape_cast %237 : vector<128xf32> to vector<1x128xf32>
    %cst_77 = arith.constant 3.125000e-02 : f32
    %239 = vector.broadcast %cst_77 : f32 to vector<1x128xf32>
    %240 = arith.mulf %238, %239 : vector<1x128xf32>
    %241 = vector.broadcast %240 : vector<1x128xf32> to vector<32x128xf32>
    %242 = arith.subf %234, %241 : vector<32x128xf32>
    %243 = arith.mulf %242, %242 : vector<32x128xf32>
    %cst_78 = arith.constant dense<0.000000e+00> : vector<128xf32>
    %244 = vector.multi_reduction <add>, %243, %cst_78 [0] : vector<32x128xf32> to vector<128xf32>
    %245 = vector.shape_cast %244 : vector<128xf32> to vector<1x128xf32>
    %cst_79 = arith.constant 3.125000e-02 : f32
    %246 = vector.broadcast %cst_79 : f32 to vector<1x128xf32>
    %247 = arith.mulf %245, %246 : vector<1x128xf32>
    %cst_80 = arith.constant 8.000000e-01 : f32
    %248 = vector.broadcast %cst_80 : f32 to vector<1x128xf32>
    %249 = arith.addf %247, %248 : vector<1x128xf32>
    %250 = math.rsqrt %249 : vector<1x128xf32>
    %251 = vector.broadcast %250 : vector<1x128xf32> to vector<32x128xf32>
    %252 = arith.mulf %242, %251 : vector<32x128xf32>
    %253 = vector.broadcast %235 : vector<1x128xf32> to vector<32x128xf32>
    %254 = arith.mulf %252, %253 : vector<32x128xf32>
    %255 = vector.broadcast %236 : vector<1x128xf32> to vector<32x128xf32>
    %256 = arith.addf %254, %255 : vector<32x128xf32>
    %cst_81 = arith.constant 0.000000e+00 : f32
    %257 = vector.broadcast %cst_81 : f32 to vector<32x128xf32>
    %258 = arith.cmpf ogt, %256, %257 : vector<32x128xf32>
    %cst_82 = arith.constant 2.000000e-01 : f32
    %259 = vector.broadcast %cst_82 : f32 to vector<32x128xf32>
    %260 = arith.mulf %259, %256 : vector<32x128xf32>
    %261 = arith.select %258, %256, %260 : vector<32x128xi1>, vector<32x128xf32>
    %c128 = arith.constant 128 : index
    %c0_83 = arith.constant 0 : index
    %262 = vector.load %arg3[%c128, %c0_83] : memref<256x256xbf16, #tpu.memory_space<vmem>>, vector<128x256xbf16>
    %263 = arith.truncf %261 : vector<32x128xf32> to vector<32x128xbf16>
    %cst_84 = arith.constant dense<0.000000e+00> : vector<32x256xf32>
    %264 = tpu.matmul %263, %262, %cst_84 {dimension_numbers = #tpu.dot_dimension_numbers<[1], [0], [0], [1], [0, 0, 1, 1], [], []>} : vector<32x128xbf16>, vector<128x256xbf16>, vector<32x256xf32> -> vector<32x256xf32>
    %265 = vector.extract_strided_slice %0 {offsets = [14, 0], sizes = [1, 256], strides = [1, 1]} : vector<32x256xf32> to vector<1x256xf32>
    %266 = vector.broadcast %265 : vector<1x256xf32> to vector<32x256xf32>
    %267 = arith.addf %264, %266 : vector<32x256xf32>
    %268 = vector.extract_strided_slice %0 {offsets = [21, 0], sizes = [1, 256], strides = [1, 1]} : vector<32x256xf32> to vector<1x256xf32>
    %269 = vector.extract_strided_slice %0 {offsets = [27, 0], sizes = [1, 256], strides = [1, 1]} : vector<32x256xf32> to vector<1x256xf32>
    %cst_85 = arith.constant dense<0.000000e+00> : vector<256xf32>
    %270 = vector.multi_reduction <add>, %267, %cst_85 [0] : vector<32x256xf32> to vector<256xf32>
    %271 = vector.shape_cast %270 : vector<256xf32> to vector<1x256xf32>
    %cst_86 = arith.constant 3.125000e-02 : f32
    %272 = vector.broadcast %cst_86 : f32 to vector<1x256xf32>
    %273 = arith.mulf %271, %272 : vector<1x256xf32>
    %274 = vector.broadcast %273 : vector<1x256xf32> to vector<32x256xf32>
    %275 = arith.subf %267, %274 : vector<32x256xf32>
    %276 = arith.mulf %275, %275 : vector<32x256xf32>
    %cst_87 = arith.constant dense<0.000000e+00> : vector<256xf32>
    %277 = vector.multi_reduction <add>, %276, %cst_87 [0] : vector<32x256xf32> to vector<256xf32>
    %278 = vector.shape_cast %277 : vector<256xf32> to vector<1x256xf32>
    %cst_88 = arith.constant 3.125000e-02 : f32
    %279 = vector.broadcast %cst_88 : f32 to vector<1x256xf32>
    %280 = arith.mulf %278, %279 : vector<1x256xf32>
    %cst_89 = arith.constant 8.000000e-01 : f32
    %281 = vector.broadcast %cst_89 : f32 to vector<1x256xf32>
    %282 = arith.addf %280, %281 : vector<1x256xf32>
    %283 = math.rsqrt %282 : vector<1x256xf32>
    %284 = vector.broadcast %283 : vector<1x256xf32> to vector<32x256xf32>
    %285 = arith.mulf %275, %284 : vector<32x256xf32>
    %286 = vector.broadcast %268 : vector<1x256xf32> to vector<32x256xf32>
    %287 = arith.mulf %285, %286 : vector<32x256xf32>
    %288 = vector.broadcast %269 : vector<1x256xf32> to vector<32x256xf32>
    %289 = arith.addf %287, %288 : vector<32x256xf32>
    %cst_90 = arith.constant 0.000000e+00 : f32
    %290 = vector.broadcast %cst_90 : f32 to vector<32x256xf32>
    %291 = arith.cmpf ogt, %289, %290 : vector<32x256xf32>
    %cst_91 = arith.constant 2.000000e-01 : f32
    %292 = vector.broadcast %cst_91 : f32 to vector<32x256xf32>
    %293 = arith.mulf %292, %289 : vector<32x256xf32>
    %294 = arith.select %291, %289, %293 : vector<32x256xi1>, vector<32x256xf32>
    %c1792 = arith.constant 1792 : index
    %c0_92 = arith.constant 0 : index
    %295 = vector.load %arg2[%c1792, %c0_92] : memref<2048x128xbf16, #tpu.memory_space<vmem>>, vector<256x128xbf16>
    %296 = arith.truncf %294 : vector<32x256xf32> to vector<32x256xbf16>
    %cst_93 = arith.constant dense<0.000000e+00> : vector<32x128xf32>
    %297 = tpu.matmul %296, %295, %cst_93 {dimension_numbers = #tpu.dot_dimension_numbers<[1], [0], [0], [1], [0, 0, 1, 1], [], []>} : vector<32x256xbf16>, vector<256x128xbf16>, vector<32x128xf32> -> vector<32x128xf32>
    %298 = vector.extract_strided_slice %0 {offsets = [15, 0], sizes = [1, 128], strides = [1, 1]} : vector<32x256xf32> to vector<1x128xf32>
    %299 = vector.broadcast %298 : vector<1x128xf32> to vector<32x128xf32>
    %300 = arith.addf %297, %299 : vector<32x128xf32>
    %301 = math.tanh %300 : vector<32x128xf32>
    %c0_94 = arith.constant 0 : index
    %c0_95 = arith.constant 0 : index
    %302 = vector.load %arg5[%c0_94, %c0_95] : memref<32x128xf32, #tpu.memory_space<vmem>>, vector<32x128xf32>
    tpu.vector_store %arg5[%c0_94, %c0_95], %301 {strides = array<i32>} : memref<32x128xf32, #tpu.memory_space<vmem>>, vector<32x128xf32>,
    return
  }
  func.func @transform_0(%arg0: i32) -> (i32, i32) {
    %c0_i32 = arith.constant 0 : i32
    %c0_i32_0 = arith.constant 0 : i32
    return %arg0, %c0_i32 : i32, i32
  }
  func.func @transform_1(%arg0: i32) -> (i32, i32) {
    %c0_i32 = arith.constant 0 : i32
    %c0_i32_0 = arith.constant 0 : i32
    %c0_i32_1 = arith.constant 0 : i32
    return %c0_i32, %c0_i32_0 : i32, i32
  }
  func.func @transform_2(%arg0: i32) -> (i32, i32) {
    %c0_i32 = arith.constant 0 : i32
    %c0_i32_0 = arith.constant 0 : i32
    %c0_i32_1 = arith.constant 0 : i32
    return %c0_i32, %c0_i32_0 : i32, i32
  }
  func.func @transform_3(%arg0: i32) -> (i32, i32) {
    %c0_i32 = arith.constant 0 : i32
    %c0_i32_0 = arith.constant 0 : i32
    %c0_i32_1 = arith.constant 0 : i32
    return %c0_i32, %c0_i32_0 : i32, i32
  }
  func.func @transform_4(%arg0: i32) -> (i32, i32) {
    %c0_i32 = arith.constant 0 : i32
    %c0_i32_0 = arith.constant 0 : i32
    return %arg0, %c0_i32 : i32, i32
  }
}

module attributes {stable_mosaic.version = 11 : i64} {
  func.func @_ae_kernel_single(%arg0: i32, %arg1: memref<32x128xf32, #tpu.memory_space<vmem>>, %arg2: memref<2048x128xbf16, #tpu.memory_space<vmem>>, %arg3: memref<256x256xbf16, #tpu.memory_space<vmem>>, %arg4: memref<32x256xf32, #tpu.memory_space<vmem>>, %arg5: memref<32x128xf32, #tpu.memory_space<vmem>>) attributes {dimension_semantics = [#tpu.dimension_semantics<arbitrary>], iteration_bounds = array<i64: 1>, scalar_prefetch = 0 : i64, scratch_operands = 0 : i64, tpu.core_type = #tpu.core_type<tc>, window_params = [{transform_indices = @transform_0, window_bounds = array<i64: 32, 128>}, {pipeline_mode = #tpu.pipeline_mode<synchronous>, transform_indices = @transform_1, window_bounds = array<i64: 2048, 128>}, {pipeline_mode = #tpu.pipeline_mode<synchronous>, transform_indices = @transform_2, window_bounds = array<i64: 256, 256>}, {pipeline_mode = #tpu.pipeline_mode<synchronous>, transform_indices = @transform_3, window_bounds = array<i64: 32, 256>}, {transform_indices = @transform_4, window_bounds = array<i64: 32, 128>}]} {
    %c0 = arith.constant 0 : index
    %c0_0 = arith.constant 0 : index
    %0 = vector.load %arg4[%c0, %c0_0] : memref<32x256xf32, #tpu.memory_space<vmem>>, vector<32x256xf32>
    %c0_1 = arith.constant 0 : index
    %c0_2 = arith.constant 0 : index
    %1 = vector.load %arg1[%c0_1, %c0_2] : memref<32x128xf32, #tpu.memory_space<vmem>>, vector<32x128xf32>
    %c0_3 = arith.constant 0 : index
    %c0_4 = arith.constant 0 : index
    %2 = vector.load %arg3[%c0_3, %c0_4] : memref<256x256xbf16, #tpu.memory_space<vmem>>, vector<128x256xbf16>
    %3 = arith.truncf %1 : vector<32x128xf32> to vector<32x128xbf16>
    %cst = arith.constant dense<0.000000e+00> : vector<32x256xf32>
    %4 = tpu.matmul %3, %2, %cst {dimension_numbers = #tpu.dot_dimension_numbers<[1], [0], [0], [1], [0, 0, 1, 1], [], []>} : vector<32x128xbf16>, vector<128x256xbf16>, vector<32x256xf32> -> vector<32x256xf32>
    %5 = vector.extract_strided_slice %0 {offsets = [0, 0], sizes = [1, 256], strides = [1, 1]} : vector<32x256xf32> to vector<1x256xf32>
    %6 = vector.broadcast %5 : vector<1x256xf32> to vector<32x256xf32>
    %7 = arith.addf %4, %6 : vector<32x256xf32>
    %cst_5 = arith.constant 0.000000e+00 : f32
    %8 = vector.broadcast %cst_5 : f32 to vector<32x256xf32>
    %9 = arith.cmpf ogt, %7, %8 : vector<32x256xf32>
    %cst_6 = arith.constant 2.000000e-01 : f32
    %10 = vector.broadcast %cst_6 : f32 to vector<32x256xf32>
    %11 = arith.mulf %10, %7 : vector<32x256xf32>
    %12 = arith.select %9, %7, %11 : vector<32x256xi1>, vector<32x256xf32>
    %c0_7 = arith.constant 0 : index
    %c0_8 = arith.constant 0 : index
    %13 = vector.load %arg2[%c0_7, %c0_8] : memref<2048x128xbf16, #tpu.memory_space<vmem>>, vector<256x128xbf16>
    %14 = arith.truncf %12 : vector<32x256xf32> to vector<32x256xbf16>
    %cst_9 = arith.constant dense<0.000000e+00> : vector<32x128xf32>
    %15 = tpu.matmul %14, %13, %cst_9 {dimension_numbers = #tpu.dot_dimension_numbers<[1], [0], [0], [1], [0, 0, 1, 1], [], []>} : vector<32x256xbf16>, vector<256x128xbf16>, vector<32x128xf32> -> vector<32x128xf32>
    %16 = vector.extract_strided_slice %0 {offsets = [1, 0], sizes = [1, 128], strides = [1, 1]} : vector<32x256xf32> to vector<1x128xf32>
    %17 = vector.broadcast %16 : vector<1x128xf32> to vector<32x128xf32>
    %18 = arith.addf %15, %17 : vector<32x128xf32>
    %cst_10 = arith.constant 0.000000e+00 : f32
    %19 = vector.broadcast %cst_10 : f32 to vector<32x128xf32>
    %20 = arith.cmpf ogt, %18, %19 : vector<32x128xf32>
    %cst_11 = arith.constant 2.000000e-01 : f32
    %21 = vector.broadcast %cst_11 : f32 to vector<32x128xf32>
    %22 = arith.mulf %21, %18 : vector<32x128xf32>
    %23 = arith.select %20, %18, %22 : vector<32x128xi1>, vector<32x128xf32>
    %c256 = arith.constant 256 : index
    %c0_12 = arith.constant 0 : index
    %24 = vector.load %arg2[%c256, %c0_12] : memref<2048x128xbf16, #tpu.memory_space<vmem>>, vector<128x128xbf16>
    %25 = arith.truncf %23 : vector<32x128xf32> to vector<32x128xbf16>
    %cst_13 = arith.constant dense<0.000000e+00> : vector<32x128xf32>
    %26 = tpu.matmul %25, %24, %cst_13 {dimension_numbers = #tpu.dot_dimension_numbers<[1], [0], [0], [1], [0, 0, 1, 1], [], []>} : vector<32x128xbf16>, vector<128x128xbf16>, vector<32x128xf32> -> vector<32x128xf32>
    %27 = vector.extract_strided_slice %0 {offsets = [2, 0], sizes = [1, 128], strides = [1, 1]} : vector<32x256xf32> to vector<1x128xf32>
    %28 = vector.broadcast %27 : vector<1x128xf32> to vector<32x128xf32>
    %29 = arith.addf %26, %28 : vector<32x128xf32>
    %cst_14 = arith.constant 0.000000e+00 : f32
    %30 = vector.broadcast %cst_14 : f32 to vector<32x128xf32>
    %31 = arith.cmpf ogt, %29, %30 : vector<32x128xf32>
    %cst_15 = arith.constant 2.000000e-01 : f32
    %32 = vector.broadcast %cst_15 : f32 to vector<32x128xf32>
    %33 = arith.mulf %32, %29 : vector<32x128xf32>
    %34 = arith.select %31, %29, %33 : vector<32x128xi1>, vector<32x128xf32>
    %c384 = arith.constant 384 : index
    %c0_16 = arith.constant 0 : index
    %35 = vector.load %arg2[%c384, %c0_16] : memref<2048x128xbf16, #tpu.memory_space<vmem>>, vector<128x128xbf16>
    %36 = arith.truncf %34 : vector<32x128xf32> to vector<32x128xbf16>
    %cst_17 = arith.constant dense<0.000000e+00> : vector<32x128xf32>
    %37 = tpu.matmul %36, %35, %cst_17 {dimension_numbers = #tpu.dot_dimension_numbers<[1], [0], [0], [1], [0, 0, 1, 1], [], []>} : vector<32x128xbf16>, vector<128x128xbf16>, vector<32x128xf32> -> vector<32x128xf32>
    %38 = vector.extract_strided_slice %0 {offsets = [3, 0], sizes = [1, 128], strides = [1, 1]} : vector<32x256xf32> to vector<1x128xf32>
    %39 = vector.broadcast %38 : vector<1x128xf32> to vector<32x128xf32>
    %40 = arith.addf %37, %39 : vector<32x128xf32>
    %cst_18 = arith.constant 0.000000e+00 : f32
    %41 = vector.broadcast %cst_18 : f32 to vector<32x128xf32>
    %42 = arith.cmpf ogt, %40, %41 : vector<32x128xf32>
    %cst_19 = arith.constant 2.000000e-01 : f32
    %43 = vector.broadcast %cst_19 : f32 to vector<32x128xf32>
    %44 = arith.mulf %43, %40 : vector<32x128xf32>
    %45 = arith.select %42, %40, %44 : vector<32x128xi1>, vector<32x128xf32>
    %c512 = arith.constant 512 : index
    %c0_20 = arith.constant 0 : index
    %46 = vector.load %arg2[%c512, %c0_20] : memref<2048x128xbf16, #tpu.memory_space<vmem>>, vector<128x128xbf16>
    %47 = arith.truncf %45 : vector<32x128xf32> to vector<32x128xbf16>
    %cst_21 = arith.constant dense<0.000000e+00> : vector<32x128xf32>
    %48 = tpu.matmul %47, %46, %cst_21 {dimension_numbers = #tpu.dot_dimension_numbers<[1], [0], [0], [1], [0, 0, 1, 1], [], []>} : vector<32x128xbf16>, vector<128x128xbf16>, vector<32x128xf32> -> vector<32x128xf32>
    %49 = vector.extract_strided_slice %0 {offsets = [4, 0], sizes = [1, 128], strides = [1, 1]} : vector<32x256xf32> to vector<1x128xf32>
    %50 = vector.broadcast %49 : vector<1x128xf32> to vector<32x128xf32>
    %51 = arith.addf %48, %50 : vector<32x128xf32>
    %cst_22 = arith.constant 0.000000e+00 : f32
    %52 = vector.broadcast %cst_22 : f32 to vector<32x128xf32>
    %53 = arith.cmpf ogt, %51, %52 : vector<32x128xf32>
    %cst_23 = arith.constant 2.000000e-01 : f32
    %54 = vector.broadcast %cst_23 : f32 to vector<32x128xf32>
    %55 = arith.mulf %54, %51 : vector<32x128xf32>
    %56 = arith.select %53, %51, %55 : vector<32x128xi1>, vector<32x128xf32>
    %c640 = arith.constant 640 : index
    %c0_24 = arith.constant 0 : index
    %57 = vector.load %arg2[%c640, %c0_24] : memref<2048x128xbf16, #tpu.memory_space<vmem>>, vector<128x128xbf16>
    %58 = arith.truncf %56 : vector<32x128xf32> to vector<32x128xbf16>
    %cst_25 = arith.constant dense<0.000000e+00> : vector<32x128xf32>
    %59 = tpu.matmul %58, %57, %cst_25 {dimension_numbers = #tpu.dot_dimension_numbers<[1], [0], [0], [1], [0, 0, 1, 1], [], []>} : vector<32x128xbf16>, vector<128x128xbf16>, vector<32x128xf32> -> vector<32x128xf32>
    %60 = vector.extract_strided_slice %0 {offsets = [5, 0], sizes = [1, 128], strides = [1, 1]} : vector<32x256xf32> to vector<1x128xf32>
    %61 = vector.broadcast %60 : vector<1x128xf32> to vector<32x128xf32>
    %62 = arith.addf %59, %61 : vector<32x128xf32>
    %cst_26 = arith.constant 0.000000e+00 : f32
    %63 = vector.broadcast %cst_26 : f32 to vector<32x128xf32>
    %64 = arith.cmpf ogt, %62, %63 : vector<32x128xf32>
    %cst_27 = arith.constant 2.000000e-01 : f32
    %65 = vector.broadcast %cst_27 : f32 to vector<32x128xf32>
    %66 = arith.mulf %65, %62 : vector<32x128xf32>
    %67 = arith.select %64, %62, %66 : vector<32x128xi1>, vector<32x128xf32>
    %c768 = arith.constant 768 : index
    %c0_28 = arith.constant 0 : index
    %68 = vector.load %arg2[%c768, %c0_28] : memref<2048x128xbf16, #tpu.memory_space<vmem>>, vector<128x128xbf16>
    %69 = arith.truncf %67 : vector<32x128xf32> to vector<32x128xbf16>
    %cst_29 = arith.constant dense<0.000000e+00> : vector<32x128xf32>
    %70 = tpu.matmul %69, %68, %cst_29 {dimension_numbers = #tpu.dot_dimension_numbers<[1], [0], [0], [1], [0, 0, 1, 1], [], []>} : vector<32x128xbf16>, vector<128x128xbf16>, vector<32x128xf32> -> vector<32x128xf32>
    %71 = vector.extract_strided_slice %0 {offsets = [6, 0], sizes = [1, 128], strides = [1, 1]} : vector<32x256xf32> to vector<1x128xf32>
    %72 = vector.broadcast %71 : vector<1x128xf32> to vector<32x128xf32>
    %73 = arith.addf %70, %72 : vector<32x128xf32>
    %cst_30 = arith.constant 0.000000e+00 : f32
    %74 = vector.broadcast %cst_30 : f32 to vector<32x128xf32>
    %75 = arith.cmpf ogt, %73, %74 : vector<32x128xf32>
    %cst_31 = arith.constant 2.000000e-01 : f32
    %76 = vector.broadcast %cst_31 : f32 to vector<32x128xf32>
    %77 = arith.mulf %76, %73 : vector<32x128xf32>
    %78 = arith.select %75, %73, %77 : vector<32x128xi1>, vector<32x128xf32>
    %c896 = arith.constant 896 : index
    %c0_32 = arith.constant 0 : index
    %79 = vector.load %arg2[%c896, %c0_32] : memref<2048x128xbf16, #tpu.memory_space<vmem>>, vector<128x128xbf16>
    %80 = arith.truncf %78 : vector<32x128xf32> to vector<32x128xbf16>
    %cst_33 = arith.constant dense<0.000000e+00> : vector<32x128xf32>
    %81 = tpu.matmul %80, %79, %cst_33 {dimension_numbers = #tpu.dot_dimension_numbers<[1], [0], [0], [1], [0, 0, 1, 1], [], []>} : vector<32x128xbf16>, vector<128x128xbf16>, vector<32x128xf32> -> vector<32x128xf32>
    %82 = vector.extract_strided_slice %0 {offsets = [7, 0], sizes = [1, 128], strides = [1, 1]} : vector<32x256xf32> to vector<1x128xf32>
    %83 = vector.broadcast %82 : vector<1x128xf32> to vector<32x128xf32>
    %84 = arith.addf %81, %83 : vector<32x128xf32>
    %85 = math.tanh %84 : vector<32x128xf32>
    %c1024 = arith.constant 1024 : index
    %c0_34 = arith.constant 0 : index
    %86 = vector.load %arg2[%c1024, %c0_34] : memref<2048x128xbf16, #tpu.memory_space<vmem>>, vector<128x128xbf16>
    %87 = arith.truncf %85 : vector<32x128xf32> to vector<32x128xbf16>
    %cst_35 = arith.constant dense<0.000000e+00> : vector<32x128xf32>
    %88 = tpu.matmul %87, %86, %cst_35 {dimension_numbers = #tpu.dot_dimension_numbers<[1], [0], [0], [1], [0, 0, 1, 1], [], []>} : vector<32x128xbf16>, vector<128x128xbf16>, vector<32x128xf32> -> vector<32x128xf32>
    %89 = vector.extract_strided_slice %0 {offsets = [8, 0], sizes = [1, 128], strides = [1, 1]} : vector<32x256xf32> to vector<1x128xf32>
    %90 = vector.broadcast %89 : vector<1x128xf32> to vector<32x128xf32>
    %91 = arith.addf %88, %90 : vector<32x128xf32>
    %cst_36 = arith.constant 0.000000e+00 : f32
    %92 = vector.broadcast %cst_36 : f32 to vector<32x128xf32>
    %93 = arith.cmpf ogt, %91, %92 : vector<32x128xf32>
    %cst_37 = arith.constant 2.000000e-01 : f32
    %94 = vector.broadcast %cst_37 : f32 to vector<32x128xf32>
    %95 = arith.mulf %94, %91 : vector<32x128xf32>
    %96 = arith.select %93, %91, %95 : vector<32x128xi1>, vector<32x128xf32>
    %c1152 = arith.constant 1152 : index
    %c0_38 = arith.constant 0 : index
    %97 = vector.load %arg2[%c1152, %c0_38] : memref<2048x128xbf16, #tpu.memory_space<vmem>>, vector<128x128xbf16>
    %98 = arith.truncf %96 : vector<32x128xf32> to vector<32x128xbf16>
    %cst_39 = arith.constant dense<0.000000e+00> : vector<32x128xf32>
    %99 = tpu.matmul %98, %97, %cst_39 {dimension_numbers = #tpu.dot_dimension_numbers<[1], [0], [0], [1], [0, 0, 1, 1], [], []>} : vector<32x128xbf16>, vector<128x128xbf16>, vector<32x128xf32> -> vector<32x128xf32>
    %100 = vector.extract_strided_slice %0 {offsets = [9, 0], sizes = [1, 128], strides = [1, 1]} : vector<32x256xf32> to vector<1x128xf32>
    %101 = vector.broadcast %100 : vector<1x128xf32> to vector<32x128xf32>
    %102 = arith.addf %99, %101 : vector<32x128xf32>
    %103 = vector.extract_strided_slice %0 {offsets = [16, 0], sizes = [1, 128], strides = [1, 1]} : vector<32x256xf32> to vector<1x128xf32>
    %104 = vector.extract_strided_slice %0 {offsets = [22, 0], sizes = [1, 128], strides = [1, 1]} : vector<32x256xf32> to vector<1x128xf32>
    %cst_40 = arith.constant dense<0.000000e+00> : vector<128xf32>
    %105 = vector.multi_reduction <add>, %102, %cst_40 [0] : vector<32x128xf32> to vector<128xf32>
    %106 = vector.shape_cast %105 : vector<128xf32> to vector<1x128xf32>
    %cst_41 = arith.constant 3.125000e-02 : f32
    %107 = vector.broadcast %cst_41 : f32 to vector<1x128xf32>
    %108 = arith.mulf %106, %107 : vector<1x128xf32>
    %109 = vector.broadcast %108 : vector<1x128xf32> to vector<32x128xf32>
    %110 = arith.subf %102, %109 : vector<32x128xf32>
    %111 = arith.mulf %110, %110 : vector<32x128xf32>
    %cst_42 = arith.constant dense<0.000000e+00> : vector<128xf32>
    %112 = vector.multi_reduction <add>, %111, %cst_42 [0] : vector<32x128xf32> to vector<128xf32>
    %113 = vector.shape_cast %112 : vector<128xf32> to vector<1x128xf32>
    %cst_43 = arith.constant 3.125000e-02 : f32
    %114 = vector.broadcast %cst_43 : f32 to vector<1x128xf32>
    %115 = arith.mulf %113, %114 : vector<1x128xf32>
    %cst_44 = arith.constant 8.000000e-01 : f32
    %116 = vector.broadcast %cst_44 : f32 to vector<1x128xf32>
    %117 = arith.addf %115, %116 : vector<1x128xf32>
    %118 = math.rsqrt %117 : vector<1x128xf32>
    %119 = vector.broadcast %118 : vector<1x128xf32> to vector<32x128xf32>
    %120 = arith.mulf %110, %119 : vector<32x128xf32>
    %121 = vector.broadcast %103 : vector<1x128xf32> to vector<32x128xf32>
    %122 = arith.mulf %120, %121 : vector<32x128xf32>
    %123 = vector.broadcast %104 : vector<1x128xf32> to vector<32x128xf32>
    %124 = arith.addf %122, %123 : vector<32x128xf32>
    %cst_45 = arith.constant 0.000000e+00 : f32
    %125 = vector.broadcast %cst_45 : f32 to vector<32x128xf32>
    %126 = arith.cmpf ogt, %124, %125 : vector<32x128xf32>
    %cst_46 = arith.constant 2.000000e-01 : f32
    %127 = vector.broadcast %cst_46 : f32 to vector<32x128xf32>
    %128 = arith.mulf %127, %124 : vector<32x128xf32>
    %129 = arith.select %126, %124, %128 : vector<32x128xi1>, vector<32x128xf32>
    %c1280 = arith.constant 1280 : index
    %c0_47 = arith.constant 0 : index
    %130 = vector.load %arg2[%c1280, %c0_47] : memref<2048x128xbf16, #tpu.memory_space<vmem>>, vector<128x128xbf16>
    %131 = arith.truncf %129 : vector<32x128xf32> to vector<32x128xbf16>
    %cst_48 = arith.constant dense<0.000000e+00> : vector<32x128xf32>
    %132 = tpu.matmul %131, %130, %cst_48 {dimension_numbers = #tpu.dot_dimension_numbers<[1], [0], [0], [1], [0, 0, 1, 1], [], []>} : vector<32x128xbf16>, vector<128x128xbf16>, vector<32x128xf32> -> vector<32x128xf32>
    %133 = vector.extract_strided_slice %0 {offsets = [10, 0], sizes = [1, 128], strides = [1, 1]} : vector<32x256xf32> to vector<1x128xf32>
    %134 = vector.broadcast %133 : vector<1x128xf32> to vector<32x128xf32>
    %135 = arith.addf %132, %134 : vector<32x128xf32>
    %136 = vector.extract_strided_slice %0 {offsets = [17, 0], sizes = [1, 128], strides = [1, 1]} : vector<32x256xf32> to vector<1x128xf32>
    %137 = vector.extract_strided_slice %0 {offsets = [23, 0], sizes = [1, 128], strides = [1, 1]} : vector<32x256xf32> to vector<1x128xf32>
    %cst_49 = arith.constant dense<0.000000e+00> : vector<128xf32>
    %138 = vector.multi_reduction <add>, %135, %cst_49 [0] : vector<32x128xf32> to vector<128xf32>
    %139 = vector.shape_cast %138 : vector<128xf32> to vector<1x128xf32>
    %cst_50 = arith.constant 3.125000e-02 : f32
    %140 = vector.broadcast %cst_50 : f32 to vector<1x128xf32>
    %141 = arith.mulf %139, %140 : vector<1x128xf32>
    %142 = vector.broadcast %141 : vector<1x128xf32> to vector<32x128xf32>
    %143 = arith.subf %135, %142 : vector<32x128xf32>
    %144 = arith.mulf %143, %143 : vector<32x128xf32>
    %cst_51 = arith.constant dense<0.000000e+00> : vector<128xf32>
    %145 = vector.multi_reduction <add>, %144, %cst_51 [0] : vector<32x128xf32> to vector<128xf32>
    %146 = vector.shape_cast %145 : vector<128xf32> to vector<1x128xf32>
    %cst_52 = arith.constant 3.125000e-02 : f32
    %147 = vector.broadcast %cst_52 : f32 to vector<1x128xf32>
    %148 = arith.mulf %146, %147 : vector<1x128xf32>
    %cst_53 = arith.constant 8.000000e-01 : f32
    %149 = vector.broadcast %cst_53 : f32 to vector<1x128xf32>
    %150 = arith.addf %148, %149 : vector<1x128xf32>
    %151 = math.rsqrt %150 : vector<1x128xf32>
    %152 = vector.broadcast %151 : vector<1x128xf32> to vector<32x128xf32>
    %153 = arith.mulf %143, %152 : vector<32x128xf32>
    %154 = vector.broadcast %136 : vector<1x128xf32> to vector<32x128xf32>
    %155 = arith.mulf %153, %154 : vector<32x128xf32>
    %156 = vector.broadcast %137 : vector<1x128xf32> to vector<32x128xf32>
    %157 = arith.addf %155, %156 : vector<32x128xf32>
    %cst_54 = arith.constant 0.000000e+00 : f32
    %158 = vector.broadcast %cst_54 : f32 to vector<32x128xf32>
    %159 = arith.cmpf ogt, %157, %158 : vector<32x128xf32>
    %cst_55 = arith.constant 2.000000e-01 : f32
    %160 = vector.broadcast %cst_55 : f32 to vector<32x128xf32>
    %161 = arith.mulf %160, %157 : vector<32x128xf32>
    %162 = arith.select %159, %157, %161 : vector<32x128xi1>, vector<32x128xf32>
    %c1408 = arith.constant 1408 : index
    %c0_56 = arith.constant 0 : index
    %163 = vector.load %arg2[%c1408, %c0_56] : memref<2048x128xbf16, #tpu.memory_space<vmem>>, vector<128x128xbf16>
    %164 = arith.truncf %162 : vector<32x128xf32> to vector<32x128xbf16>
    %cst_57 = arith.constant dense<0.000000e+00> : vector<32x128xf32>
    %165 = tpu.matmul %164, %163, %cst_57 {dimension_numbers = #tpu.dot_dimension_numbers<[1], [0], [0], [1], [0, 0, 1, 1], [], []>} : vector<32x128xbf16>, vector<128x128xbf16>, vector<32x128xf32> -> vector<32x128xf32>
    %166 = vector.extract_strided_slice %0 {offsets = [11, 0], sizes = [1, 128], strides = [1, 1]} : vector<32x256xf32> to vector<1x128xf32>
    %167 = vector.broadcast %166 : vector<1x128xf32> to vector<32x128xf32>
    %168 = arith.addf %165, %167 : vector<32x128xf32>
    %169 = vector.extract_strided_slice %0 {offsets = [18, 0], sizes = [1, 128], strides = [1, 1]} : vector<32x256xf32> to vector<1x128xf32>
    %170 = vector.extract_strided_slice %0 {offsets = [24, 0], sizes = [1, 128], strides = [1, 1]} : vector<32x256xf32> to vector<1x128xf32>
    %cst_58 = arith.constant dense<0.000000e+00> : vector<128xf32>
    %171 = vector.multi_reduction <add>, %168, %cst_58 [0] : vector<32x128xf32> to vector<128xf32>
    %172 = vector.shape_cast %171 : vector<128xf32> to vector<1x128xf32>
    %cst_59 = arith.constant 3.125000e-02 : f32
    %173 = vector.broadcast %cst_59 : f32 to vector<1x128xf32>
    %174 = arith.mulf %172, %173 : vector<1x128xf32>
    %175 = vector.broadcast %174 : vector<1x128xf32> to vector<32x128xf32>
    %176 = arith.subf %168, %175 : vector<32x128xf32>
    %177 = arith.mulf %176, %176 : vector<32x128xf32>
    %cst_60 = arith.constant dense<0.000000e+00> : vector<128xf32>
    %178 = vector.multi_reduction <add>, %177, %cst_60 [0] : vector<32x128xf32> to vector<128xf32>
    %179 = vector.shape_cast %178 : vector<128xf32> to vector<1x128xf32>
    %cst_61 = arith.constant 3.125000e-02 : f32
    %180 = vector.broadcast %cst_61 : f32 to vector<1x128xf32>
    %181 = arith.mulf %179, %180 : vector<1x128xf32>
    %cst_62 = arith.constant 8.000000e-01 : f32
    %182 = vector.broadcast %cst_62 : f32 to vector<1x128xf32>
    %183 = arith.addf %181, %182 : vector<1x128xf32>
    %184 = math.rsqrt %183 : vector<1x128xf32>
    %185 = vector.broadcast %184 : vector<1x128xf32> to vector<32x128xf32>
    %186 = arith.mulf %176, %185 : vector<32x128xf32>
    %187 = vector.broadcast %169 : vector<1x128xf32> to vector<32x128xf32>
    %188 = arith.mulf %186, %187 : vector<32x128xf32>
    %189 = vector.broadcast %170 : vector<1x128xf32> to vector<32x128xf32>
    %190 = arith.addf %188, %189 : vector<32x128xf32>
    %cst_63 = arith.constant 0.000000e+00 : f32
    %191 = vector.broadcast %cst_63 : f32 to vector<32x128xf32>
    %192 = arith.cmpf ogt, %190, %191 : vector<32x128xf32>
    %cst_64 = arith.constant 2.000000e-01 : f32
    %193 = vector.broadcast %cst_64 : f32 to vector<32x128xf32>
    %194 = arith.mulf %193, %190 : vector<32x128xf32>
    %195 = arith.select %192, %190, %194 : vector<32x128xi1>, vector<32x128xf32>
    %c1536 = arith.constant 1536 : index
    %c0_65 = arith.constant 0 : index
    %196 = vector.load %arg2[%c1536, %c0_65] : memref<2048x128xbf16, #tpu.memory_space<vmem>>, vector<128x128xbf16>
    %197 = arith.truncf %195 : vector<32x128xf32> to vector<32x128xbf16>
    %cst_66 = arith.constant dense<0.000000e+00> : vector<32x128xf32>
    %198 = tpu.matmul %197, %196, %cst_66 {dimension_numbers = #tpu.dot_dimension_numbers<[1], [0], [0], [1], [0, 0, 1, 1], [], []>} : vector<32x128xbf16>, vector<128x128xbf16>, vector<32x128xf32> -> vector<32x128xf32>
    %199 = vector.extract_strided_slice %0 {offsets = [12, 0], sizes = [1, 128], strides = [1, 1]} : vector<32x256xf32> to vector<1x128xf32>
    %200 = vector.broadcast %199 : vector<1x128xf32> to vector<32x128xf32>
    %201 = arith.addf %198, %200 : vector<32x128xf32>
    %202 = vector.extract_strided_slice %0 {offsets = [19, 0], sizes = [1, 128], strides = [1, 1]} : vector<32x256xf32> to vector<1x128xf32>
    %203 = vector.extract_strided_slice %0 {offsets = [25, 0], sizes = [1, 128], strides = [1, 1]} : vector<32x256xf32> to vector<1x128xf32>
    %cst_67 = arith.constant dense<0.000000e+00> : vector<128xf32>
    %204 = vector.multi_reduction <add>, %201, %cst_67 [0] : vector<32x128xf32> to vector<128xf32>
    %205 = vector.shape_cast %204 : vector<128xf32> to vector<1x128xf32>
    %cst_68 = arith.constant 3.125000e-02 : f32
    %206 = vector.broadcast %cst_68 : f32 to vector<1x128xf32>
    %207 = arith.mulf %205, %206 : vector<1x128xf32>
    %208 = vector.broadcast %207 : vector<1x128xf32> to vector<32x128xf32>
    %209 = arith.subf %201, %208 : vector<32x128xf32>
    %210 = arith.mulf %209, %209 : vector<32x128xf32>
    %cst_69 = arith.constant dense<0.000000e+00> : vector<128xf32>
    %211 = vector.multi_reduction <add>, %210, %cst_69 [0] : vector<32x128xf32> to vector<128xf32>
    %212 = vector.shape_cast %211 : vector<128xf32> to vector<1x128xf32>
    %cst_70 = arith.constant 3.125000e-02 : f32
    %213 = vector.broadcast %cst_70 : f32 to vector<1x128xf32>
    %214 = arith.mulf %212, %213 : vector<1x128xf32>
    %cst_71 = arith.constant 8.000000e-01 : f32
    %215 = vector.broadcast %cst_71 : f32 to vector<1x128xf32>
    %216 = arith.addf %214, %215 : vector<1x128xf32>
    %217 = math.rsqrt %216 : vector<1x128xf32>
    %218 = vector.broadcast %217 : vector<1x128xf32> to vector<32x128xf32>
    %219 = arith.mulf %209, %218 : vector<32x128xf32>
    %220 = vector.broadcast %202 : vector<1x128xf32> to vector<32x128xf32>
    %221 = arith.mulf %219, %220 : vector<32x128xf32>
    %222 = vector.broadcast %203 : vector<1x128xf32> to vector<32x128xf32>
    %223 = arith.addf %221, %222 : vector<32x128xf32>
    %cst_72 = arith.constant 0.000000e+00 : f32
    %224 = vector.broadcast %cst_72 : f32 to vector<32x128xf32>
    %225 = arith.cmpf ogt, %223, %224 : vector<32x128xf32>
    %cst_73 = arith.constant 2.000000e-01 : f32
    %226 = vector.broadcast %cst_73 : f32 to vector<32x128xf32>
    %227 = arith.mulf %226, %223 : vector<32x128xf32>
    %228 = arith.select %225, %223, %227 : vector<32x128xi1>, vector<32x128xf32>
    %c1664 = arith.constant 1664 : index
    %c0_74 = arith.constant 0 : index
    %229 = vector.load %arg2[%c1664, %c0_74] : memref<2048x128xbf16, #tpu.memory_space<vmem>>, vector<128x128xbf16>
    %230 = arith.truncf %228 : vector<32x128xf32> to vector<32x128xbf16>
    %cst_75 = arith.constant dense<0.000000e+00> : vector<32x128xf32>
    %231 = tpu.matmul %230, %229, %cst_75 {dimension_numbers = #tpu.dot_dimension_numbers<[1], [0], [0], [1], [0, 0, 1, 1], [], []>} : vector<32x128xbf16>, vector<128x128xbf16>, vector<32x128xf32> -> vector<32x128xf32>
    %232 = vector.extract_strided_slice %0 {offsets = [13, 0], sizes = [1, 128], strides = [1, 1]} : vector<32x256xf32> to vector<1x128xf32>
    %233 = vector.broadcast %232 : vector<1x128xf32> to vector<32x128xf32>
    %234 = arith.addf %231, %233 : vector<32x128xf32>
    %235 = vector.extract_strided_slice %0 {offsets = [20, 0], sizes = [1, 128], strides = [1, 1]} : vector<32x256xf32> to vector<1x128xf32>
    %236 = vector.extract_strided_slice %0 {offsets = [26, 0], sizes = [1, 128], strides = [1, 1]} : vector<32x256xf32> to vector<1x128xf32>
    %cst_76 = arith.constant dense<0.000000e+00> : vector<128xf32>
    %237 = vector.multi_reduction <add>, %234, %cst_76 [0] : vector<32x128xf32> to vector<128xf32>
    %238 = vector.shape_cast %237 : vector<128xf32> to vector<1x128xf32>
    %cst_77 = arith.constant 3.125000e-02 : f32
    %239 = vector.broadcast %cst_77 : f32 to vector<1x128xf32>
    %240 = arith.mulf %238, %239 : vector<1x128xf32>
    %241 = vector.broadcast %240 : vector<1x128xf32> to vector<32x128xf32>
    %242 = arith.subf %234, %241 : vector<32x128xf32>
    %243 = arith.mulf %242, %242 : vector<32x128xf32>
    %cst_78 = arith.constant dense<0.000000e+00> : vector<128xf32>
    %244 = vector.multi_reduction <add>, %243, %cst_78 [0] : vector<32x128xf32> to vector<128xf32>
    %245 = vector.shape_cast %244 : vector<128xf32> to vector<1x128xf32>
    %cst_79 = arith.constant 3.125000e-02 : f32
    %246 = vector.broadcast %cst_79 : f32 to vector<1x128xf32>
    %247 = arith.mulf %245, %246 : vector<1x128xf32>
    %cst_80 = arith.constant 8.000000e-01 : f32
    %248 = vector.broadcast %cst_80 : f32 to vector<1x128xf32>
    %249 = arith.addf %247, %248 : vector<1x128xf32>
    %250 = math.rsqrt %249 : vector<1x128xf32>
    %251 = vector.broadcast %250 : vector<1x128xf32> to vector<32x128xf32>
    %252 = arith.mulf %242, %251 : vector<32x128xf32>
    %253 = vector.broadcast %235 : vector<1x128xf32> to vector<32x128xf32>
    %254 = arith.mulf %252, %253 : vector<32x128xf32>
    %255 = vector.broadcast %236 : vector<1x128xf32> to vector<32x128xf32>
    %256 = arith.addf %254, %255 : vector<32x128xf32>
    %cst_81 = arith.constant 0.000000e+00 : f32
    %257 = vector.broadcast %cst_81 : f32 to vector<32x128xf32>
    %258 = arith.cmpf ogt, %256, %257 : vector<32x128xf32>
    %cst_82 = arith.constant 2.000000e-01 : f32
    %259 = vector.broadcast %cst_82 : f32 to vector<32x128xf32>
    %260 = arith.mulf %259, %256 : vector<32x128xf32>
    %261 = arith.select %258, %256, %260 : vector<32x128xi1>, vector<32x128xf32>
    %c128 = arith.constant 128 : index
    %c0_83 = arith.constant 0 : index
    %262 = vector.load %arg3[%c128, %c0_83] : memref<256x256xbf16, #tpu.memory_space<vmem>>, vector<128x256xbf16>
    %263 = arith.truncf %261 : vector<32x128xf32> to vector<32x128xbf16>
    %cst_84 = arith.constant dense<0.000000e+00> : vector<32x256xf32>
    %264 = tpu.matmul %263, %262, %cst_84 {dimension_numbers = #tpu.dot_dimension_numbers<[1], [0], [0], [1], [0, 0, 1, 1], [], []>} : vector<32x128xbf16>, vector<128x256xbf16>, vector<32x256xf32> -> vector<32x256xf32>
    %265 = vector.extract_strided_slice %0 {offsets = [14, 0], sizes = [1, 256], strides = [1, 1]} : vector<32x256xf32> to vector<1x256xf32>
    %266 = vector.broadcast %265 : vector<1x256xf32> to vector<32x256xf32>
    %267 = arith.addf %264, %266 : vector<32x256xf32>
    %268 = vector.extract_strided_slice %0 {offsets = [21, 0], sizes = [1, 256], strides = [1, 1]} : vector<32x256xf32> to vector<1x256xf32>
    %269 = vector.extract_strided_slice %0 {offsets = [27, 0], sizes = [1, 256], strides = [1, 1]} : vector<32x256xf32> to vector<1x256xf32>
    %cst_85 = arith.constant dense<0.000000e+00> : vector<256xf32>
    %270 = vector.multi_reduction <add>, %267, %cst_85 [0] : vector<32x256xf32> to vector<256xf32>
    %271 = vector.shape_cast %270 : vector<256xf32> to vector<1x256xf32>
    %cst_86 = arith.constant 3.125000e-02 : f32
    %272 = vector.broadcast %cst_86 : f32 to vector<1x256xf32>
    %273 = arith.mulf %271, %272 : vector<1x256xf32>
    %274 = vector.broadcast %273 : vector<1x256xf32> to vector<32x256xf32>
    %275 = arith.subf %267, %274 : vector<32x256xf32>
    %276 = arith.mulf %275, %275 : vector<32x256xf32>
    %cst_87 = arith.constant dense<0.000000e+00> : vector<256xf32>
    %277 = vector.multi_reduction <add>, %276, %cst_87 [0] : vector<32x256xf32> to vector<256xf32>
    %278 = vector.shape_cast %277 : vector<256xf32> to vector<1x256xf32>
    %cst_88 = arith.constant 3.125000e-02 : f32
    %279 = vector.broadcast %cst_88 : f32 to vector<1x256xf32>
    %280 = arith.mulf %278, %279 : vector<1x256xf32>
    %cst_89 = arith.constant 8.000000e-01 : f32
    %281 = vector.broadcast %cst_89 : f32 to vector<1x256xf32>
    %282 = arith.addf %280, %281 : vector<1x256xf32>
    %283 = math.rsqrt %282 : vector<1x256xf32>
    %284 = vector.broadcast %283 : vector<1x256xf32> to vector<32x256xf32>
    %285 = arith.mulf %275, %284 : vector<32x256xf32>
    %286 = vector.broadcast %268 : vector<1x256xf32> to vector<32x256xf32>
    %287 = arith.mulf %285, %286 : vector<32x256xf32>
    %288 = vector.broadcast %269 : vector<1x256xf32> to vector<32x256xf32>
    %289 = arith.addf %287, %288 : vector<32x256xf32>
    %cst_90 = arith.constant 0.000000e+00 : f32
    %290 = vector.broadcast %cst_90 : f32 to vector<32x256xf32>
    %291 = arith.cmpf ogt, %289, %290 : vector<32x256xf32>
    %cst_91 = arith.constant 2.000000e-01 : f32
    %292 = vector.broadcast %cst_91 : f32 to vector<32x256xf32>
    %293 = arith.mulf %292, %289 : vector<32x256xf32>
    %294 = arith.select %291, %289, %293 : vector<32x256xi1>, vector<32x256xf32>
    %c1792 = arith.constant 1792 : index
    %c0_92 = arith.constant 0 : index
    %295 = vector.load %arg2[%c1792, %c0_92] : memref<2048x128xbf16, #tpu.memory_space<vmem>>, vector<256x128xbf16>
    %296 = arith.truncf %294 : vector<32x256xf32> to vector<32x256xbf16>
    %cst_93 = arith.constant dense<0.000000e+00> : vector<32x128xf32>
    %297 = tpu.matmul %296, %295, %cst_93 {dimension_numbers = #tpu.dot_dimension_numbers<[1], [0], [0], [1], [0, 0, 1, 1], [], []>} : vector<32x256xbf16>, vector<256x128xbf16>, vector<32x128xf32> -> vector<32x128xf32>
    %298 = vector.extract_strided_slice %0 {offsets = [15, 0], sizes = [1, 128], strides = [1, 1]} : vector<32x256xf32> to vector<1x128xf32>
    %299 = vector.broadcast %298 : vector<1x128xf32> to vector<32x128xf32>
    %300 = arith.addf %297, %299 : vector<32x128xf32>
    %301 = math.tanh %300 : vector<32x128xf32>
    %c0_94 = arith.constant 0 : index
    %c0_95 = arith.constant 0 : index
    %302 = vector.load %arg5[%c0_94, %c0_95] : memref<32x128xf32, #tpu.memory_space<vmem>>, vector<32x128xf32>
    tpu.vector_store %arg5[%c0_94, %c0_95], %301 {strides = array<i32>} : memref<32x128xf32, #tpu.memory_space<vmem>>, vector<32x128xf32>,
    return
  }
  func.func @transform_0(%arg0: i32) -> (i32, i32) {
    %c0_i32 = arith.constant 0 : i32
    %c0_i32_0 = arith.constant 0 : i32
    return %arg0, %c0_i32 : i32, i32
  }
  func.func @transform_1(%arg0: i32) -> (i32, i32) {
    %c0_i32 = arith.constant 0 : i32
    %c0_i32_0 = arith.constant 0 : i32
    %c0_i32_1 = arith.constant 0 : i32
    return %c0_i32, %c0_i32_0 : i32, i32
  }
  func.func @transform_2(%arg0: i32) -> (i32, i32) {
    %c0_i32 = arith.constant 0 : i32
    %c0_i32_0 = arith.constant 0 : i32
    %c0_i32_1 = arith.constant 0 : i32
    return %c0_i32, %c0_i32_0 : i32, i32
  }
  func.func @transform_3(%arg0: i32) -> (i32, i32) {
    %c0_i32 = arith.constant 0 : i32
    %c0_i32_0 = arith.constant 0 : i32
    %c0_i32_1 = arith.constant 0 : i32
    return %c0_i32, %c0_i32_0 : i32, i32
  }
  func.func @transform_4(%arg0: i32) -> (i32, i32) {
    %c0_i32 = arith.constant 0 : i32
    %c0_i32_0 = arith.constant 0 : i32
    return %arg0, %c0_i32 : i32, i32
  }
}

</mosaic_0001>

<llo_original>
// kernel: _forward_impl.1
$region0: #{_forward_impl.1}
  #allocation0 [shape = 'u32[]', space=smem, size = 0x4, offset = 0x4, fixed_abs, tag = 'smem constant byte address 0x4 - core index']
  #allocation1 [shape = 'u32[144,128]{1,0:T(1,128)}', space=vmem, size = 0x12000, scoped, tag = 'internal scratch']
  %s0 = inlined_call_operand.vmem [shape: f32[32,128], index: 0, kind: input, shape index: {}]
  %s1 = inlined_call_operand.hbm [shape: bf16[2048,128], index: 1, kind: input, shape index: {}]
  %s2 = inlined_call_operand.hbm [shape: bf16[256,256], index: 2, kind: input, shape index: {}]
  %s3 = inlined_call_operand.vmem [shape: f32[32,256], index: 3, kind: input, shape index: {}]
  %s4 = inlined_call_operand.vmem [shape: f32[32,128], index: 4, kind: output, shape index: {}]
  %s5 = sld [smem:[#allocation0]]
  $region34: #{_forward_impl.1} parent=0
    _
  %s7 = ssub.s32 1, %s5
  %s8 = scalar_select 0, %s7, %s5
  $region1: #{_forward_impl.1} parent=0
    #allocation2 [shape = 'u8[524288]{0}', space=vmem, size = 0x80000, scoped, tag = 'input window, operand 1, single buffered']
    #allocation3 [shape = 's32[1]{0}', space=sflag, size = 0x4, scoped, tag = 'scoped memory for _forward_impl.1']
    #allocation4 [shape = 'u8[131072]{0}', space=vmem, size = 0x20000, scoped, tag = 'input window, operand 2, single buffered']
    #allocation5 [shape = 's32[1]{0}', space=sflag, size = 0x4, scoped, tag = 'scoped memory for _forward_impl.1']
    %9 = vsyncpa [#allocation3], 0
    %10 = vsyncpa [#allocation5], 0
    // Predicated region
    $region2: #{_forward_impl.1} parent=1 // pred_check
      _
    $region3: #{_forward_impl.1} parent=1 // pred_check_branch
      %12 = sbr.rel (0) target = $region5
    $region4: #{_forward_impl.1} parent=1 // pred_region
      _
    $region5: #{_forward_impl.1} parent=1 // pred_fallthru
      _
    // Predicated region
    $region6: #{_forward_impl.1} parent=1 // pred_check
      _
    $region7: #{_forward_impl.1} parent=1 // pred_check_branch
      %14 = sbr.rel (0) target = $region9
    $region8: #{_forward_impl.1} parent=1 // pred_region
      %s16 = ssub.s32 16384, 16384
      %17 = vsyncadd [#allocation3], %s16
      %s18 = sshll.u32 [#allocation2], 4
      %s19 = int_to_ptr.vmem [resolvable:$true] %s18
      %24 = dma.hbm_to_vmem [thread:$0]  %s1, 16384, %s19, [#allocation3], 64, 64, 4
    $region9: #{_forward_impl.1} parent=1 // pred_fallthru
      _
    // Predicated region
    $region10: #{_forward_impl.1} parent=1 // pred_check
      _
    $region11: #{_forward_impl.1} parent=1 // pred_check_branch
      %26 = sbr.rel (0) target = $region13
    $region12: #{_forward_impl.1} parent=1 // pred_region
      %s28 = ssub.s32 4096, 4096
      %29 = vsyncadd [#allocation5], %s28
      %s30 = sshll.u32 [#allocation4], 4
      %s31 = int_to_ptr.vmem [resolvable:$true] %s30
      %36 = dma.hbm_to_vmem [thread:$0]  %s2, 4096, %s31, [#allocation5], 128, 128, 8
    $region13: #{_forward_impl.1} parent=1 // pred_fallthru
      _
    // Predicated region
    $region14: #{_forward_impl.1} parent=1 // pred_check
      _
    $region15: #{_forward_impl.1} parent=1 // pred_check_branch
      %38 = sbr.rel (0) target = $region17
    $region16: #{_forward_impl.1} parent=1 // pred_region
      _
    $region17: #{_forward_impl.1} parent=1 // pred_fallthru
      _
    // Predicated region
    $region18: #{_forward_impl.1} parent=1 // pred_check
      _
    $region19: #{_forward_impl.1} parent=1 // pred_check_branch
      %40 = sbr.rel (0) target = $region21
    $region20: #{_forward_impl.1} parent=1 // pred_region
      %41 = dma.done [#allocation3], 16384
    $region21: #{_forward_impl.1} parent=1 // pred_fallthru
      _
    // Predicated region
    $region22: #{_forward_impl.1} parent=1 // pred_check
      _
    $region23: #{_forward_impl.1} parent=1 // pred_check_branch
      %43 = sbr.rel (0) target = $region25
    $region24: #{_forward_impl.1} parent=1 // pred_region
      %44 = dma.done [#allocation5], 4096
    $region25: #{_forward_impl.1} parent=1 // pred_fallthru
      _
    %v46 = vld [vmem:[%s3] sm:$0xff]
    %v47 = vld [vmem:[%s3 + $0x8] sm:$0xff]
    %v48 = vld [vmem:[%s3 + $0x10] sm:$0xff]
    %v49 = vld [vmem:[%s3 + $0x18] sm:$0xff]
    %v50 = vld [vmem:[%s3 + $0x20] sm:$0xff]
    %v51 = vld [vmem:[%s3 + $0x28] sm:$0xff]
    %v52 = vld [vmem:[%s3 + $0x30] sm:$0xff]
    %v53 = vld [vmem:[%s3 + $0x38] sm:$0xff]
    %v54 = vld [vmem:[%s0] sm:$0xff]
    %v55 = vld [vmem:[%s0 + $0x8] sm:$0xff]
    %v56 = vld [vmem:[%s0 + $0x10] sm:$0xff]
    %v57 = vld [vmem:[%s0 + $0x18] sm:$0xff]
    %v58 = vld [vmem:[#allocation4] sm:$0xff]
    %v59 = vld [vmem:[#allocation4 + $0x8] sm:$0xff]
    %v60 = vld [vmem:[#allocation4 + $0x10] sm:$0xff]
    %v61 = vld [vmem:[#allocation4 + $0x18] sm:$0xff]
    %v62 = vld [vmem:[#allocation4 + $0x20] sm:$0xff]
    %v63 = vld [vmem:[#allocation4 + $0x28] sm:$0xff]
    %v64 = vld [vmem:[#allocation4 + $0x30] sm:$0xff]
    %v65 = vld [vmem:[#allocation4 + $0x38] sm:$0xff]
    %v66 = vld [vmem:[#allocation4 + $0x40] sm:$0xff]
    %v67 = vld [vmem:[#allocation4 + $0x48] sm:$0xff]
    %v68 = vld [vmem:[#allocation4 + $0x50] sm:$0xff]
    %v69 = vld [vmem:[#allocation4 + $0x58] sm:$0xff]
    %v70 = vld [vmem:[#allocation4 + $0x60] sm:$0xff]
    %v71 = vld [vmem:[#allocation4 + $0x68] sm:$0xff]
    %v72 = vld [vmem:[#allocation4 + $0x70] sm:$0xff]
    %v73 = vld [vmem:[#allocation4 + $0x78] sm:$0xff]
    %v74 = vpack.c.bf16 %v55, %v54
    %v75 = vpack.c.bf16 %v57, %v56
    %v76 = vlaneseq
    %v77 = vshrl.u32 %v76, 7
    %v78 = vsub.s32 0, %v77
    %v79 = vrot.slane %v46, %v78
    %v80 = vlaneseq
    %v81 = vshrl.u32 %v80, 7
    %v82 = vsub.s32 0, %v81
    %v83 = vrot.slane %v47, %v82
    %v100 = vunpack.c.l.b16 %v58
    %v101 = vunpack.c.h.b16 %v58
    %v102 = vunpack.c.l.b16 %v59
    %v103 = vunpack.c.h.b16 %v59
    %v104 = vunpack.c.l.b16 %v60
    %v105 = vunpack.c.h.b16 %v60
    %v106 = vunpack.c.l.b16 %v61
    %v107 = vunpack.c.h.b16 %v61
    %v108 = vunpack.c.l.b16 %v62
    %v109 = vunpack.c.h.b16 %v62
    %v110 = vunpack.c.l.b16 %v63
    %v111 = vunpack.c.h.b16 %v63
    %v112 = vunpack.c.l.b16 %v64
    %v113 = vunpack.c.h.b16 %v64
    %v114 = vunpack.c.l.b16 %v65
    %v115 = vunpack.c.h.b16 %v65
    %v116 = vunpack.c.l.b16 %v66
    %v117 = vunpack.c.h.b16 %v66
    %v118 = vunpack.c.l.b16 %v67
    %v119 = vunpack.c.h.b16 %v67
    %v120 = vunpack.c.l.b16 %v68
    %v121 = vunpack.c.h.b16 %v68
    %v122 = vunpack.c.l.b16 %v69
    %v123 = vunpack.c.h.b16 %v69
    %v124 = vunpack.c.l.b16 %v70
    %v125 = vunpack.c.h.b16 %v70
    %v126 = vunpack.c.l.b16 %v71
    %v127 = vunpack.c.h.b16 %v71
    %v128 = vunpack.c.l.b16 %v72
    %v129 = vunpack.c.h.b16 %v72
    %v130 = vunpack.c.l.b16 %v73
    %v131 = vunpack.c.h.b16 %v73
    %v132 = vpack.c.b16 %v102, %v100
    %v133 = vpack.c.b16 %v103, %v101
    %v134 = vpack.c.b16 %v106, %v104
    %v135 = vpack.c.b16 %v107, %v105
    %v136 = vpack.c.b16 %v110, %v108
    %v137 = vpack.c.b16 %v111, %v109
    %v138 = vpack.c.b16 %v114, %v112
    %v139 = vpack.c.b16 %v115, %v113
    %v140 = vpack.c.b16 %v118, %v116
    %v141 = vpack.c.b16 %v119, %v117
    %v142 = vpack.c.b16 %v122, %v120
    %v143 = vpack.c.b16 %v123, %v121
    %v144 = vpack.c.b16 %v126, %v124
    %v145 = vpack.c.b16 %v127, %v125
    %v146 = vpack.c.b16 %v130, %v128
    %v147 = vpack.c.b16 %v131, %v129
    %164 = vmatprep.subr.bf16.mxu0 %v133
    %165 = vmatpush1.bf16.msra.mxu0 %v132
    %166 = vmatprep.subr.bf16.mxu0 %v135
    %167 = vmatpush1.bf16.msra.mxu0 %v134
    %168 = vmatprep.subr.bf16.mxu0 %v137
    %169 = vmatpush1.bf16.msra.mxu0 %v136
    %170 = vmatprep.subr.bf16.mxu0 %v139
    %171 = vmatpush1.bf16.msra.mxu0 %v138
    %172 = vmatprep.subr.bf16.mxu0 %v141
    %173 = vmatpush1.bf16.msra.mxu0 %v140
    %174 = vmatprep.subr.bf16.mxu0 %v143
    %175 = vmatpush1.bf16.msra.mxu0 %v142
    %176 = vmatprep.subr.bf16.mxu0 %v145
    %177 = vmatpush1.bf16.msra.mxu0 %v144
    %178 = vmatprep.subr.bf16.mxu0 %v147
    %179 = vmatpush1.bf16.msra.mxu0 %v146
    %180 = vmatprep.subr.bf16.mxu0 0
    %181 = vmatpush1.bf16.msra.mxu0 0
    %182 = vmatprep.subr.bf16.mxu0 0
    %183 = vmatpush1.bf16.msra.mxu0 0
    %184 = vmatprep.subr.bf16.mxu0 0
    %185 = vmatpush1.bf16.msra.mxu0 0
    %186 = vmatprep.subr.bf16.mxu0 0
    %187 = vmatpush1.bf16.msra.mxu0 0
    %188 = vmatprep.subr.bf16.mxu0 0
    %189 = vmatpush1.bf16.msra.mxu0 0
    %190 = vmatprep.subr.bf16.mxu0 0
    %191 = vmatpush1.bf16.msra.mxu0 0
    %192 = vmatprep.subr.bf16.mxu0 0
    %193 = vmatpush1.bf16.msra.mxu0 0
    %194 = vmatprep.subr.bf16.mxu0 0
    %195 = vmatpush1.bf16.msra.mxu0 0
    %196 = vmatprep.mubr.bf16.mxu0 0
    %197 = vmatmul.mubr.bf16.gmra.mrb[0].mxu0 %v74
    %v198 = vpop.f32.mrb[0].mxu0
    %v199 = vadd.f32 %v79, %v198
    %v200 = vpop.f32.mrb[0].mxu0
    %v201 = vadd.f32 %v83, %v200
    %v202 = vpop.f32.mrb[0].mxu0
    %v203 = vadd.f32 %v79, %v202
    %v204 = vpop.f32.mrb[0].mxu0
    %v205 = vadd.f32 %v83, %v204
    %206 = vmatprep.mubr.bf16.mxu0 0
    %207 = vmatmul.mubr.bf16.gmra.mrb[0].mxu0 %v75
    %v208 = vpop.f32.mrb[0].mxu0
    %v209 = vadd.f32 %v79, %v208
    %v210 = vpop.f32.mrb[0].mxu0
    %v211 = vadd.f32 %v83, %v210
    %v212 = vpop.f32.mrb[0].mxu0
    %v213 = vadd.f32 %v79, %v212
    %v214 = vpop.f32.mrb[0].mxu0
    %v215 = vadd.f32 %v83, %v214
    %216 = vdwg.mxu0
    %vm217 = vcmp.gt.f32.partialorder %v199, 0.0
    %vm218 = vcmp.gt.f32.partialorder %v201, 0.0
    %vm219 = vcmp.gt.f32.partialorder %v203, 0.0
    %vm220 = vcmp.gt.f32.partialorder %v205, 0.0
    %vm221 = vcmp.gt.f32.partialorder %v209, 0.0
    %vm222 = vcmp.gt.f32.partialorder %v211, 0.0
    %vm223 = vcmp.gt.f32.partialorder %v213, 0.0
    %vm224 = vcmp.gt.f32.partialorder %v215, 0.0
    %v225 = vmul.f32 %v199, 0.2
    %v226 = vmul.f32 %v201, 0.2
    %v227 = vmul.f32 %v203, 0.2
    %v228 = vmul.f32 %v205, 0.2
    %v229 = vmul.f32 %v209, 0.2
    %v230 = vmul.f32 %v211, 0.2
    %v231 = vmul.f32 %v213, 0.2
    %v232 = vmul.f32 %v215, 0.2
    %v233 = vsel %vm217, %v199, %v225
    %v234 = vsel %vm218, %v201, %v226
    %v235 = vsel %vm219, %v203, %v227
    %v236 = vsel %vm220, %v205, %v228
    %v237 = vsel %vm221, %v209, %v229
    %v238 = vsel %vm222, %v211, %v230
    %v239 = vsel %vm223, %v213, %v231
    %v240 = vsel %vm224, %v215, %v232
    %v241 = vld [vmem:[#allocation2] sm:$0xf]
    %v242 = vld [vmem:[#allocation2 + $0x4] sm:$0xf]
    %v243 = vld [vmem:[#allocation2 + $0x8] sm:$0xf]
    %v244 = vld [vmem:[#allocation2 + $0xc] sm:$0xf]
    %v245 = vld [vmem:[#allocation2 + $0x10] sm:$0xf]
    %v246 = vld [vmem:[#allocation2 + $0x14] sm:$0xf]
    %v247 = vld [vmem:[#allocation2 + $0x18] sm:$0xf]
    %v248 = vld [vmem:[#allocation2 + $0x1c] sm:$0xf]
    %v249 = vld [vmem:[#allocation2 + $0x20] sm:$0xf]
    %v250 = vld [vmem:[#allocation2 + $0x24] sm:$0xf]
    %v251 = vld [vmem:[#allocation2 + $0x28] sm:$0xf]
    %v252 = vld [vmem:[#allocation2 + $0x2c] sm:$0xf]
    %v253 = vld [vmem:[#allocation2 + $0x30] sm:$0xf]
    %v254 = vld [vmem:[#allocation2 + $0x34] sm:$0xf]
    %v255 = vld [vmem:[#allocation2 + $0x38] sm:$0xf]
    %v256 = vld [vmem:[#allocation2 + $0x3c] sm:$0xf]
    %v257 = vld [vmem:[#allocation2 + $0x40] sm:$0xf]
    %v258 = vld [vmem:[#allocation2 + $0x44] sm:$0xf]
    %v259 = vld [vmem:[#allocation2 + $0x48] sm:$0xf]
    %v260 = vld [vmem:[#allocation2 + $0x4c] sm:$0xf]
    %v261 = vld [vmem:[#allocation2 + $0x50] sm:$0xf]
    %v262 = vld [vmem:[#allocation2 + $0x54] sm:$0xf]
    %v263 = vld [vmem:[#allocation2 + $0x58] sm:$0xf]
    %v264 = vld [vmem:[#allocation2 + $0x5c] sm:$0xf]
    %v265 = vld [vmem:[#allocation2 + $0x60] sm:$0xf]
    %v266 = vld [vmem:[#allocation2 + $0x64] sm:$0xf]
    %v267 = vld [vmem:[#allocation2 + $0x68] sm:$0xf]
    %v268 = vld [vmem:[#allocation2 + $0x6c] sm:$0xf]
    %v269 = vld [vmem:[#allocation2 + $0x70] sm:$0xf]
    %v270 = vld [vmem:[#allocation2 + $0x74] sm:$0xf]
    %v271 = vld [vmem:[#allocation2 + $0x78] sm:$0xf]
    %v272 = vld [vmem:[#allocation2 + $0x7c] sm:$0xf]
    %v273 = vpack.c.bf16 %v235, %v233
    %v274 = vpack.c.bf16 %v236, %v234
    %v275 = vpack.c.bf16 %v239, %v237
    %v276 = vpack.c.bf16 %v240, %v238
    %v277 = vlaneseq
    %v278 = vshrl.u32 %v277, 7
    %v279 = vsub.s32 1, %v278
    %v280 = vrot.slane %v46, %v279
    %v313 = vunpack.c.l.b16 %v241
    %v314 = vunpack.c.l.b16 %v242
    %v315 = vunpack.c.l.b16 %v243
    %v316 = vunpack.c.l.b16 %v244
    %v317 = vunpack.c.l.b16 %v245
    %v318 = vunpack.c.l.b16 %v246
    %v319 = vunpack.c.l.b16 %v247
    %v320 = vunpack.c.l.b16 %v248
    %v321 = vunpack.c.l.b16 %v249
    %v322 = vunpack.c.l.b16 %v250
    %v323 = vunpack.c.l.b16 %v251
    %v324 = vunpack.c.l.b16 %v252
    %v325 = vunpack.c.l.b16 %v253
    %v326 = vunpack.c.l.b16 %v254
    %v327 = vunpack.c.l.b16 %v255
    %v328 = vunpack.c.l.b16 %v256
    %v329 = vunpack.c.l.b16 %v257
    %v330 = vunpack.c.l.b16 %v258
    %v331 = vunpack.c.l.b16 %v259
    %v332 = vunpack.c.l.b16 %v260
    %v333 = vunpack.c.l.b16 %v261
    %v334 = vunpack.c.l.b16 %v262
    %v335 = vunpack.c.l.b16 %v263
    %v336 = vunpack.c.l.b16 %v264
    %v337 = vunpack.c.l.b16 %v265
    %v338 = vunpack.c.l.b16 %v266
    %v339 = vunpack.c.l.b16 %v267
    %v340 = vunpack.c.l.b16 %v268
    %v341 = vunpack.c.l.b16 %v269
    %v342 = vunpack.c.l.b16 %v270
    %v343 = vunpack.c.l.b16 %v271
    %v344 = vunpack.c.l.b16 %v272
    %v345 = vpack.c.b16 %v314, %v313
    %v346 = vpack.c.b16 %v316, %v315
    %v347 = vpack.c.b16 %v318, %v317
    %v348 = vpack.c.b16 %v320, %v319
    %v349 = vpack.c.b16 %v322, %v321
    %v350 = vpack.c.b16 %v324, %v323
    %v351 = vpack.c.b16 %v326, %v325
    %v352 = vpack.c.b16 %v328, %v327
    %v353 = vpack.c.b16 %v330, %v329
    %v354 = vpack.c.b16 %v332, %v331
    %v355 = vpack.c.b16 %v334, %v333
    %v356 = vpack.c.b16 %v336, %v335
    %v357 = vpack.c.b16 %v338, %v337
    %v358 = vpack.c.b16 %v340, %v339
    %v359 = vpack.c.b16 %v342, %v341
    %v360 = vpack.c.b16 %v344, %v343
    %377 = vmatprep.subr.bf16.mxu0 0
    %378 = vmatpush1.bf16.msra.mxu0 %v345
    %379 = vmatprep.subr.bf16.mxu0 0
    %380 = vmatpush1.bf16.msra.mxu0 %v346
    %381 = vmatprep.subr.bf16.mxu0 0
    %382 = vmatpush1.bf16.msra.mxu0 %v347
    %383 = vmatprep.subr.bf16.mxu0 0
    %384 = vmatpush1.bf16.msra.mxu0 %v348
    %385 = vmatprep.subr.bf16.mxu0 0
    %386 = vmatpush1.bf16.msra.mxu0 %v349
    %387 = vmatprep.subr.bf16.mxu0 0
    %388 = vmatpush1.bf16.msra.mxu0 %v350
    %389 = vmatprep.subr.bf16.mxu0 0
    %390 = vmatpush1.bf16.msra.mxu0 %v351
    %391 = vmatprep.subr.bf16.mxu0 0
    %392 = vmatpush1.bf16.msra.mxu0 %v352
    %393 = vmatprep.subr.bf16.mxu0 0
    %394 = vmatpush1.bf16.msra.mxu0 %v353
    %395 = vmatprep.subr.bf16.mxu0 0
    %396 = vmatpush1.bf16.msra.mxu0 %v354
    %397 = vmatprep.subr.bf16.mxu0 0
    %398 = vmatpush1.bf16.msra.mxu0 %v355
    %399 = vmatprep.subr.bf16.mxu0 0
    %400 = vmatpush1.bf16.msra.mxu0 %v356
    %401 = vmatprep.subr.bf16.mxu0 0
    %402 = vmatpush1.bf16.msra.mxu0 %v357
    %403 = vmatprep.subr.bf16.mxu0 0
    %404 = vmatpush1.bf16.msra.mxu0 %v358
    %405 = vmatprep.subr.bf16.mxu0 0
    %406 = vmatpush1.bf16.msra.mxu0 %v359
    %407 = vmatprep.subr.bf16.mxu0 0
    %408 = vmatpush1.bf16.msra.mxu0 %v360
    %409 = vmatprep.mubr.bf16.mxu0 %v274
    %410 = vmatmul.mubr.bf16.gmra.mrb[0].mxu0 %v273
    %v411 = vpop.f32.mrb[0].mxu0
    %v412 = vadd.f32 %v280, %v411
    %v413 = vpop.f32.mrb[0].mxu0
    %v414 = vpop.f32.mrb[0].mxu0
    %v415 = vadd.f32 %v280, %v414
    %v416 = vpop.f32.mrb[0].mxu0
    %417 = vmatprep.mubr.bf16.mxu0 %v276
    %418 = vmatmul.mubr.bf16.gmra.mrb[0].mxu0 %v275
    %v419 = vpop.f32.mrb[0].mxu0
    %v420 = vadd.f32 %v280, %v419
    %v421 = vpop.f32.mrb[0].mxu0
    %v422 = vpop.f32.mrb[0].mxu0
    %v423 = vadd.f32 %v280, %v422
    %v424 = vpop.f32.mrb[0].mxu0
    %425 = vdwg.mxu0
    %vm426 = vcmp.gt.f32.partialorder %v412, 0.0
    %vm427 = vcmp.gt.f32.partialorder %v415, 0.0
    %vm428 = vcmp.gt.f32.partialorder %v420, 0.0
    %vm429 = vcmp.gt.f32.partialorder %v423, 0.0
    %v430 = vmul.f32 %v412, 0.2
    %v431 = vmul.f32 %v415, 0.2
    %v432 = vmul.f32 %v420, 0.2
    %v433 = vmul.f32 %v423, 0.2
    %v434 = vsel %vm426, %v412, %v430
    %v435 = vsel %vm427, %v415, %v431
    %v436 = vsel %vm428, %v420, %v432
    %v437 = vsel %vm429, %v423, %v433
    %v438 = vld [vmem:[#allocation2 + $0x80] sm:$0xf]
    %v439 = vld [vmem:[#allocation2 + $0x84] sm:$0xf]
    %v440 = vld [vmem:[#allocation2 + $0x88] sm:$0xf]
    %v441 = vld [vmem:[#allocation2 + $0x8c] sm:$0xf]
    %v442 = vld [vmem:[#allocation2 + $0x90] sm:$0xf]
    %v443 = vld [vmem:[#allocation2 + $0x94] sm:$0xf]
    %v444 = vld [vmem:[#allocation2 + $0x98] sm:$0xf]
    %v445 = vld [vmem:[#allocation2 + $0x9c] sm:$0xf]
    %v446 = vld [vmem:[#allocation2 + $0xa0] sm:$0xf]
    %v447 = vld [vmem:[#allocation2 + $0xa4] sm:$0xf]
    %v448 = vld [vmem:[#allocation2 + $0xa8] sm:$0xf]
    %v449 = vld [vmem:[#allocation2 + $0xac] sm:$0xf]
    %v450 = vld [vmem:[#allocation2 + $0xb0] sm:$0xf]
    %v451 = vld [vmem:[#allocation2 + $0xb4] sm:$0xf]
    %v452 = vld [vmem:[#allocation2 + $0xb8] sm:$0xf]
    %v453 = vld [vmem:[#allocation2 + $0xbc] sm:$0xf]
    %v454 = vpack.c.bf16 %v435, %v434
    %v455 = vpack.c.bf16 %v437, %v436
    %v456 = vlaneseq
    %v457 = vshrl.u32 %v456, 7
    %v458 = vsub.s32 2, %v457
    %v459 = vrot.slane %v46, %v458
    %v476 = vunpack.c.l.b16 %v438
    %v477 = vunpack.c.l.b16 %v439
    %v478 = vunpack.c.l.b16 %v440
    %v479 = vunpack.c.l.b16 %v441
    %v480 = vunpack.c.l.b16 %v442
    %v481 = vunpack.c.l.b16 %v443
    %v482 = vunpack.c.l.b16 %v444
    %v483 = vunpack.c.l.b16 %v445
    %v484 = vunpack.c.l.b16 %v446
    %v485 = vunpack.c.l.b16 %v447
    %v486 = vunpack.c.l.b16 %v448
    %v487 = vunpack.c.l.b16 %v449
    %v488 = vunpack.c.l.b16 %v450
    %v489 = vunpack.c.l.b16 %v451
    %v490 = vunpack.c.l.b16 %v452
    %v491 = vunpack.c.l.b16 %v453
    %v492 = vpack.c.b16 %v477, %v476
    %v493 = vpack.c.b16 %v479, %v478
    %v494 = vpack.c.b16 %v481, %v480
    %v495 = vpack.c.b16 %v483, %v482
    %v496 = vpack.c.b16 %v485, %v484
    %v497 = vpack.c.b16 %v487, %v486
    %v498 = vpack.c.b16 %v489, %v488
    %v499 = vpack.c.b16 %v491, %v490
    %508 = vmatprep.subr.bf16.mxu0 0
    %509 = vmatpush1.bf16.msra.mxu0 %v492
    %510 = vmatprep.subr.bf16.mxu0 0
    %511 = vmatpush1.bf16.msra.mxu0 %v493
    %512 = vmatprep.subr.bf16.mxu0 0
    %513 = vmatpush1.bf16.msra.mxu0 %v494
    %514 = vmatprep.subr.bf16.mxu0 0
    %515 = vmatpush1.bf16.msra.mxu0 %v495
    %516 = vmatprep.subr.bf16.mxu0 0
    %517 = vmatpush1.bf16.msra.mxu0 %v496
    %518 = vmatprep.subr.bf16.mxu0 0
    %519 = vmatpush1.bf16.msra.mxu0 %v497
    %520 = vmatprep.subr.bf16.mxu0 0
    %521 = vmatpush1.bf16.msra.mxu0 %v498
    %522 = vmatprep.subr.bf16.mxu0 0
    %523 = vmatpush1.bf16.msra.mxu0 %v499
    %524 = vmatprep.subr.bf16.mxu0 0
    %525 = vmatpush1.bf16.msra.mxu0 0
    %526 = vmatprep.subr.bf16.mxu0 0
    %527 = vmatpush1.bf16.msra.mxu0 0
    %528 = vmatprep.subr.bf16.mxu0 0
    %529 = vmatpush1.bf16.msra.mxu0 0
    %530 = vmatprep.subr.bf16.mxu0 0
    %531 = vmatpush1.bf16.msra.mxu0 0
    %532 = vmatprep.subr.bf16.mxu0 0
    %533 = vmatpush1.bf16.msra.mxu0 0
    %534 = vmatprep.subr.bf16.mxu0 0
    %535 = vmatpush1.bf16.msra.mxu0 0
    %536 = vmatprep.subr.bf16.mxu0 0
    %537 = vmatpush1.bf16.msra.mxu0 0
    %538 = vmatprep.subr.bf16.mxu0 0
    %539 = vmatpush1.bf16.msra.mxu0 0
    %540 = vmatprep.mubr.bf16.mxu0 0
    %541 = vmatmul.mubr.bf16.gmra.mrb[0].mxu0 %v454
    %v542 = vpop.f32.mrb[0].mxu0
    %v543 = vadd.f32 %v459, %v542
    %v544 = vpop.f32.mrb[0].mxu0
    %v545 = vpop.f32.mrb[0].mxu0
    %v546 = vadd.f32 %v459, %v545
    %v547 = vpop.f32.mrb[0].mxu0
    %548 = vmatprep.mubr.bf16.mxu0 0
    %549 = vmatmul.mubr.bf16.gmra.mrb[0].mxu0 %v455
    %v550 = vpop.f32.mrb[0].mxu0
    %v551 = vadd.f32 %v459, %v550
    %v552 = vpop.f32.mrb[0].mxu0
    %v553 = vpop.f32.mrb[0].mxu0
    %v554 = vadd.f32 %v459, %v553
    %v555 = vpop.f32.mrb[0].mxu0
    %556 = vdwg.mxu0
    %vm557 = vcmp.gt.f32.partialorder %v543, 0.0
    %vm558 = vcmp.gt.f32.partialorder %v546, 0.0
    %vm559 = vcmp.gt.f32.partialorder %v551, 0.0
    %vm560 = vcmp.gt.f32.partialorder %v554, 0.0
    %v561 = vmul.f32 %v543, 0.2
    %v562 = vmul.f32 %v546, 0.2
    %v563 = vmul.f32 %v551, 0.2
    %v564 = vmul.f32 %v554, 0.2
    %v565 = vsel %vm557, %v543, %v561
    %v566 = vsel %vm558, %v546, %v562
    %v567 = vsel %vm559, %v551, %v563
    %v568 = vsel %vm560, %v554, %v564
    %v569 = vld [vmem:[#allocation2 + $0xc0] sm:$0xf]
    %v570 = vld [vmem:[#allocation2 + $0xc4] sm:$0xf]
    %v571 = vld [vmem:[#allocation2 + $0xc8] sm:$0xf]
    %v572 = vld [vmem:[#allocation2 + $0xcc] sm:$0xf]
    %v573 = vld [vmem:[#allocation2 + $0xd0] sm:$0xf]
    %v574 = vld [vmem:[#allocation2 + $0xd4] sm:$0xf]
    %v575 = vld [vmem:[#allocation2 + $0xd8] sm:$0xf]
    %v576 = vld [vmem:[#allocation2 + $0xdc] sm:$0xf]
    %v577 = vld [vmem:[#allocation2 + $0xe0] sm:$0xf]
    %v578 = vld [vmem:[#allocation2 + $0xe4] sm:$0xf]
    %v579 = vld [vmem:[#allocation2 + $0xe8] sm:$0xf]
    %v580 = vld [vmem:[#allocation2 + $0xec] sm:$0xf]
    %v581 = vld [vmem:[#allocation2 + $0xf0] sm:$0xf]
    %v582 = vld [vmem:[#allocation2 + $0xf4] sm:$0xf]
    %v583 = vld [vmem:[#allocation2 + $0xf8] sm:$0xf]
    %v584 = vld [vmem:[#allocation2 + $0xfc] sm:$0xf]
    %v585 = vpack.c.bf16 %v566, %v565
    %v586 = vpack.c.bf16 %v568, %v567
    %v587 = vlaneseq
    %v588 = vshrl.u32 %v587, 7
    %v589 = vsub.s32 3, %v588
    %v590 = vrot.slane %v46, %v589
    %v607 = vunpack.c.l.b16 %v569
    %v608 = vunpack.c.l.b16 %v570
    %v609 = vunpack.c.l.b16 %v571
    %v610 = vunpack.c.l.b16 %v572
    %v611 = vunpack.c.l.b16 %v573
    %v612 = vunpack.c.l.b16 %v574
    %v613 = vunpack.c.l.b16 %v575
    %v614 = vunpack.c.l.b16 %v576
    %v615 = vunpack.c.l.b16 %v577
    %v616 = vunpack.c.l.b16 %v578
    %v617 = vunpack.c.l.b16 %v579
    %v618 = vunpack.c.l.b16 %v580
    %v619 = vunpack.c.l.b16 %v581
    %v620 = vunpack.c.l.b16 %v582
    %v621 = vunpack.c.l.b16 %v583
    %v622 = vunpack.c.l.b16 %v584
    %v623 = vpack.c.b16 %v608, %v607
    %v624 = vpack.c.b16 %v610, %v609
    %v625 = vpack.c.b16 %v612, %v611
    %v626 = vpack.c.b16 %v614, %v613
    %v627 = vpack.c.b16 %v616, %v615
    %v628 = vpack.c.b16 %v618, %v617
    %v629 = vpack.c.b16 %v620, %v619
    %v630 = vpack.c.b16 %v622, %v621
    %639 = vmatprep.subr.bf16.mxu0 0
    %640 = vmatpush1.bf16.msra.mxu0 %v623
    %641 = vmatprep.subr.bf16.mxu0 0
    %642 = vmatpush1.bf16.msra.mxu0 %v624
    %643 = vmatprep.subr.bf16.mxu0 0
    %644 = vmatpush1.bf16.msra.mxu0 %v625
    %645 = vmatprep.subr.bf16.mxu0 0
    %646 = vmatpush1.bf16.msra.mxu0 %v626
    %647 = vmatprep.subr.bf16.mxu0 0
    %648 = vmatpush1.bf16.msra.mxu0 %v627
    %649 = vmatprep.subr.bf16.mxu0 0
    %650 = vmatpush1.bf16.msra.mxu0 %v628
    %651 = vmatprep.subr.bf16.mxu0 0
    %652 = vmatpush1.bf16.msra.mxu0 %v629
    %653 = vmatprep.subr.bf16.mxu0 0
    %654 = vmatpush1.bf16.msra.mxu0 %v630
    %655 = vmatprep.subr.bf16.mxu0 0
    %656 = vmatpush1.bf16.msra.mxu0 0
    %657 = vmatprep.subr.bf16.mxu0 0
    %658 = vmatpush1.bf16.msra.mxu0 0
    %659 = vmatprep.subr.bf16.mxu0 0
    %660 = vmatpush1.bf16.msra.mxu0 0
    %661 = vmatprep.subr.bf16.mxu0 0
    %662 = vmatpush1.bf16.msra.mxu0 0
    %663 = vmatprep.subr.bf16.mxu0 0
    %664 = vmatpush1.bf16.msra.mxu0 0
    %665 = vmatprep.subr.bf16.mxu0 0
    %666 = vmatpush1.bf16.msra.mxu0 0
    %667 = vmatprep.subr.bf16.mxu0 0
    %668 = vmatpush1.bf16.msra.mxu0 0
    %669 = vmatprep.subr.bf16.mxu0 0
    %670 = vmatpush1.bf16.msra.mxu0 0
    %671 = vmatprep.mubr.bf16.mxu0 0
    %672 = vmatmul.mubr.bf16.gmra.mrb[0].mxu0 %v585
    %v673 = vpop.f32.mrb[0].mxu0
    %v674 = vadd.f32 %v590, %v673
    %v675 = vpop.f32.mrb[0].mxu0
    %v676 = vpop.f32.mrb[0].mxu0
    %v677 = vadd.f32 %v590, %v676
    %v678 = vpop.f32.mrb[0].mxu0
    %679 = vmatprep.mubr.bf16.mxu0 0
    %680 = vmatmul.mubr.bf16.gmra.mrb[0].mxu0 %v586
    %v681 = vpop.f32.mrb[0].mxu0
    %v682 = vadd.f32 %v590, %v681
    %v683 = vpop.f32.mrb[0].mxu0
    %v684 = vpop.f32.mrb[0].mxu0
    %v685 = vadd.f32 %v590, %v684
    %v686 = vpop.f32.mrb[0].mxu0
    %687 = vdwg.mxu0
    %vm688 = vcmp.gt.f32.partialorder %v674, 0.0
    %vm689 = vcmp.gt.f32.partialorder %v677, 0.0
    %vm690 = vcmp.gt.f32.partialorder %v682, 0.0
    %vm691 = vcmp.gt.f32.partialorder %v685, 0.0
    %v692 = vmul.f32 %v674, 0.2
    %v693 = vmul.f32 %v677, 0.2
    %v694 = vmul.f32 %v682, 0.2
    %v695 = vmul.f32 %v685, 0.2
    %v696 = vsel %vm688, %v674, %v692
    %v697 = vsel %vm689, %v677, %v693
    %v698 = vsel %vm690, %v682, %v694
    %v699 = vsel %vm691, %v685, %v695
    %v700 = vld [vmem:[#allocation2 + $0x100] sm:$0xf]
    %v701 = vld [vmem:[#allocation2 + $0x104] sm:$0xf]
    %v702 = vld [vmem:[#allocation2 + $0x108] sm:$0xf]
    %v703 = vld [vmem:[#allocation2 + $0x10c] sm:$0xf]
    %v704 = vld [vmem:[#allocation2 + $0x110] sm:$0xf]
    %v705 = vld [vmem:[#allocation2 + $0x114] sm:$0xf]
    %v706 = vld [vmem:[#allocation2 + $0x118] sm:$0xf]
    %v707 = vld [vmem:[#allocation2 + $0x11c] sm:$0xf]
    %v708 = vld [vmem:[#allocation2 + $0x120] sm:$0xf]
    %v709 = vld [vmem:[#allocation2 + $0x124] sm:$0xf]
    %v710 = vld [vmem:[#allocation2 + $0x128] sm:$0xf]
    %v711 = vld [vmem:[#allocation2 + $0x12c] sm:$0xf]
    %v712 = vld [vmem:[#allocation2 + $0x130] sm:$0xf]
    %v713 = vld [vmem:[#allocation2 + $0x134] sm:$0xf]
    %v714 = vld [vmem:[#allocation2 + $0x138] sm:$0xf]
    %v715 = vld [vmem:[#allocation2 + $0x13c] sm:$0xf]
    %v716 = vpack.c.bf16 %v697, %v696
    %v717 = vpack.c.bf16 %v699, %v698
    %v718 = vlaneseq
    %v719 = vshrl.u32 %v718, 7
    %v720 = vsub.s32 4, %v719
    %v721 = vrot.slane %v46, %v720
    %v738 = vunpack.c.l.b16 %v700
    %v739 = vunpack.c.l.b16 %v701
    %v740 = vunpack.c.l.b16 %v702
    %v741 = vunpack.c.l.b16 %v703
    %v742 = vunpack.c.l.b16 %v704
    %v743 = vunpack.c.l.b16 %v705
    %v744 = vunpack.c.l.b16 %v706
    %v745 = vunpack.c.l.b16 %v707
    %v746 = vunpack.c.l.b16 %v708
    %v747 = vunpack.c.l.b16 %v709
    %v748 = vunpack.c.l.b16 %v710
    %v749 = vunpack.c.l.b16 %v711
    %v750 = vunpack.c.l.b16 %v712
    %v751 = vunpack.c.l.b16 %v713
    %v752 = vunpack.c.l.b16 %v714
    %v753 = vunpack.c.l.b16 %v715
    %v754 = vpack.c.b16 %v739, %v738
    %v755 = vpack.c.b16 %v741, %v740
    %v756 = vpack.c.b16 %v743, %v742
    %v757 = vpack.c.b16 %v745, %v744
    %v758 = vpack.c.b16 %v747, %v746
    %v759 = vpack.c.b16 %v749, %v748
    %v760 = vpack.c.b16 %v751, %v750
    %v761 = vpack.c.b16 %v753, %v752
    %770 = vmatprep.subr.bf16.mxu0 0
    %771 = vmatpush1.bf16.msra.mxu0 %v754
    %772 = vmatprep.subr.bf16.mxu0 0
    %773 = vmatpush1.bf16.msra.mxu0 %v755
    %774 = vmatprep.subr.bf16.mxu0 0
    %775 = vmatpush1.bf16.msra.mxu0 %v756
    %776 = vmatprep.subr.bf16.mxu0 0
    %777 = vmatpush1.bf16.msra.mxu0 %v757
    %778 = vmatprep.subr.bf16.mxu0 0
    %779 = vmatpush1.bf16.msra.mxu0 %v758
    %780 = vmatprep.subr.bf16.mxu0 0
    %781 = vmatpush1.bf16.msra.mxu0 %v759
    %782 = vmatprep.subr.bf16.mxu0 0
    %783 = vmatpush1.bf16.msra.mxu0 %v760
    %784 = vmatprep.subr.bf16.mxu0 0
    %785 = vmatpush1.bf16.msra.mxu0 %v761
    %786 = vmatprep.subr.bf16.mxu0 0
    %787 = vmatpush1.bf16.msra.mxu0 0
    %788 = vmatprep.subr.bf16.mxu0 0
    %789 = vmatpush1.bf16.msra.mxu0 0
    %790 = vmatprep.subr.bf16.mxu0 0
    %791 = vmatpush1.bf16.msra.mxu0 0
    %792 = vmatprep.subr.bf16.mxu0 0
    %793 = vmatpush1.bf16.msra.mxu0 0
    %794 = vmatprep.subr.bf16.mxu0 0
    %795 = vmatpush1.bf16.msra.mxu0 0
    %796 = vmatprep.subr.bf16.mxu0 0
    %797 = vmatpush1.bf16.msra.mxu0 0
    %798 = vmatprep.subr.bf16.mxu0 0
    %799 = vmatpush1.bf16.msra.mxu0 0
    %800 = vmatprep.subr.bf16.mxu0 0
    %801 = vmatpush1.bf16.msra.mxu0 0
    %802 = vmatprep.mubr.bf16.mxu0 0
    %803 = vmatmul.mubr.bf16.gmra.mrb[0].mxu0 %v716
    %v804 = vpop.f32.mrb[0].mxu0
    %v805 = vadd.f32 %v721, %v804
    %v806 = vpop.f32.mrb[0].mxu0
    %v807 = vpop.f32.mrb[0].mxu0
    %v808 = vadd.f32 %v721, %v807
    %v809 = vpop.f32.mrb[0].mxu0
    %810 = vmatprep.mubr.bf16.mxu0 0
    %811 = vmatmul.mubr.bf16.gmra.mrb[0].mxu0 %v717
    %v812 = vpop.f32.mrb[0].mxu0
    %v813 = vadd.f32 %v721, %v812
    %v814 = vpop.f32.mrb[0].mxu0
    %v815 = vpop.f32.mrb[0].mxu0
    %v816 = vadd.f32 %v721, %v815
    %v817 = vpop.f32.mrb[0].mxu0
    %818 = vdwg.mxu0
    %vm819 = vcmp.gt.f32.partialorder %v805, 0.0
    %vm820 = vcmp.gt.f32.partialorder %v808, 0.0
    %vm821 = vcmp.gt.f32.partialorder %v813, 0.0
    %vm822 = vcmp.gt.f32.partialorder %v816, 0.0
    %v823 = vmul.f32 %v805, 0.2
    %v824 = vmul.f32 %v808, 0.2
    %v825 = vmul.f32 %v813, 0.2
    %v826 = vmul.f32 %v816, 0.2
    %v827 = vsel %vm819, %v805, %v823
    %v828 = vsel %vm820, %v808, %v824
    %v829 = vsel %vm821, %v813, %v825
    %v830 = vsel %vm822, %v816, %v826
    %v831 = vld [vmem:[#allocation2 + $0x140] sm:$0xf]
    %v832 = vld [vmem:[#allocation2 + $0x144] sm:$0xf]
    %v833 = vld [vmem:[#allocation2 + $0x148] sm:$0xf]
    %v834 = vld [vmem:[#allocation2 + $0x14c] sm:$0xf]
    %v835 = vld [vmem:[#allocation2 + $0x150] sm:$0xf]
    %v836 = vld [vmem:[#allocation2 + $0x154] sm:$0xf]
    %v837 = vld [vmem:[#allocation2 + $0x158] sm:$0xf]
    %v838 = vld [vmem:[#allocation2 + $0x15c] sm:$0xf]
    %v839 = vld [vmem:[#allocation2 + $0x160] sm:$0xf]
    %v840 = vld [vmem:[#allocation2 + $0x164] sm:$0xf]
    %v841 = vld [vmem:[#allocation2 + $0x168] sm:$0xf]
    %v842 = vld [vmem:[#allocation2 + $0x16c] sm:$0xf]
    %v843 = vld [vmem:[#allocation2 + $0x170] sm:$0xf]
    %v844 = vld [vmem:[#allocation2 + $0x174] sm:$0xf]
    %v845 = vld [vmem:[#allocation2 + $0x178] sm:$0xf]
    %v846 = vld [vmem:[#allocation2 + $0x17c] sm:$0xf]
    %v847 = vpack.c.bf16 %v828, %v827
    %v848 = vpack.c.bf16 %v830, %v829
    %v849 = vlaneseq
    %v850 = vshrl.u32 %v849, 7
    %v851 = vsub.s32 5, %v850
    %v852 = vrot.slane %v46, %v851
    %v869 = vunpack.c.l.b16 %v831
    %v870 = vunpack.c.l.b16 %v832
    %v871 = vunpack.c.l.b16 %v833
    %v872 = vunpack.c.l.b16 %v834
    %v873 = vunpack.c.l.b16 %v835
    %v874 = vunpack.c.l.b16 %v836
    %v875 = vunpack.c.l.b16 %v837
    %v876 = vunpack.c.l.b16 %v838
    %v877 = vunpack.c.l.b16 %v839
    %v878 = vunpack.c.l.b16 %v840
    %v879 = vunpack.c.l.b16 %v841
    %v880 = vunpack.c.l.b16 %v842
    %v881 = vunpack.c.l.b16 %v843
    %v882 = vunpack.c.l.b16 %v844
    %v883 = vunpack.c.l.b16 %v845
    %v884 = vunpack.c.l.b16 %v846
    %v885 = vpack.c.b16 %v870, %v869
    %v886 = vpack.c.b16 %v872, %v871
    %v887 = vpack.c.b16 %v874, %v873
    %v888 = vpack.c.b16 %v876, %v875
    %v889 = vpack.c.b16 %v878, %v877
    %v890 = vpack.c.b16 %v880, %v879
    %v891 = vpack.c.b16 %v882, %v881
    %v892 = vpack.c.b16 %v884, %v883
    %901 = vmatprep.subr.bf16.mxu0 0
    %902 = vmatpush1.bf16.msra.mxu0 %v885
    %903 = vmatprep.subr.bf16.mxu0 0
    %904 = vmatpush1.bf16.msra.mxu0 %v886
    %905 = vmatprep.subr.bf16.mxu0 0
    %906 = vmatpush1.bf16.msra.mxu0 %v887
    %907 = vmatprep.subr.bf16.mxu0 0
    %908 = vmatpush1.bf16.msra.mxu0 %v888
    %909 = vmatprep.subr.bf16.mxu0 0
    %910 = vmatpush1.bf16.msra.mxu0 %v889
    %911 = vmatprep.subr.bf16.mxu0 0
    %912 = vmatpush1.bf16.msra.mxu0 %v890
    %913 = vmatprep.subr.bf16.mxu0 0
    %914 = vmatpush1.bf16.msra.mxu0 %v891
    %915 = vmatprep.subr.bf16.mxu0 0
    %916 = vmatpush1.bf16.msra.mxu0 %v892
    %917 = vmatprep.subr.bf16.mxu0 0
    %918 = vmatpush1.bf16.msra.mxu0 0
    %919 = vmatprep.subr.bf16.mxu0 0
    %920 = vmatpush1.bf16.msra.mxu0 0
    %921 = vmatprep.subr.bf16.mxu0 0
    %922 = vmatpush1.bf16.msra.mxu0 0
    %923 = vmatprep.subr.bf16.mxu0 0
    %924 = vmatpush1.bf16.msra.mxu0 0
    %925 = vmatprep.subr.bf16.mxu0 0
    %926 = vmatpush1.bf16.msra.mxu0 0
    %927 = vmatprep.subr.bf16.mxu0 0
    %928 = vmatpush1.bf16.msra.mxu0 0
    %929 = vmatprep.subr.bf16.mxu0 0
    %930 = vmatpush1.bf16.msra.mxu0 0
    %931 = vmatprep.subr.bf16.mxu0 0
    %932 = vmatpush1.bf16.msra.mxu0 0
    %933 = vmatprep.mubr.bf16.mxu0 0
    %934 = vmatmul.mubr.bf16.gmra.mrb[0].mxu0 %v847
    %v935 = vpop.f32.mrb[0].mxu0
    %v936 = vadd.f32 %v852, %v935
    %v937 = vpop.f32.mrb[0].mxu0
    %v938 = vpop.f32.mrb[0].mxu0
    %v939 = vadd.f32 %v852, %v938
    %v940 = vpop.f32.mrb[0].mxu0
    %941 = vmatprep.mubr.bf16.mxu0 0
    %942 = vmatmul.mubr.bf16.gmra.mrb[0].mxu0 %v848
    %v943 = vpop.f32.mrb[0].mxu0
    %v944 = vadd.f32 %v852, %v943
    %v945 = vpop.f32.mrb[0].mxu0
    %v946 = vpop.f32.mrb[0].mxu0
    %v947 = vadd.f32 %v852, %v946
    %v948 = vpop.f32.mrb[0].mxu0
    %949 = vdwg.mxu0
    %vm950 = vcmp.gt.f32.partialorder %v936, 0.0
    %vm951 = vcmp.gt.f32.partialorder %v939, 0.0
    %vm952 = vcmp.gt.f32.partialorder %v944, 0.0
    %vm953 = vcmp.gt.f32.partialorder %v947, 0.0
    %v954 = vmul.f32 %v936, 0.2
    %v955 = vmul.f32 %v939, 0.2
    %v956 = vmul.f32 %v944, 0.2
    %v957 = vmul.f32 %v947, 0.2
    %v958 = vsel %vm950, %v936, %v954
    %v959 = vsel %vm951, %v939, %v955
    %v960 = vsel %vm952, %v944, %v956
    %v961 = vsel %vm953, %v947, %v957
    %v962 = vld [vmem:[#allocation2 + $0x180] sm:$0xf]
    %v963 = vld [vmem:[#allocation2 + $0x184] sm:$0xf]
    %v964 = vld [vmem:[#allocation2 + $0x188] sm:$0xf]
    %v965 = vld [vmem:[#allocation2 + $0x18c] sm:$0xf]
    %v966 = vld [vmem:[#allocation2 + $0x190] sm:$0xf]
    %v967 = vld [vmem:[#allocation2 + $0x194] sm:$0xf]
    %v968 = vld [vmem:[#allocation2 + $0x198] sm:$0xf]
    %v969 = vld [vmem:[#allocation2 + $0x19c] sm:$0xf]
    %v970 = vld [vmem:[#allocation2 + $0x1a0] sm:$0xf]
    %v971 = vld [vmem:[#allocation2 + $0x1a4] sm:$0xf]
    %v972 = vld [vmem:[#allocation2 + $0x1a8] sm:$0xf]
    %v973 = vld [vmem:[#allocation2 + $0x1ac] sm:$0xf]
    %v974 = vld [vmem:[#allocation2 + $0x1b0] sm:$0xf]
    %v975 = vld [vmem:[#allocation2 + $0x1b4] sm:$0xf]
    %v976 = vld [vmem:[#allocation2 + $0x1b8] sm:$0xf]
    %v977 = vld [vmem:[#allocation2 + $0x1bc] sm:$0xf]
    %v978 = vpack.c.bf16 %v959, %v958
    %v979 = vpack.c.bf16 %v961, %v960
    %v980 = vlaneseq
    %v981 = vshrl.u32 %v980, 7
    %v982 = vsub.s32 6, %v981
    %v983 = vrot.slane %v46, %v982
    %v1000 = vunpack.c.l.b16 %v962
    %v1001 = vunpack.c.l.b16 %v963
    %v1002 = vunpack.c.l.b16 %v964
    %v1003 = vunpack.c.l.b16 %v965
    %v1004 = vunpack.c.l.b16 %v966
    %v1005 = vunpack.c.l.b16 %v967
    %v1006 = vunpack.c.l.b16 %v968
    %v1007 = vunpack.c.l.b16 %v969
    %v1008 = vunpack.c.l.b16 %v970
    %v1009 = vunpack.c.l.b16 %v971
    %v1010 = vunpack.c.l.b16 %v972
    %v1011 = vunpack.c.l.b16 %v973
    %v1012 = vunpack.c.l.b16 %v974
    %v1013 = vunpack.c.l.b16 %v975
    %v1014 = vunpack.c.l.b16 %v976
    %v1015 = vunpack.c.l.b16 %v977
    %v1016 = vpack.c.b16 %v1001, %v1000
    %v1017 = vpack.c.b16 %v1003, %v1002
    %v1018 = vpack.c.b16 %v1005, %v1004
    %v1019 = vpack.c.b16 %v1007, %v1006
    %v1020 = vpack.c.b16 %v1009, %v1008
    %v1021 = vpack.c.b16 %v1011, %v1010
    %v1022 = vpack.c.b16 %v1013, %v1012
    %v1023 = vpack.c.b16 %v1015, %v1014
    %1032 = vmatprep.subr.bf16.mxu0 0
    %1033 = vmatpush1.bf16.msra.mxu0 %v1016
    %1034 = vmatprep.subr.bf16.mxu0 0
    %1035 = vmatpush1.bf16.msra.mxu0 %v1017
    %1036 = vmatprep.subr.bf16.mxu0 0
    %1037 = vmatpush1.bf16.msra.mxu0 %v1018
    %1038 = vmatprep.subr.bf16.mxu0 0
    %1039 = vmatpush1.bf16.msra.mxu0 %v1019
    %1040 = vmatprep.subr.bf16.mxu0 0
    %1041 = vmatpush1.bf16.msra.mxu0 %v1020
    %1042 = vmatprep.subr.bf16.mxu0 0
    %1043 = vmatpush1.bf16.msra.mxu0 %v1021
    %1044 = vmatprep.subr.bf16.mxu0 0
    %1045 = vmatpush1.bf16.msra.mxu0 %v1022
    %1046 = vmatprep.subr.bf16.mxu0 0
    %1047 = vmatpush1.bf16.msra.mxu0 %v1023
    %1048 = vmatprep.subr.bf16.mxu0 0
    %1049 = vmatpush1.bf16.msra.mxu0 0
    %1050 = vmatprep.subr.bf16.mxu0 0
    %1051 = vmatpush1.bf16.msra.mxu0 0
    %1052 = vmatprep.subr.bf16.mxu0 0
    %1053 = vmatpush1.bf16.msra.mxu0 0
    %1054 = vmatprep.subr.bf16.mxu0 0
    %1055 = vmatpush1.bf16.msra.mxu0 0
    %1056 = vmatprep.subr.bf16.mxu0 0
    %1057 = vmatpush1.bf16.msra.mxu0 0
    %1058 = vmatprep.subr.bf16.mxu0 0
    %1059 = vmatpush1.bf16.msra.mxu0 0
    %1060 = vmatprep.subr.bf16.mxu0 0
    %1061 = vmatpush1.bf16.msra.mxu0 0
    %1062 = vmatprep.subr.bf16.mxu0 0
    %1063 = vmatpush1.bf16.msra.mxu0 0
    %1064 = vmatprep.mubr.bf16.mxu0 0
    %1065 = vmatmul.mubr.bf16.gmra.mrb[0].mxu0 %v978
    %v1066 = vpop.f32.mrb[0].mxu0
    %v1067 = vadd.f32 %v983, %v1066
    %v1068 = vpop.f32.mrb[0].mxu0
    %v1069 = vpop.f32.mrb[0].mxu0
    %v1070 = vadd.f32 %v983, %v1069
    %v1071 = vpop.f32.mrb[0].mxu0
    %1072 = vmatprep.mubr.bf16.mxu0 0
    %1073 = vmatmul.mubr.bf16.gmra.mrb[0].mxu0 %v979
    %v1074 = vpop.f32.mrb[0].mxu0
    %v1075 = vadd.f32 %v983, %v1074
    %v1076 = vpop.f32.mrb[0].mxu0
    %v1077 = vpop.f32.mrb[0].mxu0
    %v1078 = vadd.f32 %v983, %v1077
    %v1079 = vpop.f32.mrb[0].mxu0
    %1080 = vdwg.mxu0
    %vm1081 = vcmp.gt.f32.partialorder %v1067, 0.0
    %vm1082 = vcmp.gt.f32.partialorder %v1070, 0.0
    %vm1083 = vcmp.gt.f32.partialorder %v1075, 0.0
    %vm1084 = vcmp.gt.f32.partialorder %v1078, 0.0
    %v1085 = vmul.f32 %v1067, 0.2
    %v1086 = vmul.f32 %v1070, 0.2
    %v1087 = vmul.f32 %v1075, 0.2
    %v1088 = vmul.f32 %v1078, 0.2
    %v1089 = vsel %vm1081, %v1067, %v1085
    %v1090 = vsel %vm1082, %v1070, %v1086
    %v1091 = vsel %vm1083, %v1075, %v1087
    %v1092 = vsel %vm1084, %v1078, %v1088
    %v1093 = vld [vmem:[#allocation2 + $0x1c0] sm:$0xf]
    %v1094 = vld [vmem:[#allocation2 + $0x1c4] sm:$0xf]
    %v1095 = vld [vmem:[#allocation2 + $0x1c8] sm:$0xf]
    %v1096 = vld [vmem:[#allocation2 + $0x1cc] sm:$0xf]
    %v1097 = vld [vmem:[#allocation2 + $0x1d0] sm:$0xf]
    %v1098 = vld [vmem:[#allocation2 + $0x1d4] sm:$0xf]
    %v1099 = vld [vmem:[#allocation2 + $0x1d8] sm:$0xf]
    %v1100 = vld [vmem:[#allocation2 + $0x1dc] sm:$0xf]
    %v1101 = vld [vmem:[#allocation2 + $0x1e0] sm:$0xf]
    %v1102 = vld [vmem:[#allocation2 + $0x1e4] sm:$0xf]
    %v1103 = vld [vmem:[#allocation2 + $0x1e8] sm:$0xf]
    %v1104 = vld [vmem:[#allocation2 + $0x1ec] sm:$0xf]
    %v1105 = vld [vmem:[#allocation2 + $0x1f0] sm:$0xf]
    %v1106 = vld [vmem:[#allocation2 + $0x1f4] sm:$0xf]
    %v1107 = vld [vmem:[#allocation2 + $0x1f8] sm:$0xf]
    %v1108 = vld [vmem:[#allocation2 + $0x1fc] sm:$0xf]
    %v1109 = vpack.c.bf16 %v1090, %v1089
    %v1110 = vpack.c.bf16 %v1092, %v1091
    %v1111 = vlaneseq
    %v1112 = vshrl.u32 %v1111, 7
    %v1113 = vsub.s32 7, %v1112
    %v1114 = vrot.slane %v46, %v1113
    %v1131 = vunpack.c.l.b16 %v1093
    %v1132 = vunpack.c.l.b16 %v1094
    %v1133 = vunpack.c.l.b16 %v1095
    %v1134 = vunpack.c.l.b16 %v1096
    %v1135 = vunpack.c.l.b16 %v1097
    %v1136 = vunpack.c.l.b16 %v1098
    %v1137 = vunpack.c.l.b16 %v1099
    %v1138 = vunpack.c.l.b16 %v1100
    %v1139 = vunpack.c.l.b16 %v1101
    %v1140 = vunpack.c.l.b16 %v1102
    %v1141 = vunpack.c.l.b16 %v1103
    %v1142 = vunpack.c.l.b16 %v1104
    %v1143 = vunpack.c.l.b16 %v1105
    %v1144 = vunpack.c.l.b16 %v1106
    %v1145 = vunpack.c.l.b16 %v1107
    %v1146 = vunpack.c.l.b16 %v1108
    %v1147 = vpack.c.b16 %v1132, %v1131
    %v1148 = vpack.c.b16 %v1134, %v1133
    %v1149 = vpack.c.b16 %v1136, %v1135
    %v1150 = vpack.c.b16 %v1138, %v1137
    %v1151 = vpack.c.b16 %v1140, %v1139
    %v1152 = vpack.c.b16 %v1142, %v1141
    %v1153 = vpack.c.b16 %v1144, %v1143
    %v1154 = vpack.c.b16 %v1146, %v1145
    %1163 = vmatprep.subr.bf16.mxu0 0
    %1164 = vmatpush1.bf16.msra.mxu0 %v1147
    %1165 = vmatprep.subr.bf16.mxu0 0
    %1166 = vmatpush1.bf16.msra.mxu0 %v1148
    %1167 = vmatprep.subr.bf16.mxu0 0
    %1168 = vmatpush1.bf16.msra.mxu0 %v1149
    %1169 = vmatprep.subr.bf16.mxu0 0
    %1170 = vmatpush1.bf16.msra.mxu0 %v1150
    %1171 = vmatprep.subr.bf16.mxu0 0
    %1172 = vmatpush1.bf16.msra.mxu0 %v1151
    %1173 = vmatprep.subr.bf16.mxu0 0
    %1174 = vmatpush1.bf16.msra.mxu0 %v1152
    %1175 = vmatprep.subr.bf16.mxu0 0
    %1176 = vmatpush1.bf16.msra.mxu0 %v1153
    %1177 = vmatprep.subr.bf16.mxu0 0
    %1178 = vmatpush1.bf16.msra.mxu0 %v1154
    %1179 = vmatprep.subr.bf16.mxu0 0
    %1180 = vmatpush1.bf16.msra.mxu0 0
    %1181 = vmatprep.subr.bf16.mxu0 0
    %1182 = vmatpush1.bf16.msra.mxu0 0
    %1183 = vmatprep.subr.bf16.mxu0 0
    %1184 = vmatpush1.bf16.msra.mxu0 0
    %1185 = vmatprep.subr.bf16.mxu0 0
    %1186 = vmatpush1.bf16.msra.mxu0 0
    %1187 = vmatprep.subr.bf16.mxu0 0
    %1188 = vmatpush1.bf16.msra.mxu0 0
    %1189 = vmatprep.subr.bf16.mxu0 0
    %1190 = vmatpush1.bf16.msra.mxu0 0
    %1191 = vmatprep.subr.bf16.mxu0 0
    %1192 = vmatpush1.bf16.msra.mxu0 0
    %1193 = vmatprep.subr.bf16.mxu0 0
    %1194 = vmatpush1.bf16.msra.mxu0 0
    %1195 = vmatprep.mubr.bf16.mxu0 0
    %1196 = vmatmul.mubr.bf16.gmra.mrb[0].mxu0 %v1109
    %v1197 = vpop.f32.mrb[0].mxu0
    %v1198 = vadd.f32 %v1114, %v1197
    %v1199 = vpop.f32.mrb[0].mxu0
    %v1200 = vpop.f32.mrb[0].mxu0
    %v1201 = vadd.f32 %v1114, %v1200
    %v1202 = vpop.f32.mrb[0].mxu0
    %1203 = vmatprep.mubr.bf16.mxu0 0
    %1204 = vmatmul.mubr.bf16.gmra.mrb[0].mxu0 %v1110
    %v1205 = vpop.f32.mrb[0].mxu0
    %v1206 = vadd.f32 %v1114, %v1205
    %v1207 = vpop.f32.mrb[0].mxu0
    %v1208 = vpop.f32.mrb[0].mxu0
    %v1209 = vadd.f32 %v1114, %v1208
    %v1210 = vpop.f32.mrb[0].mxu0
    %1211 = vdwg.mxu0
    %v1212 = vtanh.pop %v1198
    %v1213 = vtanh.pop %v1201
    %v1214 = vtanh.pop %v1206
    %v1215 = vtanh.pop %v1209
    %v1216 = vld [vmem:[#allocation2 + $0x200] sm:$0xf]
    %v1217 = vld [vmem:[#allocation2 + $0x204] sm:$0xf]
    %v1218 = vld [vmem:[#allocation2 + $0x208] sm:$0xf]
    %v1219 = vld [vmem:[#allocation2 + $0x20c] sm:$0xf]
    %v1220 = vld [vmem:[#allocation2 + $0x210] sm:$0xf]
    %v1221 = vld [vmem:[#allocation2 + $0x214] sm:$0xf]
    %v1222 = vld [vmem:[#allocation2 + $0x218] sm:$0xf]
    %v1223 = vld [vmem:[#allocation2 + $0x21c] sm:$0xf]
    %v1224 = vld [vmem:[#allocation2 + $0x220] sm:$0xf]
    %v1225 = vld [vmem:[#allocation2 + $0x224] sm:$0xf]
    %v1226 = vld [vmem:[#allocation2 + $0x228] sm:$0xf]
    %v1227 = vld [vmem:[#allocation2 + $0x22c] sm:$0xf]
    %v1228 = vld [vmem:[#allocation2 + $0x230] sm:$0xf]
    %v1229 = vld [vmem:[#allocation2 + $0x234] sm:$0xf]
    %v1230 = vld [vmem:[#allocation2 + $0x238] sm:$0xf]
    %v1231 = vld [vmem:[#allocation2 + $0x23c] sm:$0xf]
    %v1232 = vpack.c.bf16 %v1213, %v1212
    %v1233 = vpack.c.bf16 %v1215, %v1214
    %v1234 = vlaneseq
    %v1235 = vshrl.u32 %v1234, 7
    %v1236 = vsub.s32 0, %v1235
    %v1237 = vrot.slane %v48, %v1236
    %v1254 = vunpack.c.l.b16 %v1216
    %v1255 = vunpack.c.l.b16 %v1217
    %v1256 = vunpack.c.l.b16 %v1218
    %v1257 = vunpack.c.l.b16 %v1219
    %v1258 = vunpack.c.l.b16 %v1220
    %v1259 = vunpack.c.l.b16 %v1221
    %v1260 = vunpack.c.l.b16 %v1222
    %v1261 = vunpack.c.l.b16 %v1223
    %v1262 = vunpack.c.l.b16 %v1224
    %v1263 = vunpack.c.l.b16 %v1225
    %v1264 = vunpack.c.l.b16 %v1226
    %v1265 = vunpack.c.l.b16 %v1227
    %v1266 = vunpack.c.l.b16 %v1228
    %v1267 = vunpack.c.l.b16 %v1229
    %v1268 = vunpack.c.l.b16 %v1230
    %v1269 = vunpack.c.l.b16 %v1231
    %v1270 = vpack.c.b16 %v1255, %v1254
    %v1271 = vpack.c.b16 %v1257, %v1256
    %v1272 = vpack.c.b16 %v1259, %v1258
    %v1273 = vpack.c.b16 %v1261, %v1260
    %v1274 = vpack.c.b16 %v1263, %v1262
    %v1275 = vpack.c.b16 %v1265, %v1264
    %v1276 = vpack.c.b16 %v1267, %v1266
    %v1277 = vpack.c.b16 %v1269, %v1268
    %1286 = vmatprep.subr.bf16.mxu0 0
    %1287 = vmatpush1.bf16.msra.mxu0 %v1270
    %1288 = vmatprep.subr.bf16.mxu0 0
    %1289 = vmatpush1.bf16.msra.mxu0 %v1271
    %1290 = vmatprep.subr.bf16.mxu0 0
    %1291 = vmatpush1.bf16.msra.mxu0 %v1272
    %1292 = vmatprep.subr.bf16.mxu0 0
    %1293 = vmatpush1.bf16.msra.mxu0 %v1273
    %1294 = vmatprep.subr.bf16.mxu0 0
    %1295 = vmatpush1.bf16.msra.mxu0 %v1274
    %1296 = vmatprep.subr.bf16.mxu0 0
    %1297 = vmatpush1.bf16.msra.mxu0 %v1275
    %1298 = vmatprep.subr.bf16.mxu0 0
    %1299 = vmatpush1.bf16.msra.mxu0 %v1276
    %1300 = vmatprep.subr.bf16.mxu0 0
    %1301 = vmatpush1.bf16.msra.mxu0 %v1277
    %1302 = vmatprep.subr.bf16.mxu0 0
    %1303 = vmatpush1.bf16.msra.mxu0 0
    %1304 = vmatprep.subr.bf16.mxu0 0
    %1305 = vmatpush1.bf16.msra.mxu0 0
    %1306 = vmatprep.subr.bf16.mxu0 0
    %1307 = vmatpush1.bf16.msra.mxu0 0
    %1308 = vmatprep.subr.bf16.mxu0 0
    %1309 = vmatpush1.bf16.msra.mxu0 0
    %1310 = vmatprep.subr.bf16.mxu0 0
    %1311 = vmatpush1.bf16.msra.mxu0 0
    %1312 = vmatprep.subr.bf16.mxu0 0
    %1313 = vmatpush1.bf16.msra.mxu0 0
    %1314 = vmatprep.subr.bf16.mxu0 0
    %1315 = vmatpush1.bf16.msra.mxu0 0
    %1316 = vmatprep.subr.bf16.mxu0 0
    %1317 = vmatpush1.bf16.msra.mxu0 0
    %1318 = vmatprep.mubr.bf16.mxu0 0
    %1319 = vmatmul.mubr.bf16.gmra.mrb[0].mxu0 %v1232
    %v1320 = vpop.f32.mrb[0].mxu0
    %v1321 = vadd.f32 %v1237, %v1320
    %v1322 = vpop.f32.mrb[0].mxu0
    %v1323 = vpop.f32.mrb[0].mxu0
    %v1324 = vadd.f32 %v1237, %v1323
    %v1325 = vpop.f32.mrb[0].mxu0
    %1326 = vmatprep.mubr.bf16.mxu0 0
    %1327 = vmatmul.mubr.bf16.gmra.mrb[0].mxu0 %v1233
    %v1328 = vpop.f32.mrb[0].mxu0
    %v1329 = vadd.f32 %v1237, %v1328
    %v1330 = vpop.f32.mrb[0].mxu0
    %v1331 = vpop.f32.mrb[0].mxu0
    %v1332 = vadd.f32 %v1237, %v1331
    %v1333 = vpop.f32.mrb[0].mxu0
    %1334 = vdwg.mxu0
    %vm1335 = vcmp.gt.f32.partialorder %v1321, 0.0
    %vm1336 = vcmp.gt.f32.partialorder %v1324, 0.0
    %vm1337 = vcmp.gt.f32.partialorder %v1329, 0.0
    %vm1338 = vcmp.gt.f32.partialorder %v1332, 0.0
    %v1339 = vmul.f32 %v1321, 0.2
    %v1340 = vmul.f32 %v1324, 0.2
    %v1341 = vmul.f32 %v1329, 0.2
    %v1342 = vmul.f32 %v1332, 0.2
    %v1343 = vsel %vm1335, %v1321, %v1339
    %v1344 = vsel %vm1336, %v1324, %v1340
    %v1345 = vsel %vm1337, %v1329, %v1341
    %v1346 = vsel %vm1338, %v1332, %v1342
    %v1347 = vld [vmem:[#allocation2 + $0x240] sm:$0xf]
    %v1348 = vld [vmem:[#allocation2 + $0x244] sm:$0xf]
    %v1349 = vld [vmem:[#allocation2 + $0x248] sm:$0xf]
    %v1350 = vld [vmem:[#allocation2 + $0x24c] sm:$0xf]
    %v1351 = vld [vmem:[#allocation2 + $0x250] sm:$0xf]
    %v1352 = vld [vmem:[#allocation2 + $0x254] sm:$0xf]
    %v1353 = vld [vmem:[#allocation2 + $0x258] sm:$0xf]
    %v1354 = vld [vmem:[#allocation2 + $0x25c] sm:$0xf]
    %v1355 = vld [vmem:[#allocation2 + $0x260] sm:$0xf]
    %v1356 = vld [vmem:[#allocation2 + $0x264] sm:$0xf]
    %v1357 = vld [vmem:[#allocation2 + $0x268] sm:$0xf]
    %v1358 = vld [vmem:[#allocation2 + $0x26c] sm:$0xf]
    %v1359 = vld [vmem:[#allocation2 + $0x270] sm:$0xf]
    %v1360 = vld [vmem:[#allocation2 + $0x274] sm:$0xf]
    %v1361 = vld [vmem:[#allocation2 + $0x278] sm:$0xf]
    %v1362 = vld [vmem:[#allocation2 + $0x27c] sm:$0xf]
    %v1363 = vpack.c.bf16 %v1344, %v1343
    %v1364 = vpack.c.bf16 %v1346, %v1345
    %v1365 = vlaneseq
    %v1366 = vshrl.u32 %v1365, 7
    %v1367 = vsub.s32 1, %v1366
    %v1368 = vrot.slane %v48, %v1367
    %v1385 = vunpack.c.l.b16 %v1347
    %v1386 = vunpack.c.l.b16 %v1348
    %v1387 = vunpack.c.l.b16 %v1349
    %v1388 = vunpack.c.l.b16 %v1350
    %v1389 = vunpack.c.l.b16 %v1351
    %v1390 = vunpack.c.l.b16 %v1352
    %v1391 = vunpack.c.l.b16 %v1353
    %v1392 = vunpack.c.l.b16 %v1354
    %v1393 = vunpack.c.l.b16 %v1355
    %v1394 = vunpack.c.l.b16 %v1356
    %v1395 = vunpack.c.l.b16 %v1357
    %v1396 = vunpack.c.l.b16 %v1358
    %v1397 = vunpack.c.l.b16 %v1359
    %v1398 = vunpack.c.l.b16 %v1360
    %v1399 = vunpack.c.l.b16 %v1361
    %v1400 = vunpack.c.l.b16 %v1362
    %v1401 = vpack.c.b16 %v1386, %v1385
    %v1402 = vpack.c.b16 %v1388, %v1387
    %v1403 = vpack.c.b16 %v1390, %v1389
    %v1404 = vpack.c.b16 %v1392, %v1391
    %v1405 = vpack.c.b16 %v1394, %v1393
    %v1406 = vpack.c.b16 %v1396, %v1395
    %v1407 = vpack.c.b16 %v1398, %v1397
    %v1408 = vpack.c.b16 %v1400, %v1399
    %1417 = vmatprep.subr.bf16.mxu0 0
    %1418 = vmatpush1.bf16.msra.mxu0 %v1401
    %1419 = vmatprep.subr.bf16.mxu0 0
    %1420 = vmatpush1.bf16.msra.mxu0 %v1402
    %1421 = vmatprep.subr.bf16.mxu0 0
    %1422 = vmatpush1.bf16.msra.mxu0 %v1403
    %1423 = vmatprep.subr.bf16.mxu0 0
    %1424 = vmatpush1.bf16.msra.mxu0 %v1404
    %1425 = vmatprep.subr.bf16.mxu0 0
    %1426 = vmatpush1.bf16.msra.mxu0 %v1405
    %1427 = vmatprep.subr.bf16.mxu0 0
    %1428 = vmatpush1.bf16.msra.mxu0 %v1406
    %1429 = vmatprep.subr.bf16.mxu0 0
    %1430 = vmatpush1.bf16.msra.mxu0 %v1407
    %1431 = vmatprep.subr.bf16.mxu0 0
    %1432 = vmatpush1.bf16.msra.mxu0 %v1408
    %1433 = vmatprep.subr.bf16.mxu0 0
    %1434 = vmatpush1.bf16.msra.mxu0 0
    %1435 = vmatprep.subr.bf16.mxu0 0
    %1436 = vmatpush1.bf16.msra.mxu0 0
    %1437 = vmatprep.subr.bf16.mxu0 0
    %1438 = vmatpush1.bf16.msra.mxu0 0
    %1439 = vmatprep.subr.bf16.mxu0 0
    %1440 = vmatpush1.bf16.msra.mxu0 0
    %1441 = vmatprep.subr.bf16.mxu0 0
    %1442 = vmatpush1.bf16.msra.mxu0 0
    %1443 = vmatprep.subr.bf16.mxu0 0
    %1444 = vmatpush1.bf16.msra.mxu0 0
    %1445 = vmatprep.subr.bf16.mxu0 0
    %1446 = vmatpush1.bf16.msra.mxu0 0
    %1447 = vmatprep.subr.bf16.mxu0 0
    %1448 = vmatpush1.bf16.msra.mxu0 0
    %1449 = vmatprep.mubr.bf16.mxu0 0
    %1450 = vmatmul.mubr.bf16.gmra.mrb[0].mxu0 %v1363
    %v1451 = vpop.f32.mrb[0].mxu0
    %v1452 = vadd.f32 %v1368, %v1451
    %v1453 = vpop.f32.mrb[0].mxu0
    %v1454 = vpop.f32.mrb[0].mxu0
    %v1455 = vadd.f32 %v1368, %v1454
    %v1456 = vpop.f32.mrb[0].mxu0
    %1457 = vmatprep.mubr.bf16.mxu0 0
    %1458 = vmatmul.mubr.bf16.gmra.mrb[0].mxu0 %v1364
    %v1459 = vpop.f32.mrb[0].mxu0
    %v1460 = vadd.f32 %v1368, %v1459
    %v1461 = vpop.f32.mrb[0].mxu0
    %v1462 = vpop.f32.mrb[0].mxu0
    %v1463 = vadd.f32 %v1368, %v1462
    %v1464 = vpop.f32.mrb[0].mxu0
    %1465 = vdwg.mxu0
    %v1466 = vadd.f32 %v1452, %v1455
    %v1467 = vadd.f32 %v1466, %v1460
    %v1468 = vadd.f32 %v1467, %v1463
    %v1469 = vrot.slane %v1468, 4
    %v1470 = vadd.f32 %v1468, %v1469
    %v1471 = vrot.slane %v1470, 2
    %v1472 = vadd.f32 %v1470, %v1471
    %v1473 = vrot.slane %v1472, 1
    %v1474 = vadd.f32 %v1472, %v1473
    %v1475 = vmul.f32 %v1474, 0.03125
    %v1476 = vsub.f32 %v1452, %v1475
    %v1477 = vsub.f32 %v1455, %v1475
    %v1478 = vsub.f32 %v1460, %v1475
    %v1479 = vsub.f32 %v1463, %v1475
    %v1480 = vmul.f32 %v1476, %v1476
    %v1481 = vmul.f32 %v1477, %v1477
    %v1482 = vmul.f32 %v1478, %v1478
    %v1483 = vmul.f32 %v1479, %v1479
    %v1484 = vadd.f32 %v1480, %v1481
    %v1485 = vadd.f32 %v1484, %v1482
    %v1486 = vadd.f32 %v1485, %v1483
    %v1487 = vrot.slane %v1486, 4
    %v1488 = vadd.f32 %v1486, %v1487
    %v1489 = vrot.slane %v1488, 2
    %v1490 = vadd.f32 %v1488, %v1489
    %v1491 = vrot.slane %v1490, 1
    %v1492 = vadd.f32 %v1490, %v1491
    %v1493 = vmul.f32 %v1492, 0.03125
    %v1494 = vadd.f32 %v1493, 0.8
    %v1495 = vrsqrt.pop %v1494
    %v1496 = vmul.f32 %v1476, %v1495
    %v1497 = vmul.f32 %v1477, %v1495
    %v1498 = vmul.f32 %v1478, %v1495
    %v1499 = vmul.f32 %v1479, %v1495
    %v1500 = vlaneseq
    %v1501 = vshrl.u32 %v1500, 7
    %v1502 = vsub.s32 0, %v1501
    %v1503 = vrot.slane %v50, %v1502
    %v1504 = vmul.f32 %v1496, %v1503
    %v1505 = vmul.f32 %v1497, %v1503
    %v1506 = vmul.f32 %v1498, %v1503
    %v1507 = vmul.f32 %v1499, %v1503
    %v1508 = vlaneseq
    %v1509 = vshrl.u32 %v1508, 7
    %v1510 = vsub.s32 6, %v1509
    %v1511 = vrot.slane %v50, %v1510
    %v1512 = vadd.f32 %v1504, %v1511
    %v1513 = vadd.f32 %v1505, %v1511
    %v1514 = vadd.f32 %v1506, %v1511
    %v1515 = vadd.f32 %v1507, %v1511
    %vm1516 = vcmp.gt.f32.partialorder %v1512, 0.0
    %vm1517 = vcmp.gt.f32.partialorder %v1513, 0.0
    %vm1518 = vcmp.gt.f32.partialorder %v1514, 0.0
    %vm1519 = vcmp.gt.f32.partialorder %v1515, 0.0
    %v1520 = vmul.f32 %v1512, 0.2
    %v1521 = vmul.f32 %v1513, 0.2
    %v1522 = vmul.f32 %v1514, 0.2
    %v1523 = vmul.f32 %v1515, 0.2
    %v1524 = vsel %vm1516, %v1512, %v1520
    %v1525 = vsel %vm1517, %v1513, %v1521
    %v1526 = vsel %vm1518, %v1514, %v1522
    %v1527 = vsel %vm1519, %v1515, %v1523
    %v1528 = vld [vmem:[#allocation2 + $0x280] sm:$0xf]
    %v1529 = vld [vmem:[#allocation2 + $0x284] sm:$0xf]
    %v1530 = vld [vmem:[#allocation2 + $0x288] sm:$0xf]
    %v1531 = vld [vmem:[#allocation2 + $0x28c] sm:$0xf]
    %v1532 = vld [vmem:[#allocation2 + $0x290] sm:$0xf]
    %v1533 = vld [vmem:[#allocation2 + $0x294] sm:$0xf]
    %v1534 = vld [vmem:[#allocation2 + $0x298] sm:$0xf]
    %v1535 = vld [vmem:[#allocation2 + $0x29c] sm:$0xf]
    %v1536 = vld [vmem:[#allocation2 + $0x2a0] sm:$0xf]
    %v1537 = vld [vmem:[#allocation2 + $0x2a4] sm:$0xf]
    %v1538 = vld [vmem:[#allocation2 + $0x2a8] sm:$0xf]
    %v1539 = vld [vmem:[#allocation2 + $0x2ac] sm:$0xf]
    %v1540 = vld [vmem:[#allocation2 + $0x2b0] sm:$0xf]
    %v1541 = vld [vmem:[#allocation2 + $0x2b4] sm:$0xf]
    %v1542 = vld [vmem:[#allocation2 + $0x2b8] sm:$0xf]
    %v1543 = vld [vmem:[#allocation2 + $0x2bc] sm:$0xf]
    %v1544 = vpack.c.bf16 %v1525, %v1524
    %v1545 = vpack.c.bf16 %v1527, %v1526
    %v1546 = vlaneseq
    %v1547 = vshrl.u32 %v1546, 7
    %v1548 = vsub.s32 2, %v1547
    %v1549 = vrot.slane %v48, %v1548
    %v1566 = vunpack.c.l.b16 %v1528
    %v1567 = vunpack.c.l.b16 %v1529
    %v1568 = vunpack.c.l.b16 %v1530
    %v1569 = vunpack.c.l.b16 %v1531
    %v1570 = vunpack.c.l.b16 %v1532
    %v1571 = vunpack.c.l.b16 %v1533
    %v1572 = vunpack.c.l.b16 %v1534
    %v1573 = vunpack.c.l.b16 %v1535
    %v1574 = vunpack.c.l.b16 %v1536
    %v1575 = vunpack.c.l.b16 %v1537
    %v1576 = vunpack.c.l.b16 %v1538
    %v1577 = vunpack.c.l.b16 %v1539
    %v1578 = vunpack.c.l.b16 %v1540
    %v1579 = vunpack.c.l.b16 %v1541
    %v1580 = vunpack.c.l.b16 %v1542
    %v1581 = vunpack.c.l.b16 %v1543
    %v1582 = vpack.c.b16 %v1567, %v1566
    %v1583 = vpack.c.b16 %v1569, %v1568
    %v1584 = vpack.c.b16 %v1571, %v1570
    %v1585 = vpack.c.b16 %v1573, %v1572
    %v1586 = vpack.c.b16 %v1575, %v1574
    %v1587 = vpack.c.b16 %v1577, %v1576
    %v1588 = vpack.c.b16 %v1579, %v1578
    %v1589 = vpack.c.b16 %v1581, %v1580
    %1598 = vmatprep.subr.bf16.mxu0 0
    %1599 = vmatpush1.bf16.msra.mxu0 %v1582
    %1600 = vmatprep.subr.bf16.mxu0 0
    %1601 = vmatpush1.bf16.msra.mxu0 %v1583
    %1602 = vmatprep.subr.bf16.mxu0 0
    %1603 = vmatpush1.bf16.msra.mxu0 %v1584
    %1604 = vmatprep.subr.bf16.mxu0 0
    %1605 = vmatpush1.bf16.msra.mxu0 %v1585
    %1606 = vmatprep.subr.bf16.mxu0 0
    %1607 = vmatpush1.bf16.msra.mxu0 %v1586
    %1608 = vmatprep.subr.bf16.mxu0 0
    %1609 = vmatpush1.bf16.msra.mxu0 %v1587
    %1610 = vmatprep.subr.bf16.mxu0 0
    %1611 = vmatpush1.bf16.msra.mxu0 %v1588
    %1612 = vmatprep.subr.bf16.mxu0 0
    %1613 = vmatpush1.bf16.msra.mxu0 %v1589
    %1614 = vmatprep.subr.bf16.mxu0 0
    %1615 = vmatpush1.bf16.msra.mxu0 0
    %1616 = vmatprep.subr.bf16.mxu0 0
    %1617 = vmatpush1.bf16.msra.mxu0 0
    %1618 = vmatprep.subr.bf16.mxu0 0
    %1619 = vmatpush1.bf16.msra.mxu0 0
    %1620 = vmatprep.subr.bf16.mxu0 0
    %1621 = vmatpush1.bf16.msra.mxu0 0
    %1622 = vmatprep.subr.bf16.mxu0 0
    %1623 = vmatpush1.bf16.msra.mxu0 0
    %1624 = vmatprep.subr.bf16.mxu0 0
    %1625 = vmatpush1.bf16.msra.mxu0 0
    %1626 = vmatprep.subr.bf16.mxu0 0
    %1627 = vmatpush1.bf16.msra.mxu0 0
    %1628 = vmatprep.subr.bf16.mxu0 0
    %1629 = vmatpush1.bf16.msra.mxu0 0
    %1630 = vmatprep.mubr.bf16.mxu0 0
    %1631 = vmatmul.mubr.bf16.gmra.mrb[0].mxu0 %v1544
    %v1632 = vpop.f32.mrb[0].mxu0
    %v1633 = vadd.f32 %v1549, %v1632
    %v1634 = vpop.f32.mrb[0].mxu0
    %v1635 = vpop.f32.mrb[0].mxu0
    %v1636 = vadd.f32 %v1549, %v1635
    %v1637 = vpop.f32.mrb[0].mxu0
    %1638 = vmatprep.mubr.bf16.mxu0 0
    %1639 = vmatmul.mubr.bf16.gmra.mrb[0].mxu0 %v1545
    %v1640 = vpop.f32.mrb[0].mxu0
    %v1641 = vadd.f32 %v1549, %v1640
    %v1642 = vpop.f32.mrb[0].mxu0
    %v1643 = vpop.f32.mrb[0].mxu0
    %v1644 = vadd.f32 %v1549, %v1643
    %v1645 = vpop.f32.mrb[0].mxu0
    %1646 = vdwg.mxu0
    %v1647 = vadd.f32 %v1633, %v1636
    %v1648 = vadd.f32 %v1647, %v1641
    %v1649 = vadd.f32 %v1648, %v1644
    %v1650 = vrot.slane %v1649, 4
    %v1651 = vadd.f32 %v1649, %v1650
    %v1652 = vrot.slane %v1651, 2
    %v1653 = vadd.f32 %v1651, %v1652
    %v1654 = vrot.slane %v1653, 1
    %v1655 = vadd.f32 %v1653, %v1654
    %v1656 = vmul.f32 %v1655, 0.03125
    %v1657 = vsub.f32 %v1633, %v1656
    %v1658 = vsub.f32 %v1636, %v1656
    %v1659 = vsub.f32 %v1641, %v1656
    %v1660 = vsub.f32 %v1644, %v1656
    %v1661 = vmul.f32 %v1657, %v1657
    %v1662 = vmul.f32 %v1658, %v1658
    %v1663 = vmul.f32 %v1659, %v1659
    %v1664 = vmul.f32 %v1660, %v1660
    %v1665 = vadd.f32 %v1661, %v1662
    %v1666 = vadd.f32 %v1665, %v1663
    %v1667 = vadd.f32 %v1666, %v1664
    %v1668 = vrot.slane %v1667, 4
    %v1669 = vadd.f32 %v1667, %v1668
    %v1670 = vrot.slane %v1669, 2
    %v1671 = vadd.f32 %v1669, %v1670
    %v1672 = vrot.slane %v1671, 1
    %v1673 = vadd.f32 %v1671, %v1672
    %v1674 = vmul.f32 %v1673, 0.03125
    %v1675 = vadd.f32 %v1674, 0.8
    %v1676 = vrsqrt.pop %v1675
    %v1677 = vmul.f32 %v1657, %v1676
    %v1678 = vmul.f32 %v1658, %v1676
    %v1679 = vmul.f32 %v1659, %v1676
    %v1680 = vmul.f32 %v1660, %v1676
    %v1681 = vlaneseq
    %v1682 = vshrl.u32 %v1681, 7
    %v1683 = vsub.s32 1, %v1682
    %v1684 = vrot.slane %v50, %v1683
    %v1685 = vmul.f32 %v1677, %v1684
    %v1686 = vmul.f32 %v1678, %v1684
    %v1687 = vmul.f32 %v1679, %v1684
    %v1688 = vmul.f32 %v1680, %v1684
    %v1689 = vlaneseq
    %v1690 = vshrl.u32 %v1689, 7
    %v1691 = vsub.s32 7, %v1690
    %v1692 = vrot.slane %v50, %v1691
    %v1693 = vadd.f32 %v1685, %v1692
    %v1694 = vadd.f32 %v1686, %v1692
    %v1695 = vadd.f32 %v1687, %v1692
    %v1696 = vadd.f32 %v1688, %v1692
    %vm1697 = vcmp.gt.f32.partialorder %v1693, 0.0
    %vm1698 = vcmp.gt.f32.partialorder %v1694, 0.0
    %vm1699 = vcmp.gt.f32.partialorder %v1695, 0.0
    %vm1700 = vcmp.gt.f32.partialorder %v1696, 0.0
    %v1701 = vmul.f32 %v1693, 0.2
    %v1702 = vmul.f32 %v1694, 0.2
    %v1703 = vmul.f32 %v1695, 0.2
    %v1704 = vmul.f32 %v1696, 0.2
    %v1705 = vsel %vm1697, %v1693, %v1701
    %v1706 = vsel %vm1698, %v1694, %v1702
    %v1707 = vsel %vm1699, %v1695, %v1703
    %v1708 = vsel %vm1700, %v1696, %v1704
    %v1709 = vld [vmem:[#allocation2 + $0x2c0] sm:$0xf]
    %v1710 = vld [vmem:[#allocation2 + $0x2c4] sm:$0xf]
    %v1711 = vld [vmem:[#allocation2 + $0x2c8] sm:$0xf]
    %v1712 = vld [vmem:[#allocation2 + $0x2cc] sm:$0xf]
    %v1713 = vld [vmem:[#allocation2 + $0x2d0] sm:$0xf]
    %v1714 = vld [vmem:[#allocation2 + $0x2d4] sm:$0xf]
    %v1715 = vld [vmem:[#allocation2 + $0x2d8] sm:$0xf]
    %v1716 = vld [vmem:[#allocation2 + $0x2dc] sm:$0xf]
    %v1717 = vld [vmem:[#allocation2 + $0x2e0] sm:$0xf]
    %v1718 = vld [vmem:[#allocation2 + $0x2e4] sm:$0xf]
    %v1719 = vld [vmem:[#allocation2 + $0x2e8] sm:$0xf]
    %v1720 = vld [vmem:[#allocation2 + $0x2ec] sm:$0xf]
    %v1721 = vld [vmem:[#allocation2 + $0x2f0] sm:$0xf]
    %v1722 = vld [vmem:[#allocation2 + $0x2f4] sm:$0xf]
    %v1723 = vld [vmem:[#allocation2 + $0x2f8] sm:$0xf]
    %v1724 = vld [vmem:[#allocation2 + $0x2fc] sm:$0xf]
    %v1725 = vpack.c.bf16 %v1706, %v1705
    %v1726 = vpack.c.bf16 %v1708, %v1707
    %v1727 = vlaneseq
    %v1728 = vshrl.u32 %v1727, 7
    %v1729 = vsub.s32 3, %v1728
    %v1730 = vrot.slane %v48, %v1729
    %v1747 = vunpack.c.l.b16 %v1709
    %v1748 = vunpack.c.l.b16 %v1710
    %v1749 = vunpack.c.l.b16 %v1711
    %v1750 = vunpack.c.l.b16 %v1712
    %v1751 = vunpack.c.l.b16 %v1713
    %v1752 = vunpack.c.l.b16 %v1714
    %v1753 = vunpack.c.l.b16 %v1715
    %v1754 = vunpack.c.l.b16 %v1716
    %v1755 = vunpack.c.l.b16 %v1717
    %v1756 = vunpack.c.l.b16 %v1718
    %v1757 = vunpack.c.l.b16 %v1719
    %v1758 = vunpack.c.l.b16 %v1720
    %v1759 = vunpack.c.l.b16 %v1721
    %v1760 = vunpack.c.l.b16 %v1722
    %v1761 = vunpack.c.l.b16 %v1723
    %v1762 = vunpack.c.l.b16 %v1724
    %v1763 = vpack.c.b16 %v1748, %v1747
    %v1764 = vpack.c.b16 %v1750, %v1749
    %v1765 = vpack.c.b16 %v1752, %v1751
    %v1766 = vpack.c.b16 %v1754, %v1753
    %v1767 = vpack.c.b16 %v1756, %v1755
    %v1768 = vpack.c.b16 %v1758, %v1757
    %v1769 = vpack.c.b16 %v1760, %v1759
    %v1770 = vpack.c.b16 %v1762, %v1761
    %1779 = vmatprep.subr.bf16.mxu0 0
    %1780 = vmatpush1.bf16.msra.mxu0 %v1763
    %1781 = vmatprep.subr.bf16.mxu0 0
    %1782 = vmatpush1.bf16.msra.mxu0 %v1764
    %1783 = vmatprep.subr.bf16.mxu0 0
    %1784 = vmatpush1.bf16.msra.mxu0 %v1765
    %1785 = vmatprep.subr.bf16.mxu0 0
    %1786 = vmatpush1.bf16.msra.mxu0 %v1766
    %1787 = vmatprep.subr.bf16.mxu0 0
    %1788 = vmatpush1.bf16.msra.mxu0 %v1767
    %1789 = vmatprep.subr.bf16.mxu0 0
    %1790 = vmatpush1.bf16.msra.mxu0 %v1768
    %1791 = vmatprep.subr.bf16.mxu0 0
    %1792 = vmatpush1.bf16.msra.mxu0 %v1769
    %1793 = vmatprep.subr.bf16.mxu0 0
    %1794 = vmatpush1.bf16.msra.mxu0 %v1770
    %1795 = vmatprep.subr.bf16.mxu0 0
    %1796 = vmatpush1.bf16.msra.mxu0 0
    %1797 = vmatprep.subr.bf16.mxu0 0
    %1798 = vmatpush1.bf16.msra.mxu0 0
    %1799 = vmatprep.subr.bf16.mxu0 0
    %1800 = vmatpush1.bf16.msra.mxu0 0
    %1801 = vmatprep.subr.bf16.mxu0 0
    %1802 = vmatpush1.bf16.msra.mxu0 0
    %1803 = vmatprep.subr.bf16.mxu0 0
    %1804 = vmatpush1.bf16.msra.mxu0 0
    %1805 = vmatprep.subr.bf16.mxu0 0
    %1806 = vmatpush1.bf16.msra.mxu0 0
    %1807 = vmatprep.subr.bf16.mxu0 0
    %1808 = vmatpush1.bf16.msra.mxu0 0
    %1809 = vmatprep.subr.bf16.mxu0 0
    %1810 = vmatpush1.bf16.msra.mxu0 0
    %1811 = vmatprep.mubr.bf16.mxu0 0
    %1812 = vmatmul.mubr.bf16.gmra.mrb[0].mxu0 %v1725
    %v1813 = vpop.f32.mrb[0].mxu0
    %v1814 = vadd.f32 %v1730, %v1813
    %v1815 = vpop.f32.mrb[0].mxu0
    %v1816 = vpop.f32.mrb[0].mxu0
    %v1817 = vadd.f32 %v1730, %v1816
    %v1818 = vpop.f32.mrb[0].mxu0
    %1819 = vmatprep.mubr.bf16.mxu0 0
    %1820 = vmatmul.mubr.bf16.gmra.mrb[0].mxu0 %v1726
    %v1821 = vpop.f32.mrb[0].mxu0
    %v1822 = vadd.f32 %v1730, %v1821
    %v1823 = vpop.f32.mrb[0].mxu0
    %v1824 = vpop.f32.mrb[0].mxu0
    %v1825 = vadd.f32 %v1730, %v1824
    %v1826 = vpop.f32.mrb[0].mxu0
    %1827 = vdwg.mxu0
    %v1828 = vadd.f32 %v1814, %v1817
    %v1829 = vadd.f32 %v1828, %v1822
    %v1830 = vadd.f32 %v1829, %v1825
    %v1831 = vrot.slane %v1830, 4
    %v1832 = vadd.f32 %v1830, %v1831
    %v1833 = vrot.slane %v1832, 2
    %v1834 = vadd.f32 %v1832, %v1833
    %v1835 = vrot.slane %v1834, 1
    %v1836 = vadd.f32 %v1834, %v1835
    %v1837 = vmul.f32 %v1836, 0.03125
    %v1838 = vsub.f32 %v1814, %v1837
    %v1839 = vsub.f32 %v1817, %v1837
    %v1840 = vsub.f32 %v1822, %v1837
    %v1841 = vsub.f32 %v1825, %v1837
    %v1842 = vmul.f32 %v1838, %v1838
    %v1843 = vmul.f32 %v1839, %v1839
    %v1844 = vmul.f32 %v1840, %v1840
    %v1845 = vmul.f32 %v1841, %v1841
    %v1846 = vadd.f32 %v1842, %v1843
    %v1847 = vadd.f32 %v1846, %v1844
    %v1848 = vadd.f32 %v1847, %v1845
    %v1849 = vrot.slane %v1848, 4
    %v1850 = vadd.f32 %v1848, %v1849
    %v1851 = vrot.slane %v1850, 2
    %v1852 = vadd.f32 %v1850, %v1851
    %v1853 = vrot.slane %v1852, 1
    %v1854 = vadd.f32 %v1852, %v1853
    %v1855 = vmul.f32 %v1854, 0.03125
    %v1856 = vadd.f32 %v1855, 0.8
    %v1857 = vrsqrt.pop %v1856
    %v1858 = vmul.f32 %v1838, %v1857
    %v1859 = vmul.f32 %v1839, %v1857
    %v1860 = vmul.f32 %v1840, %v1857
    %v1861 = vmul.f32 %v1841, %v1857
    %v1862 = vlaneseq
    %v1863 = vshrl.u32 %v1862, 7
    %v1864 = vsub.s32 2, %v1863
    %v1865 = vrot.slane %v50, %v1864
    %v1866 = vmul.f32 %v1858, %v1865
    %v1867 = vmul.f32 %v1859, %v1865
    %v1868 = vmul.f32 %v1860, %v1865
    %v1869 = vmul.f32 %v1861, %v1865
    %v1870 = vlaneseq
    %v1871 = vshrl.u32 %v1870, 7
    %v1872 = vsub.s32 0, %v1871
    %v1873 = vrot.slane %v52, %v1872
    %v1874 = vadd.f32 %v1866, %v1873
    %v1875 = vadd.f32 %v1867, %v1873
    %v1876 = vadd.f32 %v1868, %v1873
    %v1877 = vadd.f32 %v1869, %v1873
    %vm1878 = vcmp.gt.f32.partialorder %v1874, 0.0
    %vm1879 = vcmp.gt.f32.partialorder %v1875, 0.0
    %vm1880 = vcmp.gt.f32.partialorder %v1876, 0.0
    %vm1881 = vcmp.gt.f32.partialorder %v1877, 0.0
    %v1882 = vmul.f32 %v1874, 0.2
    %v1883 = vmul.f32 %v1875, 0.2
    %v1884 = vmul.f32 %v1876, 0.2
    %v1885 = vmul.f32 %v1877, 0.2
    %v1886 = vsel %vm1878, %v1874, %v1882
    %v1887 = vsel %vm1879, %v1875, %v1883
    %v1888 = vsel %vm1880, %v1876, %v1884
    %v1889 = vsel %vm1881, %v1877, %v1885
    %v1890 = vld [vmem:[#allocation2 + $0x300] sm:$0xf]
    %v1891 = vld [vmem:[#allocation2 + $0x304] sm:$0xf]
    %v1892 = vld [vmem:[#allocation2 + $0x308] sm:$0xf]
    %v1893 = vld [vmem:[#allocation2 + $0x30c] sm:$0xf]
    %v1894 = vld [vmem:[#allocation2 + $0x310] sm:$0xf]
    %v1895 = vld [vmem:[#allocation2 + $0x314] sm:$0xf]
    %v1896 = vld [vmem:[#allocation2 + $0x318] sm:$0xf]
    %v1897 = vld [vmem:[#allocation2 + $0x31c] sm:$0xf]
    %v1898 = vld [vmem:[#allocation2 + $0x320] sm:$0xf]
    %v1899 = vld [vmem:[#allocation2 + $0x324] sm:$0xf]
    %v1900 = vld [vmem:[#allocation2 + $0x328] sm:$0xf]
    %v1901 = vld [vmem:[#allocation2 + $0x32c] sm:$0xf]
    %v1902 = vld [vmem:[#allocation2 + $0x330] sm:$0xf]
    %v1903 = vld [vmem:[#allocation2 + $0x334] sm:$0xf]
    %v1904 = vld [vmem:[#allocation2 + $0x338] sm:$0xf]
    %v1905 = vld [vmem:[#allocation2 + $0x33c] sm:$0xf]
    %v1906 = vpack.c.bf16 %v1887, %v1886
    %v1907 = vpack.c.bf16 %v1889, %v1888
    %v1908 = vlaneseq
    %v1909 = vshrl.u32 %v1908, 7
    %v1910 = vsub.s32 4, %v1909
    %v1911 = vrot.slane %v48, %v1910
    %v1928 = vunpack.c.l.b16 %v1890
    %v1929 = vunpack.c.l.b16 %v1891
    %v1930 = vunpack.c.l.b16 %v1892
    %v1931 = vunpack.c.l.b16 %v1893
    %v1932 = vunpack.c.l.b16 %v1894
    %v1933 = vunpack.c.l.b16 %v1895
    %v1934 = vunpack.c.l.b16 %v1896
    %v1935 = vunpack.c.l.b16 %v1897
    %v1936 = vunpack.c.l.b16 %v1898
    %v1937 = vunpack.c.l.b16 %v1899
    %v1938 = vunpack.c.l.b16 %v1900
    %v1939 = vunpack.c.l.b16 %v1901
    %v1940 = vunpack.c.l.b16 %v1902
    %v1941 = vunpack.c.l.b16 %v1903
    %v1942 = vunpack.c.l.b16 %v1904
    %v1943 = vunpack.c.l.b16 %v1905
    %v1944 = vpack.c.b16 %v1929, %v1928
    %v1945 = vpack.c.b16 %v1931, %v1930
    %v1946 = vpack.c.b16 %v1933, %v1932
    %v1947 = vpack.c.b16 %v1935, %v1934
    %v1948 = vpack.c.b16 %v1937, %v1936
    %v1949 = vpack.c.b16 %v1939, %v1938
    %v1950 = vpack.c.b16 %v1941, %v1940
    %v1951 = vpack.c.b16 %v1943, %v1942
    %1960 = vmatprep.subr.bf16.mxu0 0
    %1961 = vmatpush1.bf16.msra.mxu0 %v1944
    %1962 = vmatprep.subr.bf16.mxu0 0
    %1963 = vmatpush1.bf16.msra.mxu0 %v1945
    %1964 = vmatprep.subr.bf16.mxu0 0
    %1965 = vmatpush1.bf16.msra.mxu0 %v1946
    %1966 = vmatprep.subr.bf16.mxu0 0
    %1967 = vmatpush1.bf16.msra.mxu0 %v1947
    %1968 = vmatprep.subr.bf16.mxu0 0
    %1969 = vmatpush1.bf16.msra.mxu0 %v1948
    %1970 = vmatprep.subr.bf16.mxu0 0
    %1971 = vmatpush1.bf16.msra.mxu0 %v1949
    %1972 = vmatprep.subr.bf16.mxu0 0
    %1973 = vmatpush1.bf16.msra.mxu0 %v1950
    %1974 = vmatprep.subr.bf16.mxu0 0
    %1975 = vmatpush1.bf16.msra.mxu0 %v1951
    %1976 = vmatprep.subr.bf16.mxu0 0
    %1977 = vmatpush1.bf16.msra.mxu0 0
    %1978 = vmatprep.subr.bf16.mxu0 0
    %1979 = vmatpush1.bf16.msra.mxu0 0
    %1980 = vmatprep.subr.bf16.mxu0 0
    %1981 = vmatpush1.bf16.msra.mxu0 0
    %1982 = vmatprep.subr.bf16.mxu0 0
    %1983 = vmatpush1.bf16.msra.mxu0 0
    %1984 = vmatprep.subr.bf16.mxu0 0
    %1985 = vmatpush1.bf16.msra.mxu0 0
    %1986 = vmatprep.subr.bf16.mxu0 0
    %1987 = vmatpush1.bf16.msra.mxu0 0
    %1988 = vmatprep.subr.bf16.mxu0 0
    %1989 = vmatpush1.bf16.msra.mxu0 0
    %1990 = vmatprep.subr.bf16.mxu0 0
    %1991 = vmatpush1.bf16.msra.mxu0 0
    %1992 = vmatprep.mubr.bf16.mxu0 0
    %1993 = vmatmul.mubr.bf16.gmra.mrb[0].mxu0 %v1906
    %v1994 = vpop.f32.mrb[0].mxu0
    %v1995 = vadd.f32 %v1911, %v1994
    %v1996 = vpop.f32.mrb[0].mxu0
    %v1997 = vpop.f32.mrb[0].mxu0
    %v1998 = vadd.f32 %v1911, %v1997
    %v1999 = vpop.f32.mrb[0].mxu0
    %2000 = vmatprep.mubr.bf16.mxu0 0
    %2001 = vmatmul.mubr.bf16.gmra.mrb[0].mxu0 %v1907
    %v2002 = vpop.f32.mrb[0].mxu0
    %v2003 = vadd.f32 %v1911, %v2002
    %v2004 = vpop.f32.mrb[0].mxu0
    %v2005 = vpop.f32.mrb[0].mxu0
    %v2006 = vadd.f32 %v1911, %v2005
    %v2007 = vpop.f32.mrb[0].mxu0
    %2008 = vdwg.mxu0
    %v2009 = vadd.f32 %v1995, %v1998
    %v2010 = vadd.f32 %v2009, %v2003
    %v2011 = vadd.f32 %v2010, %v2006
    %v2012 = vrot.slane %v2011, 4
    %v2013 = vadd.f32 %v2011, %v2012
    %v2014 = vrot.slane %v2013, 2
    %v2015 = vadd.f32 %v2013, %v2014
    %v2016 = vrot.slane %v2015, 1
    %v2017 = vadd.f32 %v2015, %v2016
    %v2018 = vmul.f32 %v2017, 0.03125
    %v2019 = vsub.f32 %v1995, %v2018
    %v2020 = vsub.f32 %v1998, %v2018
    %v2021 = vsub.f32 %v2003, %v2018
    %v2022 = vsub.f32 %v2006, %v2018
    %v2023 = vmul.f32 %v2019, %v2019
    %v2024 = vmul.f32 %v2020, %v2020
    %v2025 = vmul.f32 %v2021, %v2021
    %v2026 = vmul.f32 %v2022, %v2022
    %v2027 = vadd.f32 %v2023, %v2024
    %v2028 = vadd.f32 %v2027, %v2025
    %v2029 = vadd.f32 %v2028, %v2026
    %v2030 = vrot.slane %v2029, 4
    %v2031 = vadd.f32 %v2029, %v2030
    %v2032 = vrot.slane %v2031, 2
    %v2033 = vadd.f32 %v2031, %v2032
    %v2034 = vrot.slane %v2033, 1
    %v2035 = vadd.f32 %v2033, %v2034
    %v2036 = vmul.f32 %v2035, 0.03125
    %v2037 = vadd.f32 %v2036, 0.8
    %v2038 = vrsqrt.pop %v2037
    %v2039 = vmul.f32 %v2019, %v2038
    %v2040 = vmul.f32 %v2020, %v2038
    %v2041 = vmul.f32 %v2021, %v2038
    %v2042 = vmul.f32 %v2022, %v2038
    %v2043 = vlaneseq
    %v2044 = vshrl.u32 %v2043, 7
    %v2045 = vsub.s32 3, %v2044
    %v2046 = vrot.slane %v50, %v2045
    %v2047 = vmul.f32 %v2039, %v2046
    %v2048 = vmul.f32 %v2040, %v2046
    %v2049 = vmul.f32 %v2041, %v2046
    %v2050 = vmul.f32 %v2042, %v2046
    %v2051 = vlaneseq
    %v2052 = vshrl.u32 %v2051, 7
    %v2053 = vsub.s32 1, %v2052
    %v2054 = vrot.slane %v52, %v2053
    %v2055 = vadd.f32 %v2047, %v2054
    %v2056 = vadd.f32 %v2048, %v2054
    %v2057 = vadd.f32 %v2049, %v2054
    %v2058 = vadd.f32 %v2050, %v2054
    %vm2059 = vcmp.gt.f32.partialorder %v2055, 0.0
    %vm2060 = vcmp.gt.f32.partialorder %v2056, 0.0
    %vm2061 = vcmp.gt.f32.partialorder %v2057, 0.0
    %vm2062 = vcmp.gt.f32.partialorder %v2058, 0.0
    %v2063 = vmul.f32 %v2055, 0.2
    %v2064 = vmul.f32 %v2056, 0.2
    %v2065 = vmul.f32 %v2057, 0.2
    %v2066 = vmul.f32 %v2058, 0.2
    %v2067 = vsel %vm2059, %v2055, %v2063
    %v2068 = vsel %vm2060, %v2056, %v2064
    %v2069 = vsel %vm2061, %v2057, %v2065
    %v2070 = vsel %vm2062, %v2058, %v2066
    %v2071 = vld [vmem:[#allocation2 + $0x340] sm:$0xf]
    %v2072 = vld [vmem:[#allocation2 + $0x344] sm:$0xf]
    %v2073 = vld [vmem:[#allocation2 + $0x348] sm:$0xf]
    %v2074 = vld [vmem:[#allocation2 + $0x34c] sm:$0xf]
    %v2075 = vld [vmem:[#allocation2 + $0x350] sm:$0xf]
    %v2076 = vld [vmem:[#allocation2 + $0x354] sm:$0xf]
    %v2077 = vld [vmem:[#allocation2 + $0x358] sm:$0xf]
    %v2078 = vld [vmem:[#allocation2 + $0x35c] sm:$0xf]
    %v2079 = vld [vmem:[#allocation2 + $0x360] sm:$0xf]
    %v2080 = vld [vmem:[#allocation2 + $0x364] sm:$0xf]
    %v2081 = vld [vmem:[#allocation2 + $0x368] sm:$0xf]
    %v2082 = vld [vmem:[#allocation2 + $0x36c] sm:$0xf]
    %v2083 = vld [vmem:[#allocation2 + $0x370] sm:$0xf]
    %v2084 = vld [vmem:[#allocation2 + $0x374] sm:$0xf]
    %v2085 = vld [vmem:[#allocation2 + $0x378] sm:$0xf]
    %v2086 = vld [vmem:[#allocation2 + $0x37c] sm:$0xf]
    %v2087 = vpack.c.bf16 %v2068, %v2067
    %v2088 = vpack.c.bf16 %v2070, %v2069
    %v2089 = vlaneseq
    %v2090 = vshrl.u32 %v2089, 7
    %v2091 = vsub.s32 5, %v2090
    %v2092 = vrot.slane %v48, %v2091
    %v2109 = vunpack.c.l.b16 %v2071
    %v2110 = vunpack.c.l.b16 %v2072
    %v2111 = vunpack.c.l.b16 %v2073
    %v2112 = vunpack.c.l.b16 %v2074
    %v2113 = vunpack.c.l.b16 %v2075
    %v2114 = vunpack.c.l.b16 %v2076
    %v2115 = vunpack.c.l.b16 %v2077
    %v2116 = vunpack.c.l.b16 %v2078
    %v2117 = vunpack.c.l.b16 %v2079
    %v2118 = vunpack.c.l.b16 %v2080
    %v2119 = vunpack.c.l.b16 %v2081
    %v2120 = vunpack.c.l.b16 %v2082
    %v2121 = vunpack.c.l.b16 %v2083
    %v2122 = vunpack.c.l.b16 %v2084
    %v2123 = vunpack.c.l.b16 %v2085
    %v2124 = vunpack.c.l.b16 %v2086
    %v2125 = vpack.c.b16 %v2110, %v2109
    %v2126 = vpack.c.b16 %v2112, %v2111
    %v2127 = vpack.c.b16 %v2114, %v2113
    %v2128 = vpack.c.b16 %v2116, %v2115
    %v2129 = vpack.c.b16 %v2118, %v2117
    %v2130 = vpack.c.b16 %v2120, %v2119
    %v2131 = vpack.c.b16 %v2122, %v2121
    %v2132 = vpack.c.b16 %v2124, %v2123
    %2141 = vmatprep.subr.bf16.mxu0 0
    %2142 = vmatpush1.bf16.msra.mxu0 %v2125
    %2143 = vmatprep.subr.bf16.mxu0 0
    %2144 = vmatpush1.bf16.msra.mxu0 %v2126
    %2145 = vmatprep.subr.bf16.mxu0 0
    %2146 = vmatpush1.bf16.msra.mxu0 %v2127
    %2147 = vmatprep.subr.bf16.mxu0 0
    %2148 = vmatpush1.bf16.msra.mxu0 %v2128
    %2149 = vmatprep.subr.bf16.mxu0 0
    %2150 = vmatpush1.bf16.msra.mxu0 %v2129
    %2151 = vmatprep.subr.bf16.mxu0 0
    %2152 = vmatpush1.bf16.msra.mxu0 %v2130
    %2153 = vmatprep.subr.bf16.mxu0 0
    %2154 = vmatpush1.bf16.msra.mxu0 %v2131
    %2155 = vmatprep.subr.bf16.mxu0 0
    %2156 = vmatpush1.bf16.msra.mxu0 %v2132
    %2157 = vmatprep.subr.bf16.mxu0 0
    %2158 = vmatpush1.bf16.msra.mxu0 0
    %2159 = vmatprep.subr.bf16.mxu0 0
    %2160 = vmatpush1.bf16.msra.mxu0 0
    %2161 = vmatprep.subr.bf16.mxu0 0
    %2162 = vmatpush1.bf16.msra.mxu0 0
    %2163 = vmatprep.subr.bf16.mxu0 0
    %2164 = vmatpush1.bf16.msra.mxu0 0
    %2165 = vmatprep.subr.bf16.mxu0 0
    %2166 = vmatpush1.bf16.msra.mxu0 0
    %2167 = vmatprep.subr.bf16.mxu0 0
    %2168 = vmatpush1.bf16.msra.mxu0 0
    %2169 = vmatprep.subr.bf16.mxu0 0
    %2170 = vmatpush1.bf16.msra.mxu0 0
    %2171 = vmatprep.subr.bf16.mxu0 0
    %2172 = vmatpush1.bf16.msra.mxu0 0
    %2173 = vmatprep.mubr.bf16.mxu0 0
    %2174 = vmatmul.mubr.bf16.gmra.mrb[0].mxu0 %v2087
    %v2175 = vpop.f32.mrb[0].mxu0
    %v2176 = vadd.f32 %v2092, %v2175
    %v2177 = vpop.f32.mrb[0].mxu0
    %v2178 = vpop.f32.mrb[0].mxu0
    %v2179 = vadd.f32 %v2092, %v2178
    %v2180 = vpop.f32.mrb[0].mxu0
    %2181 = vmatprep.mubr.bf16.mxu0 0
    %2182 = vmatmul.mubr.bf16.gmra.mrb[0].mxu0 %v2088
    %v2183 = vpop.f32.mrb[0].mxu0
    %v2184 = vadd.f32 %v2092, %v2183
    %v2185 = vpop.f32.mrb[0].mxu0
    %v2186 = vpop.f32.mrb[0].mxu0
    %v2187 = vadd.f32 %v2092, %v2186
    %v2188 = vpop.f32.mrb[0].mxu0
    %2189 = vdwg.mxu0
    %v2190 = vadd.f32 %v2176, %v2179
    %v2191 = vadd.f32 %v2190, %v2184
    %v2192 = vadd.f32 %v2191, %v2187
    %v2193 = vrot.slane %v2192, 4
    %v2194 = vadd.f32 %v2192, %v2193
    %v2195 = vrot.slane %v2194, 2
    %v2196 = vadd.f32 %v2194, %v2195
    %v2197 = vrot.slane %v2196, 1
    %v2198 = vadd.f32 %v2196, %v2197
    %v2199 = vmul.f32 %v2198, 0.03125
    %v2200 = vsub.f32 %v2176, %v2199
    %v2201 = vsub.f32 %v2179, %v2199
    %v2202 = vsub.f32 %v2184, %v2199
    %v2203 = vsub.f32 %v2187, %v2199
    %v2204 = vmul.f32 %v2200, %v2200
    %v2205 = vmul.f32 %v2201, %v2201
    %v2206 = vmul.f32 %v2202, %v2202
    %v2207 = vmul.f32 %v2203, %v2203
    %v2208 = vadd.f32 %v2204, %v2205
    %v2209 = vadd.f32 %v2208, %v2206
    %v2210 = vadd.f32 %v2209, %v2207
    %v2211 = vrot.slane %v2210, 4
    %v2212 = vadd.f32 %v2210, %v2211
    %v2213 = vrot.slane %v2212, 2
    %v2214 = vadd.f32 %v2212, %v2213
    %v2215 = vrot.slane %v2214, 1
    %v2216 = vadd.f32 %v2214, %v2215
    %v2217 = vmul.f32 %v2216, 0.03125
    %v2218 = vadd.f32 %v2217, 0.8
    %v2219 = vrsqrt.pop %v2218
    %v2220 = vmul.f32 %v2200, %v2219
    %v2221 = vmul.f32 %v2201, %v2219
    %v2222 = vmul.f32 %v2202, %v2219
    %v2223 = vmul.f32 %v2203, %v2219
    %v2224 = vlaneseq
    %v2225 = vshrl.u32 %v2224, 7
    %v2226 = vsub.s32 4, %v2225
    %v2227 = vrot.slane %v50, %v2226
    %v2228 = vmul.f32 %v2220, %v2227
    %v2229 = vmul.f32 %v2221, %v2227
    %v2230 = vmul.f32 %v2222, %v2227
    %v2231 = vmul.f32 %v2223, %v2227
    %v2232 = vlaneseq
    %v2233 = vshrl.u32 %v2232, 7
    %v2234 = vsub.s32 2, %v2233
    %v2235 = vrot.slane %v52, %v2234
    %v2236 = vadd.f32 %v2228, %v2235
    %v2237 = vadd.f32 %v2229, %v2235
    %v2238 = vadd.f32 %v2230, %v2235
    %v2239 = vadd.f32 %v2231, %v2235
    %vm2240 = vcmp.gt.f32.partialorder %v2236, 0.0
    %vm2241 = vcmp.gt.f32.partialorder %v2237, 0.0
    %vm2242 = vcmp.gt.f32.partialorder %v2238, 0.0
    %vm2243 = vcmp.gt.f32.partialorder %v2239, 0.0
    %v2244 = vmul.f32 %v2236, 0.2
    %v2245 = vmul.f32 %v2237, 0.2
    %v2246 = vmul.f32 %v2238, 0.2
    %v2247 = vmul.f32 %v2239, 0.2
    %v2248 = vsel %vm2240, %v2236, %v2244
    %v2249 = vsel %vm2241, %v2237, %v2245
    %v2250 = vsel %vm2242, %v2238, %v2246
    %v2251 = vsel %vm2243, %v2239, %v2247
    %v2252 = vld [vmem:[#allocation4 + $0x80] sm:$0xff]
    %v2253 = vld [vmem:[#allocation4 + $0x88] sm:$0xff]
    %v2254 = vld [vmem:[#allocation4 + $0x90] sm:$0xff]
    %v2255 = vld [vmem:[#allocation4 + $0x98] sm:$0xff]
    %v2256 = vld [vmem:[#allocation4 + $0xa0] sm:$0xff]
    %v2257 = vld [vmem:[#allocation4 + $0xa8] sm:$0xff]
    %v2258 = vld [vmem:[#allocation4 + $0xb0] sm:$0xff]
    %v2259 = vld [vmem:[#allocation4 + $0xb8] sm:$0xff]
    %v2260 = vld [vmem:[#allocation4 + $0xc0] sm:$0xff]
    %v2261 = vld [vmem:[#allocation4 + $0xc8] sm:$0xff]
    %v2262 = vld [vmem:[#allocation4 + $0xd0] sm:$0xff]
    %v2263 = vld [vmem:[#allocation4 + $0xd8] sm:$0xff]
    %v2264 = vld [vmem:[#allocation4 + $0xe0] sm:$0xff]
    %v2265 = vld [vmem:[#allocation4 + $0xe8] sm:$0xff]
    %v2266 = vld [vmem:[#allocation4 + $0xf0] sm:$0xff]
    %v2267 = vld [vmem:[#allocation4 + $0xf8] sm:$0xff]
    %v2268 = vpack.c.bf16 %v2249, %v2248
    %v2269 = vpack.c.bf16 %v2251, %v2250
    %v2270 = vlaneseq
    %v2271 = vshrl.u32 %v2270, 7
    %v2272 = vsub.s32 6, %v2271
    %v2273 = vrot.slane %v48, %v2272
    %v2274 = vlaneseq
    %v2275 = vshrl.u32 %v2274, 7
    %v2276 = vsub.s32 6, %v2275
    %v2277 = vrot.slane %v49, %v2276
    %v2294 = vunpack.c.l.b16 %v2252
    %v2295 = vunpack.c.h.b16 %v2252
    %v2296 = vunpack.c.l.b16 %v2253
    %v2297 = vunpack.c.h.b16 %v2253
    %v2298 = vunpack.c.l.b16 %v2254
    %v2299 = vunpack.c.h.b16 %v2254
    %v2300 = vunpack.c.l.b16 %v2255
    %v2301 = vunpack.c.h.b16 %v2255
    %v2302 = vunpack.c.l.b16 %v2256
    %v2303 = vunpack.c.h.b16 %v2256
    %v2304 = vunpack.c.l.b16 %v2257
    %v2305 = vunpack.c.h.b16 %v2257
    %v2306 = vunpack.c.l.b16 %v2258
    %v2307 = vunpack.c.h.b16 %v2258
    %v2308 = vunpack.c.l.b16 %v2259
    %v2309 = vunpack.c.h.b16 %v2259
    %v2310 = vunpack.c.l.b16 %v2260
    %v2311 = vunpack.c.h.b16 %v2260
    %v2312 = vunpack.c.l.b16 %v2261
    %v2313 = vunpack.c.h.b16 %v2261
    %v2314 = vunpack.c.l.b16 %v2262
    %v2315 = vunpack.c.h.b16 %v2262
    %v2316 = vunpack.c.l.b16 %v2263
    %v2317 = vunpack.c.h.b16 %v2263
    %v2318 = vunpack.c.l.b16 %v2264
    %v2319 = vunpack.c.h.b16 %v2264
    %v2320 = vunpack.c.l.b16 %v2265
    %v2321 = vunpack.c.h.b16 %v2265
    %v2322 = vunpack.c.l.b16 %v2266
    %v2323 = vunpack.c.h.b16 %v2266
    %v2324 = vunpack.c.l.b16 %v2267
    %v2325 = vunpack.c.h.b16 %v2267
    %v2326 = vpack.c.b16 %v2296, %v2294
    %v2327 = vpack.c.b16 %v2297, %v2295
    %v2328 = vpack.c.b16 %v2300, %v2298
    %v2329 = vpack.c.b16 %v2301, %v2299
    %v2330 = vpack.c.b16 %v2304, %v2302
    %v2331 = vpack.c.b16 %v2305, %v2303
    %v2332 = vpack.c.b16 %v2308, %v2306
    %v2333 = vpack.c.b16 %v2309, %v2307
    %v2334 = vpack.c.b16 %v2312, %v2310
    %v2335 = vpack.c.b16 %v2313, %v2311
    %v2336 = vpack.c.b16 %v2316, %v2314
    %v2337 = vpack.c.b16 %v2317, %v2315
    %v2338 = vpack.c.b16 %v2320, %v2318
    %v2339 = vpack.c.b16 %v2321, %v2319
    %v2340 = vpack.c.b16 %v2324, %v2322
    %v2341 = vpack.c.b16 %v2325, %v2323
    %2358 = vmatprep.subr.bf16.mxu0 %v2327
    %2359 = vmatpush1.bf16.msra.mxu0 %v2326
    %2360 = vmatprep.subr.bf16.mxu0 %v2329
    %2361 = vmatpush1.bf16.msra.mxu0 %v2328
    %2362 = vmatprep.subr.bf16.mxu0 %v2331
    %2363 = vmatpush1.bf16.msra.mxu0 %v2330
    %2364 = vmatprep.subr.bf16.mxu0 %v2333
    %2365 = vmatpush1.bf16.msra.mxu0 %v2332
    %2366 = vmatprep.subr.bf16.mxu0 %v2335
    %2367 = vmatpush1.bf16.msra.mxu0 %v2334
    %2368 = vmatprep.subr.bf16.mxu0 %v2337
    %2369 = vmatpush1.bf16.msra.mxu0 %v2336
    %2370 = vmatprep.subr.bf16.mxu0 %v2339
    %2371 = vmatpush1.bf16.msra.mxu0 %v2338
    %2372 = vmatprep.subr.bf16.mxu0 %v2341
    %2373 = vmatpush1.bf16.msra.mxu0 %v2340
    %2374 = vmatprep.subr.bf16.mxu0 0
    %2375 = vmatpush1.bf16.msra.mxu0 0
    %2376 = vmatprep.subr.bf16.mxu0 0
    %2377 = vmatpush1.bf16.msra.mxu0 0
    %2378 = vmatprep.subr.bf16.mxu0 0
    %2379 = vmatpush1.bf16.msra.mxu0 0
    %2380 = vmatprep.subr.bf16.mxu0 0
    %2381 = vmatpush1.bf16.msra.mxu0 0
    %2382 = vmatprep.subr.bf16.mxu0 0
    %2383 = vmatpush1.bf16.msra.mxu0 0
    %2384 = vmatprep.subr.bf16.mxu0 0
    %2385 = vmatpush1.bf16.msra.mxu0 0
    %2386 = vmatprep.subr.bf16.mxu0 0
    %2387 = vmatpush1.bf16.msra.mxu0 0
    %2388 = vmatprep.subr.bf16.mxu0 0
    %2389 = vmatpush1.bf16.msra.mxu0 0
    %2390 = vmatprep.mubr.bf16.mxu0 0
    %2391 = vmatmul.mubr.bf16.gmra.mrb[0].mxu0 %v2268
    %v2392 = vpop.f32.mrb[0].mxu0
    %v2393 = vadd.f32 %v2273, %v2392
    %v2394 = vpop.f32.mrb[0].mxu0
    %v2395 = vadd.f32 %v2277, %v2394
    %v2396 = vpop.f32.mrb[0].mxu0
    %v2397 = vadd.f32 %v2273, %v2396
    %v2398 = vpop.f32.mrb[0].mxu0
    %v2399 = vadd.f32 %v2277, %v2398
    %2400 = vmatprep.mubr.bf16.mxu0 0
    %2401 = vmatmul.mubr.bf16.gmra.mrb[0].mxu0 %v2269
    %v2402 = vpop.f32.mrb[0].mxu0
    %v2403 = vadd.f32 %v2273, %v2402
    %v2404 = vpop.f32.mrb[0].mxu0
    %v2405 = vadd.f32 %v2277, %v2404
    %v2406 = vpop.f32.mrb[0].mxu0
    %v2407 = vadd.f32 %v2273, %v2406
    %v2408 = vpop.f32.mrb[0].mxu0
    %v2409 = vadd.f32 %v2277, %v2408
    %2410 = vdwg.mxu0
    %v2411 = vadd.f32 %v2393, %v2397
    %v2412 = vadd.f32 %v2411, %v2403
    %v2413 = vadd.f32 %v2412, %v2407
    %v2414 = vrot.slane %v2413, 4
    %v2415 = vadd.f32 %v2413, %v2414
    %v2416 = vrot.slane %v2415, 2
    %v2417 = vadd.f32 %v2415, %v2416
    %v2418 = vrot.slane %v2417, 1
    %v2419 = vadd.f32 %v2417, %v2418
    %v2420 = vadd.f32 %v2395, %v2399
    %v2421 = vadd.f32 %v2420, %v2405
    %v2422 = vadd.f32 %v2421, %v2409
    %v2423 = vrot.slane %v2422, 4
    %v2424 = vadd.f32 %v2422, %v2423
    %v2425 = vrot.slane %v2424, 2
    %v2426 = vadd.f32 %v2424, %v2425
    %v2427 = vrot.slane %v2426, 1
    %v2428 = vadd.f32 %v2426, %v2427
    %v2429 = vmul.f32 %v2419, 0.03125
    %v2430 = vmul.f32 %v2428, 0.03125
    %v2431 = vsub.f32 %v2393, %v2429
    %v2432 = vsub.f32 %v2395, %v2430
    %v2433 = vsub.f32 %v2397, %v2429
    %v2434 = vsub.f32 %v2399, %v2430
    %v2435 = vsub.f32 %v2403, %v2429
    %v2436 = vsub.f32 %v2405, %v2430
    %v2437 = vsub.f32 %v2407, %v2429
    %v2438 = vsub.f32 %v2409, %v2430
    %v2439 = vmul.f32 %v2431, %v2431
    %v2440 = vmul.f32 %v2432, %v2432
    %v2441 = vmul.f32 %v2433, %v2433
    %v2442 = vmul.f32 %v2434, %v2434
    %v2443 = vmul.f32 %v2435, %v2435
    %v2444 = vmul.f32 %v2436, %v2436
    %v2445 = vmul.f32 %v2437, %v2437
    %v2446 = vmul.f32 %v2438, %v2438
    %v2447 = vadd.f32 %v2439, %v2441
    %v2448 = vadd.f32 %v2447, %v2443
    %v2449 = vadd.f32 %v2448, %v2445
    %v2450 = vrot.slane %v2449, 4
    %v2451 = vadd.f32 %v2449, %v2450
    %v2452 = vrot.slane %v2451, 2
    %v2453 = vadd.f32 %v2451, %v2452
    %v2454 = vrot.slane %v2453, 1
    %v2455 = vadd.f32 %v2453, %v2454
    %v2456 = vadd.f32 %v2440, %v2442
    %v2457 = vadd.f32 %v2456, %v2444
    %v2458 = vadd.f32 %v2457, %v2446
    %v2459 = vrot.slane %v2458, 4
    %v2460 = vadd.f32 %v2458, %v2459
    %v2461 = vrot.slane %v2460, 2
    %v2462 = vadd.f32 %v2460, %v2461
    %v2463 = vrot.slane %v2462, 1
    %v2464 = vadd.f32 %v2462, %v2463
    %v2465 = vmul.f32 %v2455, 0.03125
    %v2466 = vmul.f32 %v2464, 0.03125
    %v2467 = vadd.f32 %v2465, 0.8
    %v2468 = vadd.f32 %v2466, 0.8
    %v2469 = vrsqrt.pop %v2467
    %v2470 = vrsqrt.pop %v2468
    %v2471 = vmul.f32 %v2431, %v2469
    %v2472 = vmul.f32 %v2432, %v2470
    %v2473 = vmul.f32 %v2433, %v2469
    %v2474 = vmul.f32 %v2434, %v2470
    %v2475 = vmul.f32 %v2435, %v2469
    %v2476 = vmul.f32 %v2436, %v2470
    %v2477 = vmul.f32 %v2437, %v2469
    %v2478 = vmul.f32 %v2438, %v2470
    %v2479 = vlaneseq
    %v2480 = vshrl.u32 %v2479, 7
    %v2481 = vsub.s32 5, %v2480
    %v2482 = vrot.slane %v50, %v2481
    %v2483 = vlaneseq
    %v2484 = vshrl.u32 %v2483, 7
    %v2485 = vsub.s32 5, %v2484
    %v2486 = vrot.slane %v51, %v2485
    %v2487 = vmul.f32 %v2471, %v2482
    %v2488 = vmul.f32 %v2472, %v2486
    %v2489 = vmul.f32 %v2473, %v2482
    %v2490 = vmul.f32 %v2474, %v2486
    %v2491 = vmul.f32 %v2475, %v2482
    %v2492 = vmul.f32 %v2476, %v2486
    %v2493 = vmul.f32 %v2477, %v2482
    %v2494 = vmul.f32 %v2478, %v2486
    %v2495 = vlaneseq
    %v2496 = vshrl.u32 %v2495, 7
    %v2497 = vsub.s32 3, %v2496
    %v2498 = vrot.slane %v52, %v2497
    %v2499 = vlaneseq
    %v2500 = vshrl.u32 %v2499, 7
    %v2501 = vsub.s32 3, %v2500
    %v2502 = vrot.slane %v53, %v2501
    %v2503 = vadd.f32 %v2487, %v2498
    %v2504 = vadd.f32 %v2488, %v2502
    %v2505 = vadd.f32 %v2489, %v2498
    %v2506 = vadd.f32 %v2490, %v2502
    %v2507 = vadd.f32 %v2491, %v2498
    %v2508 = vadd.f32 %v2492, %v2502
    %v2509 = vadd.f32 %v2493, %v2498
    %v2510 = vadd.f32 %v2494, %v2502
    %vm2511 = vcmp.gt.f32.partialorder %v2503, 0.0
    %vm2512 = vcmp.gt.f32.partialorder %v2504, 0.0
    %vm2513 = vcmp.gt.f32.partialorder %v2505, 0.0
    %vm2514 = vcmp.gt.f32.partialorder %v2506, 0.0
    %vm2515 = vcmp.gt.f32.partialorder %v2507, 0.0
    %vm2516 = vcmp.gt.f32.partialorder %v2508, 0.0
    %vm2517 = vcmp.gt.f32.partialorder %v2509, 0.0
    %vm2518 = vcmp.gt.f32.partialorder %v2510, 0.0
    %v2519 = vmul.f32 %v2503, 0.2
    %v2520 = vmul.f32 %v2504, 0.2
    %v2521 = vmul.f32 %v2505, 0.2
    %v2522 = vmul.f32 %v2506, 0.2
    %v2523 = vmul.f32 %v2507, 0.2
    %v2524 = vmul.f32 %v2508, 0.2
    %v2525 = vmul.f32 %v2509, 0.2
    %v2526 = vmul.f32 %v2510, 0.2
    %v2527 = vsel %vm2511, %v2503, %v2519
    %v2528 = vsel %vm2512, %v2504, %v2520
    %v2529 = vsel %vm2513, %v2505, %v2521
    %v2530 = vsel %vm2514, %v2506, %v2522
    %v2531 = vsel %vm2515, %v2507, %v2523
    %v2532 = vsel %vm2516, %v2508, %v2524
    %v2533 = vsel %vm2517, %v2509, %v2525
    %v2534 = vsel %vm2518, %v2510, %v2526
    %v2535 = vld [vmem:[#allocation2 + $0x380] sm:$0xf]
    %v2536 = vld [vmem:[#allocation2 + $0x384] sm:$0xf]
    %v2537 = vld [vmem:[#allocation2 + $0x388] sm:$0xf]
    %v2538 = vld [vmem:[#allocation2 + $0x38c] sm:$0xf]
    %v2539 = vld [vmem:[#allocation2 + $0x390] sm:$0xf]
    %v2540 = vld [vmem:[#allocation2 + $0x394] sm:$0xf]
    %v2541 = vld [vmem:[#allocation2 + $0x398] sm:$0xf]
    %v2542 = vld [vmem:[#allocation2 + $0x39c] sm:$0xf]
    %v2543 = vld [vmem:[#allocation2 + $0x3a0] sm:$0xf]
    %v2544 = vld [vmem:[#allocation2 + $0x3a4] sm:$0xf]
    %v2545 = vld [vmem:[#allocation2 + $0x3a8] sm:$0xf]
    %v2546 = vld [vmem:[#allocation2 + $0x3ac] sm:$0xf]
    %v2547 = vld [vmem:[#allocation2 + $0x3b0] sm:$0xf]
    %v2548 = vld [vmem:[#allocation2 + $0x3b4] sm:$0xf]
    %v2549 = vld [vmem:[#allocation2 + $0x3b8] sm:$0xf]
    %v2550 = vld [vmem:[#allocation2 + $0x3bc] sm:$0xf]
    %v2551 = vld [vmem:[#allocation2 + $0x3c0] sm:$0xf]
    %v2552 = vld [vmem:[#allocation2 + $0x3c4] sm:$0xf]
    %v2553 = vld [vmem:[#allocation2 + $0x3c8] sm:$0xf]
    %v2554 = vld [vmem:[#allocation2 + $0x3cc] sm:$0xf]
    %v2555 = vld [vmem:[#allocation2 + $0x3d0] sm:$0xf]
    %v2556 = vld [vmem:[#allocation2 + $0x3d4] sm:$0xf]
    %v2557 = vld [vmem:[#allocation2 + $0x3d8] sm:$0xf]
    %v2558 = vld [vmem:[#allocation2 + $0x3dc] sm:$0xf]
    %v2559 = vld [vmem:[#allocation2 + $0x3e0] sm:$0xf]
    %v2560 = vld [vmem:[#allocation2 + $0x3e4] sm:$0xf]
    %v2561 = vld [vmem:[#allocation2 + $0x3e8] sm:$0xf]
    %v2562 = vld [vmem:[#allocation2 + $0x3ec] sm:$0xf]
    %v2563 = vld [vmem:[#allocation2 + $0x3f0] sm:$0xf]
    %v2564 = vld [vmem:[#allocation2 + $0x3f4] sm:$0xf]
    %v2565 = vld [vmem:[#allocation2 + $0x3f8] sm:$0xf]
    %v2566 = vld [vmem:[#allocation2 + $0x3fc] sm:$0xf]
    %v2567 = vpack.c.bf16 %v2529, %v2527
    %v2568 = vpack.c.bf16 %v2530, %v2528
    %v2569 = vpack.c.bf16 %v2533, %v2531
    %v2570 = vpack.c.bf16 %v2534, %v2532
    %v2571 = vlaneseq
    %v2572 = vshrl.u32 %v2571, 7
    %v2573 = vsub.s32 7, %v2572
    %v2574 = vrot.slane %v48, %v2573
    %v2607 = vunpack.c.l.b16 %v2535
    %v2608 = vunpack.c.l.b16 %v2536
    %v2609 = vunpack.c.l.b16 %v2537
    %v2610 = vunpack.c.l.b16 %v2538
    %v2611 = vunpack.c.l.b16 %v2539
    %v2612 = vunpack.c.l.b16 %v2540
    %v2613 = vunpack.c.l.b16 %v2541
    %v2614 = vunpack.c.l.b16 %v2542
    %v2615 = vunpack.c.l.b16 %v2543
    %v2616 = vunpack.c.l.b16 %v2544
    %v2617 = vunpack.c.l.b16 %v2545
    %v2618 = vunpack.c.l.b16 %v2546
    %v2619 = vunpack.c.l.b16 %v2547
    %v2620 = vunpack.c.l.b16 %v2548
    %v2621 = vunpack.c.l.b16 %v2549
    %v2622 = vunpack.c.l.b16 %v2550
    %v2623 = vunpack.c.l.b16 %v2551
    %v2624 = vunpack.c.l.b16 %v2552
    %v2625 = vunpack.c.l.b16 %v2553
    %v2626 = vunpack.c.l.b16 %v2554
    %v2627 = vunpack.c.l.b16 %v2555
    %v2628 = vunpack.c.l.b16 %v2556
    %v2629 = vunpack.c.l.b16 %v2557
    %v2630 = vunpack.c.l.b16 %v2558
    %v2631 = vunpack.c.l.b16 %v2559
    %v2632 = vunpack.c.l.b16 %v2560
    %v2633 = vunpack.c.l.b16 %v2561
    %v2634 = vunpack.c.l.b16 %v2562
    %v2635 = vunpack.c.l.b16 %v2563
    %v2636 = vunpack.c.l.b16 %v2564
    %v2637 = vunpack.c.l.b16 %v2565
    %v2638 = vunpack.c.l.b16 %v2566
    %v2639 = vpack.c.b16 %v2608, %v2607
    %v2640 = vpack.c.b16 %v2610, %v2609
    %v2641 = vpack.c.b16 %v2612, %v2611
    %v2642 = vpack.c.b16 %v2614, %v2613
    %v2643 = vpack.c.b16 %v2616, %v2615
    %v2644 = vpack.c.b16 %v2618, %v2617
    %v2645 = vpack.c.b16 %v2620, %v2619
    %v2646 = vpack.c.b16 %v2622, %v2621
    %v2647 = vpack.c.b16 %v2624, %v2623
    %v2648 = vpack.c.b16 %v2626, %v2625
    %v2649 = vpack.c.b16 %v2628, %v2627
    %v2650 = vpack.c.b16 %v2630, %v2629
    %v2651 = vpack.c.b16 %v2632, %v2631
    %v2652 = vpack.c.b16 %v2634, %v2633
    %v2653 = vpack.c.b16 %v2636, %v2635
    %v2654 = vpack.c.b16 %v2638, %v2637
    %2671 = vmatprep.subr.bf16.mxu0 0
    %2672 = vmatpush1.bf16.msra.mxu0 %v2639
    %2673 = vmatprep.subr.bf16.mxu0 0
    %2674 = vmatpush1.bf16.msra.mxu0 %v2640
    %2675 = vmatprep.subr.bf16.mxu0 0
    %2676 = vmatpush1.bf16.msra.mxu0 %v2641
    %2677 = vmatprep.subr.bf16.mxu0 0
    %2678 = vmatpush1.bf16.msra.mxu0 %v2642
    %2679 = vmatprep.subr.bf16.mxu0 0
    %2680 = vmatpush1.bf16.msra.mxu0 %v2643
    %2681 = vmatprep.subr.bf16.mxu0 0
    %2682 = vmatpush1.bf16.msra.mxu0 %v2644
    %2683 = vmatprep.subr.bf16.mxu0 0
    %2684 = vmatpush1.bf16.msra.mxu0 %v2645
    %2685 = vmatprep.subr.bf16.mxu0 0
    %2686 = vmatpush1.bf16.msra.mxu0 %v2646
    %2687 = vmatprep.subr.bf16.mxu0 0
    %2688 = vmatpush1.bf16.msra.mxu0 %v2647
    %2689 = vmatprep.subr.bf16.mxu0 0
    %2690 = vmatpush1.bf16.msra.mxu0 %v2648
    %2691 = vmatprep.subr.bf16.mxu0 0
    %2692 = vmatpush1.bf16.msra.mxu0 %v2649
    %2693 = vmatprep.subr.bf16.mxu0 0
    %2694 = vmatpush1.bf16.msra.mxu0 %v2650
    %2695 = vmatprep.subr.bf16.mxu0 0
    %2696 = vmatpush1.bf16.msra.mxu0 %v2651
    %2697 = vmatprep.subr.bf16.mxu0 0
    %2698 = vmatpush1.bf16.msra.mxu0 %v2652
    %2699 = vmatprep.subr.bf16.mxu0 0
    %2700 = vmatpush1.bf16.msra.mxu0 %v2653
    %2701 = vmatprep.subr.bf16.mxu0 0
    %2702 = vmatpush1.bf16.msra.mxu0 %v2654
    %2703 = vmatprep.mubr.bf16.mxu0 %v2568
    %2704 = vmatmul.mubr.bf16.gmra.mrb[0].mxu0 %v2567
    %v2705 = vpop.f32.mrb[0].mxu0
    %v2706 = vadd.f32 %v2574, %v2705
    %v2707 = vpop.f32.mrb[0].mxu0
    %v2708 = vpop.f32.mrb[0].mxu0
    %v2709 = vadd.f32 %v2574, %v2708
    %v2710 = vpop.f32.mrb[0].mxu0
    %2711 = vmatprep.mubr.bf16.mxu0 %v2570
    %2712 = vmatmul.mubr.bf16.gmra.mrb[0].mxu0 %v2569
    %v2713 = vpop.f32.mrb[0].mxu0
    %v2714 = vadd.f32 %v2574, %v2713
    %v2715 = vpop.f32.mrb[0].mxu0
    %v2716 = vpop.f32.mrb[0].mxu0
    %v2717 = vadd.f32 %v2574, %v2716
    %v2718 = vpop.f32.mrb[0].mxu0
    %2719 = vdwg.mxu0
    %v2720 = vtanh.pop %v2706
    %v2721 = vtanh.pop %v2709
    %v2722 = vtanh.pop %v2714
    %v2723 = vtanh.pop %v2717
    %2724 = vst [vmem:[%s4] sm:$0xff] %v2720
    %2725 = vst [vmem:[%s4 + $0x8] sm:$0xff] %v2721
    %2726 = vst [vmem:[%s4 + $0x10] sm:$0xff] %v2722
    %2727 = vst [vmem:[%s4 + $0x18] sm:$0xff] %v2723
    // Predicated region
    $region26: #{_forward_impl.1} parent=1 // pred_check
      _
    $region27: #{_forward_impl.1} parent=1 // pred_check_branch
      %2729 = sbr.rel (0) target = $region29
    $region28: #{_forward_impl.1} parent=1 // pred_region
      _
    $region29: #{_forward_impl.1} parent=1 // pred_fallthru
      _
    // Predicated region
    $region30: #{_forward_impl.1} parent=1 // pred_check
      _
    $region31: #{_forward_impl.1} parent=1 // pred_check_branch
      %2731 = sbr.rel (0) target = $region33
    $region32: #{_forward_impl.1} parent=1 // pred_region
      _
    $region33: #{_forward_impl.1} parent=1 // pred_fallthru
      _
    %2732 = vsyncpa [#allocation3], 1
    %2733 = vsyncpa [#allocation5], 1

// kernel: _forward_impl.1
$region0: #{_forward_impl.1}
  #allocation0 [shape = 'u32[]', space=smem, size = 0x4, offset = 0x4, fixed_abs, tag = 'smem constant byte address 0x4 - core index']
  #allocation1 [shape = 'u32[144,128]{1,0:T(1,128)}', space=vmem, size = 0x12000, scoped, tag = 'internal scratch']
  %s0 = inlined_call_operand.vmem [shape: f32[32,128], index: 0, kind: input, shape index: {}]
  %s1 = inlined_call_operand.hbm [shape: bf16[2048,128], index: 1, kind: input, shape index: {}]
  %s2 = inlined_call_operand.hbm [shape: bf16[256,256], index: 2, kind: input, shape index: {}]
  %s3 = inlined_call_operand.vmem [shape: f32[32,256], index: 3, kind: input, shape index: {}]
  %s4 = inlined_call_operand.vmem [shape: f32[32,128], index: 4, kind: output, shape index: {}]
  %s5 = sld [smem:[#allocation0]]
  $region34: #{_forward_impl.1} parent=0
    _
  %s7 = ssub.s32 1, %s5
  %s8 = scalar_select 0, %s7, %s5
  $region1: #{_forward_impl.1} parent=0
    #allocation2 [shape = 'u8[524288]{0}', space=vmem, size = 0x80000, scoped, tag = 'input window, operand 1, single buffered']
    #allocation3 [shape = 's32[1]{0}', space=sflag, size = 0x4, scoped, tag = 'scoped memory for _forward_impl.1']
    #allocation4 [shape = 'u8[131072]{0}', space=vmem, size = 0x20000, scoped, tag = 'input window, operand 2, single buffered']
    #allocation5 [shape = 's32[1]{0}', space=sflag, size = 0x4, scoped, tag = 'scoped memory for _forward_impl.1']
    %9 = vsyncpa [#allocation3], 0
    %10 = vsyncpa [#allocation5], 0
    // Predicated region
    $region2: #{_forward_impl.1} parent=1 // pred_check
      _
    $region3: #{_forward_impl.1} parent=1 // pred_check_branch
      %12 = sbr.rel (0) target = $region5
    $region4: #{_forward_impl.1} parent=1 // pred_region
      _
    $region5: #{_forward_impl.1} parent=1 // pred_fallthru
      _
    // Predicated region
    $region6: #{_forward_impl.1} parent=1 // pred_check
      _
    $region7: #{_forward_impl.1} parent=1 // pred_check_branch
      %14 = sbr.rel (0) target = $region9
    $region8: #{_forward_impl.1} parent=1 // pred_region
      %s16 = ssub.s32 16384, 16384
      %17 = vsyncadd [#allocation3], %s16
      %s18 = sshll.u32 [#allocation2], 4
      %s19 = int_to_ptr.vmem [resolvable:$true] %s18
      %24 = dma.hbm_to_vmem [thread:$0]  %s1, 16384, %s19, [#allocation3], 64, 64, 4
    $region9: #{_forward_impl.1} parent=1 // pred_fallthru
      _
    // Predicated region
    $region10: #{_forward_impl.1} parent=1 // pred_check
      _
    $region11: #{_forward_impl.1} parent=1 // pred_check_branch
      %26 = sbr.rel (0) target = $region13
    $region12: #{_forward_impl.1} parent=1 // pred_region
      %s28 = ssub.s32 4096, 4096
      %29 = vsyncadd [#allocation5], %s28
      %s30 = sshll.u32 [#allocation4], 4
      %s31 = int_to_ptr.vmem [resolvable:$true] %s30
      %36 = dma.hbm_to_vmem [thread:$0]  %s2, 4096, %s31, [#allocation5], 128, 128, 8
    $region13: #{_forward_impl.1} parent=1 // pred_fallthru
      _
    // Predicated region
    $region14: #{_forward_impl.1} parent=1 // pred_check
      _
    $region15: #{_forward_impl.1} parent=1 // pred_check_branch
      %38 = sbr.rel (0) target = $region17
    $region16: #{_forward_impl.1} parent=1 // pred_region
      _
    $region17: #{_forward_impl.1} parent=1 // pred_fallthru
      _
    // Predicated region
    $region18: #{_forward_impl.1} parent=1 // pred_check
      _
    $region19: #{_forward_impl.1} parent=1 // pred_check_branch
      %40 = sbr.rel (0) target = $region21
    $region20: #{_forward_impl.1} parent=1 // pred_region
      %41 = dma.done [#allocation3], 16384
    $region21: #{_forward_impl.1} parent=1 // pred_fallthru
      _
    // Predicated region
    $region22: #{_forward_impl.1} parent=1 // pred_check
      _
    $region23: #{_forward_impl.1} parent=1 // pred_check_branch
      %43 = sbr.rel (0) target = $region25
    $region24: #{_forward_impl.1} parent=1 // pred_region
      %44 = dma.done [#allocation5], 4096
    $region25: #{_forward_impl.1} parent=1 // pred_fallthru
      _
    %v46 = vld [vmem:[%s3] sm:$0xff]
    %v47 = vld [vmem:[%s3 + $0x8] sm:$0xff]
    %v48 = vld [vmem:[%s3 + $0x10] sm:$0xff]
    %v49 = vld [vmem:[%s3 + $0x18] sm:$0xff]
    %v50 = vld [vmem:[%s3 + $0x20] sm:$0xff]
    %v51 = vld [vmem:[%s3 + $0x28] sm:$0xff]
    %v52 = vld [vmem:[%s3 + $0x30] sm:$0xff]
    %v53 = vld [vmem:[%s3 + $0x38] sm:$0xff]
    %v54 = vld [vmem:[%s0] sm:$0xff]
    %v55 = vld [vmem:[%s0 + $0x8] sm:$0xff]
    %v56 = vld [vmem:[%s0 + $0x10] sm:$0xff]
    %v57 = vld [vmem:[%s0 + $0x18] sm:$0xff]
    %v58 = vld [vmem:[#allocation4] sm:$0xff]
    %v59 = vld [vmem:[#allocation4 + $0x8] sm:$0xff]
    %v60 = vld [vmem:[#allocation4 + $0x10] sm:$0xff]
    %v61 = vld [vmem:[#allocation4 + $0x18] sm:$0xff]
    %v62 = vld [vmem:[#allocation4 + $0x20] sm:$0xff]
    %v63 = vld [vmem:[#allocation4 + $0x28] sm:$0xff]
    %v64 = vld [vmem:[#allocation4 + $0x30] sm:$0xff]
    %v65 = vld [vmem:[#allocation4 + $0x38] sm:$0xff]
    %v66 = vld [vmem:[#allocation4 + $0x40] sm:$0xff]
    %v67 = vld [vmem:[#allocation4 + $0x48] sm:$0xff]
    %v68 = vld [vmem:[#allocation4 + $0x50] sm:$0xff]
    %v69 = vld [vmem:[#allocation4 + $0x58] sm:$0xff]
    %v70 = vld [vmem:[#allocation4 + $0x60] sm:$0xff]
    %v71 = vld [vmem:[#allocation4 + $0x68] sm:$0xff]
    %v72 = vld [vmem:[#allocation4 + $0x70] sm:$0xff]
    %v73 = vld [vmem:[#allocation4 + $0x78] sm:$0xff]
    %v74 = vpack.c.bf16 %v55, %v54
    %v75 = vpack.c.bf16 %v57, %v56
    %v76 = vlaneseq
    %v77 = vshrl.u32 %v76, 7
    %v78 = vsub.s32 0, %v77
    %v79 = vrot.slane %v46, %v78
    %v80 = vlaneseq
    %v81 = vshrl.u32 %v80, 7
    %v82 = vsub.s32 0, %v81
    %v83 = vrot.slane %v47, %v82
    %v100 = vunpack.c.l.b16 %v58
    %v101 = vunpack.c.h.b16 %v58
    %v102 = vunpack.c.l.b16 %v59
    %v103 = vunpack.c.h.b16 %v59
    %v104 = vunpack.c.l.b16 %v60
    %v105 = vunpack.c.h.b16 %v60
    %v106 = vunpack.c.l.b16 %v61
    %v107 = vunpack.c.h.b16 %v61
    %v108 = vunpack.c.l.b16 %v62
    %v109 = vunpack.c.h.b16 %v62
    %v110 = vunpack.c.l.b16 %v63
    %v111 = vunpack.c.h.b16 %v63
    %v112 = vunpack.c.l.b16 %v64
    %v113 = vunpack.c.h.b16 %v64
    %v114 = vunpack.c.l.b16 %v65
    %v115 = vunpack.c.h.b16 %v65
    %v116 = vunpack.c.l.b16 %v66
    %v117 = vunpack.c.h.b16 %v66
    %v118 = vunpack.c.l.b16 %v67
    %v119 = vunpack.c.h.b16 %v67
    %v120 = vunpack.c.l.b16 %v68
    %v121 = vunpack.c.h.b16 %v68
    %v122 = vunpack.c.l.b16 %v69
    %v123 = vunpack.c.h.b16 %v69
    %v124 = vunpack.c.l.b16 %v70
    %v125 = vunpack.c.h.b16 %v70
    %v126 = vunpack.c.l.b16 %v71
    %v127 = vunpack.c.h.b16 %v71
    %v128 = vunpack.c.l.b16 %v72
    %v129 = vunpack.c.h.b16 %v72
    %v130 = vunpack.c.l.b16 %v73
    %v131 = vunpack.c.h.b16 %v73
    %v132 = vpack.c.b16 %v102, %v100
    %v133 = vpack.c.b16 %v103, %v101
    %v134 = vpack.c.b16 %v106, %v104
    %v135 = vpack.c.b16 %v107, %v105
    %v136 = vpack.c.b16 %v110, %v108
    %v137 = vpack.c.b16 %v111, %v109
    %v138 = vpack.c.b16 %v114, %v112
    %v139 = vpack.c.b16 %v115, %v113
    %v140 = vpack.c.b16 %v118, %v116
    %v141 = vpack.c.b16 %v119, %v117
    %v142 = vpack.c.b16 %v122, %v120
    %v143 = vpack.c.b16 %v123, %v121
    %v144 = vpack.c.b16 %v126, %v124
    %v145 = vpack.c.b16 %v127, %v125
    %v146 = vpack.c.b16 %v130, %v128
    %v147 = vpack.c.b16 %v131, %v129
    %164 = vmatprep.subr.bf16.mxu0 %v133
    %165 = vmatpush1.bf16.msra.mxu0 %v132
    %166 = vmatprep.subr.bf16.mxu0 %v135
    %167 = vmatpush1.bf16.msra.mxu0 %v134
    %168 = vmatprep.subr.bf16.mxu0 %v137
    %169 = vmatpush1.bf16.msra.mxu0 %v136
    %170 = vmatprep.subr.bf16.mxu0 %v139
    %171 = vmatpush1.bf16.msra.mxu0 %v138
    %172 = vmatprep.subr.bf16.mxu0 %v141
    %173 = vmatpush1.bf16.msra.mxu0 %v140
    %174 = vmatprep.subr.bf16.mxu0 %v143
    %175 = vmatpush1.bf16.msra.mxu0 %v142
    %176 = vmatprep.subr.bf16.mxu0 %v145
    %177 = vmatpush1.bf16.msra.mxu0 %v144
    %178 = vmatprep.subr.bf16.mxu0 %v147
    %179 = vmatpush1.bf16.msra.mxu0 %v146
    %180 = vmatprep.subr.bf16.mxu0 0
    %181 = vmatpush1.bf16.msra.mxu0 0
    %182 = vmatprep.subr.bf16.mxu0 0
    %183 = vmatpush1.bf16.msra.mxu0 0
    %184 = vmatprep.subr.bf16.mxu0 0
    %185 = vmatpush1.bf16.msra.mxu0 0
    %186 = vmatprep.subr.bf16.mxu0 0
    %187 = vmatpush1.bf16.msra.mxu0 0
    %188 = vmatprep.subr.bf16.mxu0 0
    %189 = vmatpush1.bf16.msra.mxu0 0
    %190 = vmatprep.subr.bf16.mxu0 0
    %191 = vmatpush1.bf16.msra.mxu0 0
    %192 = vmatprep.subr.bf16.mxu0 0
    %193 = vmatpush1.bf16.msra.mxu0 0
    %194 = vmatprep.subr.bf16.mxu0 0
    %195 = vmatpush1.bf16.msra.mxu0 0
    %196 = vmatprep.mubr.bf16.mxu0 0
    %197 = vmatmul.mubr.bf16.gmra.mrb[0].mxu0 %v74
    %v198 = vpop.f32.mrb[0].mxu0
    %v199 = vadd.f32 %v79, %v198
    %v200 = vpop.f32.mrb[0].mxu0
    %v201 = vadd.f32 %v83, %v200
    %v202 = vpop.f32.mrb[0].mxu0
    %v203 = vadd.f32 %v79, %v202
    %v204 = vpop.f32.mrb[0].mxu0
    %v205 = vadd.f32 %v83, %v204
    %206 = vmatprep.mubr.bf16.mxu0 0
    %207 = vmatmul.mubr.bf16.gmra.mrb[0].mxu0 %v75
    %v208 = vpop.f32.mrb[0].mxu0
    %v209 = vadd.f32 %v79, %v208
    %v210 = vpop.f32.mrb[0].mxu0
    %v211 = vadd.f32 %v83, %v210
    %v212 = vpop.f32.mrb[0].mxu0
    %v213 = vadd.f32 %v79, %v212
    %v214 = vpop.f32.mrb[0].mxu0
    %v215 = vadd.f32 %v83, %v214
    %216 = vdwg.mxu0
    %vm217 = vcmp.gt.f32.partialorder %v199, 0.0
    %vm218 = vcmp.gt.f32.partialorder %v201, 0.0
    %vm219 = vcmp.gt.f32.partialorder %v203, 0.0
    %vm220 = vcmp.gt.f32.partialorder %v205, 0.0
    %vm221 = vcmp.gt.f32.partialorder %v209, 0.0
    %vm222 = vcmp.gt.f32.partialorder %v211, 0.0
    %vm223 = vcmp.gt.f32.partialorder %v213, 0.0
    %vm224 = vcmp.gt.f32.partialorder %v215, 0.0
    %v225 = vmul.f32 %v199, 0.2
    %v226 = vmul.f32 %v201, 0.2
    %v227 = vmul.f32 %v203, 0.2
    %v228 = vmul.f32 %v205, 0.2
    %v229 = vmul.f32 %v209, 0.2
    %v230 = vmul.f32 %v211, 0.2
    %v231 = vmul.f32 %v213, 0.2
    %v232 = vmul.f32 %v215, 0.2
    %v233 = vsel %vm217, %v199, %v225
    %v234 = vsel %vm218, %v201, %v226
    %v235 = vsel %vm219, %v203, %v227
    %v236 = vsel %vm220, %v205, %v228
    %v237 = vsel %vm221, %v209, %v229
    %v238 = vsel %vm222, %v211, %v230
    %v239 = vsel %vm223, %v213, %v231
    %v240 = vsel %vm224, %v215, %v232
    %v241 = vld [vmem:[#allocation2] sm:$0xf]
    %v242 = vld [vmem:[#allocation2 + $0x4] sm:$0xf]
    %v243 = vld [vmem:[#allocation2 + $0x8] sm:$0xf]
    %v244 = vld [vmem:[#allocation2 + $0xc] sm:$0xf]
    %v245 = vld [vmem:[#allocation2 + $0x10] sm:$0xf]
    %v246 = vld [vmem:[#allocation2 + $0x14] sm:$0xf]
    %v247 = vld [vmem:[#allocation2 + $0x18] sm:$0xf]
    %v248 = vld [vmem:[#allocation2 + $0x1c] sm:$0xf]
    %v249 = vld [vmem:[#allocation2 + $0x20] sm:$0xf]
    %v250 = vld [vmem:[#allocation2 + $0x24] sm:$0xf]
    %v251 = vld [vmem:[#allocation2 + $0x28] sm:$0xf]
    %v252 = vld [vmem:[#allocation2 + $0x2c] sm:$0xf]
    %v253 = vld [vmem:[#allocation2 + $0x30] sm:$0xf]
    %v254 = vld [vmem:[#allocation2 + $0x34] sm:$0xf]
    %v255 = vld [vmem:[#allocation2 + $0x38] sm:$0xf]
    %v256 = vld [vmem:[#allocation2 + $0x3c] sm:$0xf]
    %v257 = vld [vmem:[#allocation2 + $0x40] sm:$0xf]
    %v258 = vld [vmem:[#allocation2 + $0x44] sm:$0xf]
    %v259 = vld [vmem:[#allocation2 + $0x48] sm:$0xf]
    %v260 = vld [vmem:[#allocation2 + $0x4c] sm:$0xf]
    %v261 = vld [vmem:[#allocation2 + $0x50] sm:$0xf]
    %v262 = vld [vmem:[#allocation2 + $0x54] sm:$0xf]
    %v263 = vld [vmem:[#allocation2 + $0x58] sm:$0xf]
    %v264 = vld [vmem:[#allocation2 + $0x5c] sm:$0xf]
    %v265 = vld [vmem:[#allocation2 + $0x60] sm:$0xf]
    %v266 = vld [vmem:[#allocation2 + $0x64] sm:$0xf]
    %v267 = vld [vmem:[#allocation2 + $0x68] sm:$0xf]
    %v268 = vld [vmem:[#allocation2 + $0x6c] sm:$0xf]
    %v269 = vld [vmem:[#allocation2 + $0x70] sm:$0xf]
    %v270 = vld [vmem:[#allocation2 + $0x74] sm:$0xf]
    %v271 = vld [vmem:[#allocation2 + $0x78] sm:$0xf]
    %v272 = vld [vmem:[#allocation2 + $0x7c] sm:$0xf]
    %v273 = vpack.c.bf16 %v235, %v233
    %v274 = vpack.c.bf16 %v236, %v234
    %v275 = vpack.c.bf16 %v239, %v237
    %v276 = vpack.c.bf16 %v240, %v238
    %v277 = vlaneseq
    %v278 = vshrl.u32 %v277, 7
    %v279 = vsub.s32 1, %v278
    %v280 = vrot.slane %v46, %v279
    %v313 = vunpack.c.l.b16 %v241
    %v314 = vunpack.c.l.b16 %v242
    %v315 = vunpack.c.l.b16 %v243
    %v316 = vunpack.c.l.b16 %v244
    %v317 = vunpack.c.l.b16 %v245
    %v318 = vunpack.c.l.b16 %v246
    %v319 = vunpack.c.l.b16 %v247
    %v320 = vunpack.c.l.b16 %v248
    %v321 = vunpack.c.l.b16 %v249
    %v322 = vunpack.c.l.b16 %v250
    %v323 = vunpack.c.l.b16 %v251
    %v324 = vunpack.c.l.b16 %v252
    %v325 = vunpack.c.l.b16 %v253
    %v326 = vunpack.c.l.b16 %v254
    %v327 = vunpack.c.l.b16 %v255
    %v328 = vunpack.c.l.b16 %v256
    %v329 = vunpack.c.l.b16 %v257
    %v330 = vunpack.c.l.b16 %v258
    %v331 = vunpack.c.l.b16 %v259
    %v332 = vunpack.c.l.b16 %v260
    %v333 = vunpack.c.l.b16 %v261
    %v334 = vunpack.c.l.b16 %v262
    %v335 = vunpack.c.l.b16 %v263
    %v336 = vunpack.c.l.b16 %v264
    %v337 = vunpack.c.l.b16 %v265
    %v338 = vunpack.c.l.b16 %v266
    %v339 = vunpack.c.l.b16 %v267
    %v340 = vunpack.c.l.b16 %v268
    %v341 = vunpack.c.l.b16 %v269
    %v342 = vunpack.c.l.b16 %v270
    %v343 = vunpack.c.l.b16 %v271
    %v344 = vunpack.c.l.b16 %v272
    %v345 = vpack.c.b16 %v314, %v313
    %v346 = vpack.c.b16 %v316, %v315
    %v347 = vpack.c.b16 %v318, %v317
    %v348 = vpack.c.b16 %v320, %v319
    %v349 = vpack.c.b16 %v322, %v321
    %v350 = vpack.c.b16 %v324, %v323
    %v351 = vpack.c.b16 %v326, %v325
    %v352 = vpack.c.b16 %v328, %v327
    %v353 = vpack.c.b16 %v330, %v329
    %v354 = vpack.c.b16 %v332, %v331
    %v355 = vpack.c.b16 %v334, %v333
    %v356 = vpack.c.b16 %v336, %v335
    %v357 = vpack.c.b16 %v338, %v337
    %v358 = vpack.c.b16 %v340, %v339
    %v359 = vpack.c.b16 %v342, %v341
    %v360 = vpack.c.b16 %v344, %v343
    %377 = vmatprep.subr.bf16.mxu0 0
    %378 = vmatpush1.bf16.msra.mxu0 %v345
    %379 = vmatprep.subr.bf16.mxu0 0
    %380 = vmatpush1.bf16.msra.mxu0 %v346
    %381 = vmatprep.subr.bf16.mxu0 0
    %382 = vmatpush1.bf16.msra.mxu0 %v347
    %383 = vmatprep.subr.bf16.mxu0 0
    %384 = vmatpush1.bf16.msra.mxu0 %v348
    %385 = vmatprep.subr.bf16.mxu0 0
    %386 = vmatpush1.bf16.msra.mxu0 %v349
    %387 = vmatprep.subr.bf16.mxu0 0
    %388 = vmatpush1.bf16.msra.mxu0 %v350
    %389 = vmatprep.subr.bf16.mxu0 0
    %390 = vmatpush1.bf16.msra.mxu0 %v351
    %391 = vmatprep.subr.bf16.mxu0 0
    %392 = vmatpush1.bf16.msra.mxu0 %v352
    %393 = vmatprep.subr.bf16.mxu0 0
    %394 = vmatpush1.bf16.msra.mxu0 %v353
    %395 = vmatprep.subr.bf16.mxu0 0
    %396 = vmatpush1.bf16.msra.mxu0 %v354
    %397 = vmatprep.subr.bf16.mxu0 0
    %398 = vmatpush1.bf16.msra.mxu0 %v355
    %399 = vmatprep.subr.bf16.mxu0 0
    %400 = vmatpush1.bf16.msra.mxu0 %v356
    %401 = vmatprep.subr.bf16.mxu0 0
    %402 = vmatpush1.bf16.msra.mxu0 %v357
    %403 = vmatprep.subr.bf16.mxu0 0
    %404 = vmatpush1.bf16.msra.mxu0 %v358
    %405 = vmatprep.subr.bf16.mxu0 0
    %406 = vmatpush1.bf16.msra.mxu0 %v359
    %407 = vmatprep.subr.bf16.mxu0 0
    %408 = vmatpush1.bf16.msra.mxu0 %v360
    %409 = vmatprep.mubr.bf16.mxu0 %v274
    %410 = vmatmul.mubr.bf16.gmra.mrb[0].mxu0 %v273
    %v411 = vpop.f32.mrb[0].mxu0
    %v412 = vadd.f32 %v280, %v411
    %v413 = vpop.f32.mrb[0].mxu0
    %v414 = vpop.f32.mrb[0].mxu0
    %v415 = vadd.f32 %v280, %v414
    %v416 = vpop.f32.mrb[0].mxu0
    %417 = vmatprep.mubr.bf16.mxu0 %v276
    %418 = vmatmul.mubr.bf16.gmra.mrb[0].mxu0 %v275
    %v419 = vpop.f32.mrb[0].mxu0
    %v420 = vadd.f32 %v280, %v419
    %v421 = vpop.f32.mrb[0].mxu0
    %v422 = vpop.f32.mrb[0].mxu0
    %v423 = vadd.f32 %v280, %v422
    %v424 = vpop.f32.mrb[0].mxu0
    %425 = vdwg.mxu0
    %vm426 = vcmp.gt.f32.partialorder %v412, 0.0
    %vm427 = vcmp.gt.f32.partialorder %v415, 0.0
    %vm428 = vcmp.gt.f32.partialorder %v420, 0.0
    %vm429 = vcmp.gt.f32.partialorder %v423, 0.0
    %v430 = vmul.f32 %v412, 0.2
    %v431 = vmul.f32 %v415, 0.2
    %v432 = vmul.f32 %v420, 0.2
    %v433 = vmul.f32 %v423, 0.2
    %v434 = vsel %vm426, %v412, %v430
    %v435 = vsel %vm427, %v415, %v431
    %v436 = vsel %vm428, %v420, %v432
    %v437 = vsel %vm429, %v423, %v433
    %v438 = vld [vmem:[#allocation2 + $0x80] sm:$0xf]
    %v439 = vld [vmem:[#allocation2 + $0x84] sm:$0xf]
    %v440 = vld [vmem:[#allocation2 + $0x88] sm:$0xf]
    %v441 = vld [vmem:[#allocation2 + $0x8c] sm:$0xf]
    %v442 = vld [vmem:[#allocation2 + $0x90] sm:$0xf]
    %v443 = vld [vmem:[#allocation2 + $0x94] sm:$0xf]
    %v444 = vld [vmem:[#allocation2 + $0x98] sm:$0xf]
    %v445 = vld [vmem:[#allocation2 + $0x9c] sm:$0xf]
    %v446 = vld [vmem:[#allocation2 + $0xa0] sm:$0xf]
    %v447 = vld [vmem:[#allocation2 + $0xa4] sm:$0xf]
    %v448 = vld [vmem:[#allocation2 + $0xa8] sm:$0xf]
    %v449 = vld [vmem:[#allocation2 + $0xac] sm:$0xf]
    %v450 = vld [vmem:[#allocation2 + $0xb0] sm:$0xf]
    %v451 = vld [vmem:[#allocation2 + $0xb4] sm:$0xf]
    %v452 = vld [vmem:[#allocation2 + $0xb8] sm:$0xf]
    %v453 = vld [vmem:[#allocation2 + $0xbc] sm:$0xf]
    %v454 = vpack.c.bf16 %v435, %v434
    %v455 = vpack.c.bf16 %v437, %v436
    %v456 = vlaneseq
    %v457 = vshrl.u32 %v456, 7
    %v458 = vsub.s32 2, %v457
    %v459 = vrot.slane %v46, %v458
    %v476 = vunpack.c.l.b16 %v438
    %v477 = vunpack.c.l.b16 %v439
    %v478 = vunpack.c.l.b16 %v440
    %v479 = vunpack.c.l.b16 %v441
    %v480 = vunpack.c.l.b16 %v442
    %v481 = vunpack.c.l.b16 %v443
    %v482 = vunpack.c.l.b16 %v444
    %v483 = vunpack.c.l.b16 %v445
    %v484 = vunpack.c.l.b16 %v446
    %v485 = vunpack.c.l.b16 %v447
    %v486 = vunpack.c.l.b16 %v448
    %v487 = vunpack.c.l.b16 %v449
    %v488 = vunpack.c.l.b16 %v450
    %v489 = vunpack.c.l.b16 %v451
    %v490 = vunpack.c.l.b16 %v452
    %v491 = vunpack.c.l.b16 %v453
    %v492 = vpack.c.b16 %v477, %v476
    %v493 = vpack.c.b16 %v479, %v478
    %v494 = vpack.c.b16 %v481, %v480
    %v495 = vpack.c.b16 %v483, %v482
    %v496 = vpack.c.b16 %v485, %v484
    %v497 = vpack.c.b16 %v487, %v486
    %v498 = vpack.c.b16 %v489, %v488
    %v499 = vpack.c.b16 %v491, %v490
    %508 = vmatprep.subr.bf16.mxu0 0
    %509 = vmatpush1.bf16.msra.mxu0 %v492
    %510 = vmatprep.subr.bf16.mxu0 0
    %511 = vmatpush1.bf16.msra.mxu0 %v493
    %512 = vmatprep.subr.bf16.mxu0 0
    %513 = vmatpush1.bf16.msra.mxu0 %v494
    %514 = vmatprep.subr.bf16.mxu0 0
    %515 = vmatpush1.bf16.msra.mxu0 %v495
    %516 = vmatprep.subr.bf16.mxu0 0
    %517 = vmatpush1.bf16.msra.mxu0 %v496
    %518 = vmatprep.subr.bf16.mxu0 0
    %519 = vmatpush1.bf16.msra.mxu0 %v497
    %520 = vmatprep.subr.bf16.mxu0 0
    %521 = vmatpush1.bf16.msra.mxu0 %v498
    %522 = vmatprep.subr.bf16.mxu0 0
    %523 = vmatpush1.bf16.msra.mxu0 %v499
    %524 = vmatprep.subr.bf16.mxu0 0
    %525 = vmatpush1.bf16.msra.mxu0 0
    %526 = vmatprep.subr.bf16.mxu0 0
    %527 = vmatpush1.bf16.msra.mxu0 0
    %528 = vmatprep.subr.bf16.mxu0 0
    %529 = vmatpush1.bf16.msra.mxu0 0
    %530 = vmatprep.subr.bf16.mxu0 0
    %531 = vmatpush1.bf16.msra.mxu0 0
    %532 = vmatprep.subr.bf16.mxu0 0
    %533 = vmatpush1.bf16.msra.mxu0 0
    %534 = vmatprep.subr.bf16.mxu0 0
    %535 = vmatpush1.bf16.msra.mxu0 0
    %536 = vmatprep.subr.bf16.mxu0 0
    %537 = vmatpush1.bf16.msra.mxu0 0
    %538 = vmatprep.subr.bf16.mxu0 0
    %539 = vmatpush1.bf16.msra.mxu0 0
    %540 = vmatprep.mubr.bf16.mxu0 0
    %541 = vmatmul.mubr.bf16.gmra.mrb[0].mxu0 %v454
    %v542 = vpop.f32.mrb[0].mxu0
    %v543 = vadd.f32 %v459, %v542
    %v544 = vpop.f32.mrb[0].mxu0
    %v545 = vpop.f32.mrb[0].mxu0
    %v546 = vadd.f32 %v459, %v545
    %v547 = vpop.f32.mrb[0].mxu0
    %548 = vmatprep.mubr.bf16.mxu0 0
    %549 = vmatmul.mubr.bf16.gmra.mrb[0].mxu0 %v455
    %v550 = vpop.f32.mrb[0].mxu0
    %v551 = vadd.f32 %v459, %v550
    %v552 = vpop.f32.mrb[0].mxu0
    %v553 = vpop.f32.mrb[0].mxu0
    %v554 = vadd.f32 %v459, %v553
    %v555 = vpop.f32.mrb[0].mxu0
    %556 = vdwg.mxu0
    %vm557 = vcmp.gt.f32.partialorder %v543, 0.0
    %vm558 = vcmp.gt.f32.partialorder %v546, 0.0
    %vm559 = vcmp.gt.f32.partialorder %v551, 0.0
    %vm560 = vcmp.gt.f32.partialorder %v554, 0.0
    %v561 = vmul.f32 %v543, 0.2
    %v562 = vmul.f32 %v546, 0.2
    %v563 = vmul.f32 %v551, 0.2
    %v564 = vmul.f32 %v554, 0.2
    %v565 = vsel %vm557, %v543, %v561
    %v566 = vsel %vm558, %v546, %v562
    %v567 = vsel %vm559, %v551, %v563
    %v568 = vsel %vm560, %v554, %v564
    %v569 = vld [vmem:[#allocation2 + $0xc0] sm:$0xf]
    %v570 = vld [vmem:[#allocation2 + $0xc4] sm:$0xf]
    %v571 = vld [vmem:[#allocation2 + $0xc8] sm:$0xf]
    %v572 = vld [vmem:[#allocation2 + $0xcc] sm:$0xf]
    %v573 = vld [vmem:[#allocation2 + $0xd0] sm:$0xf]
    %v574 = vld [vmem:[#allocation2 + $0xd4] sm:$0xf]
    %v575 = vld [vmem:[#allocation2 + $0xd8] sm:$0xf]
    %v576 = vld [vmem:[#allocation2 + $0xdc] sm:$0xf]
    %v577 = vld [vmem:[#allocation2 + $0xe0] sm:$0xf]
    %v578 = vld [vmem:[#allocation2 + $0xe4] sm:$0xf]
    %v579 = vld [vmem:[#allocation2 + $0xe8] sm:$0xf]
    %v580 = vld [vmem:[#allocation2 + $0xec] sm:$0xf]
    %v581 = vld [vmem:[#allocation2 + $0xf0] sm:$0xf]
    %v582 = vld [vmem:[#allocation2 + $0xf4] sm:$0xf]
    %v583 = vld [vmem:[#allocation2 + $0xf8] sm:$0xf]
    %v584 = vld [vmem:[#allocation2 + $0xfc] sm:$0xf]
    %v585 = vpack.c.bf16 %v566, %v565
    %v586 = vpack.c.bf16 %v568, %v567
    %v587 = vlaneseq
    %v588 = vshrl.u32 %v587, 7
    %v589 = vsub.s32 3, %v588
    %v590 = vrot.slane %v46, %v589
    %v607 = vunpack.c.l.b16 %v569
    %v608 = vunpack.c.l.b16 %v570
    %v609 = vunpack.c.l.b16 %v571
    %v610 = vunpack.c.l.b16 %v572
    %v611 = vunpack.c.l.b16 %v573
    %v612 = vunpack.c.l.b16 %v574
    %v613 = vunpack.c.l.b16 %v575
    %v614 = vunpack.c.l.b16 %v576
    %v615 = vunpack.c.l.b16 %v577
    %v616 = vunpack.c.l.b16 %v578
    %v617 = vunpack.c.l.b16 %v579
    %v618 = vunpack.c.l.b16 %v580
    %v619 = vunpack.c.l.b16 %v581
    %v620 = vunpack.c.l.b16 %v582
    %v621 = vunpack.c.l.b16 %v583
    %v622 = vunpack.c.l.b16 %v584
    %v623 = vpack.c.b16 %v608, %v607
    %v624 = vpack.c.b16 %v610, %v609
    %v625 = vpack.c.b16 %v612, %v611
    %v626 = vpack.c.b16 %v614, %v613
    %v627 = vpack.c.b16 %v616, %v615
    %v628 = vpack.c.b16 %v618, %v617
    %v629 = vpack.c.b16 %v620, %v619
    %v630 = vpack.c.b16 %v622, %v621
    %639 = vmatprep.subr.bf16.mxu0 0
    %640 = vmatpush1.bf16.msra.mxu0 %v623
    %641 = vmatprep.subr.bf16.mxu0 0
    %642 = vmatpush1.bf16.msra.mxu0 %v624
    %643 = vmatprep.subr.bf16.mxu0 0
    %644 = vmatpush1.bf16.msra.mxu0 %v625
    %645 = vmatprep.subr.bf16.mxu0 0
    %646 = vmatpush1.bf16.msra.mxu0 %v626
    %647 = vmatprep.subr.bf16.mxu0 0
    %648 = vmatpush1.bf16.msra.mxu0 %v627
    %649 = vmatprep.subr.bf16.mxu0 0
    %650 = vmatpush1.bf16.msra.mxu0 %v628
    %651 = vmatprep.subr.bf16.mxu0 0
    %652 = vmatpush1.bf16.msra.mxu0 %v629
    %653 = vmatprep.subr.bf16.mxu0 0
    %654 = vmatpush1.bf16.msra.mxu0 %v630
    %655 = vmatprep.subr.bf16.mxu0 0
    %656 = vmatpush1.bf16.msra.mxu0 0
    %657 = vmatprep.subr.bf16.mxu0 0
    %658 = vmatpush1.bf16.msra.mxu0 0
    %659 = vmatprep.subr.bf16.mxu0 0
    %660 = vmatpush1.bf16.msra.mxu0 0
    %661 = vmatprep.subr.bf16.mxu0 0
    %662 = vmatpush1.bf16.msra.mxu0 0
    %663 = vmatprep.subr.bf16.mxu0 0
    %664 = vmatpush1.bf16.msra.mxu0 0
    %665 = vmatprep.subr.bf16.mxu0 0
    %666 = vmatpush1.bf16.msra.mxu0 0
    %667 = vmatprep.subr.bf16.mxu0 0
    %668 = vmatpush1.bf16.msra.mxu0 0
    %669 = vmatprep.subr.bf16.mxu0 0
    %670 = vmatpush1.bf16.msra.mxu0 0
    %671 = vmatprep.mubr.bf16.mxu0 0
    %672 = vmatmul.mubr.bf16.gmra.mrb[0].mxu0 %v585
    %v673 = vpop.f32.mrb[0].mxu0
    %v674 = vadd.f32 %v590, %v673
    %v675 = vpop.f32.mrb[0].mxu0
    %v676 = vpop.f32.mrb[0].mxu0
    %v677 = vadd.f32 %v590, %v676
    %v678 = vpop.f32.mrb[0].mxu0
    %679 = vmatprep.mubr.bf16.mxu0 0
    %680 = vmatmul.mubr.bf16.gmra.mrb[0].mxu0 %v586
    %v681 = vpop.f32.mrb[0].mxu0
    %v682 = vadd.f32 %v590, %v681
    %v683 = vpop.f32.mrb[0].mxu0
    %v684 = vpop.f32.mrb[0].mxu0
    %v685 = vadd.f32 %v590, %v684
    %v686 = vpop.f32.mrb[0].mxu0
    %687 = vdwg.mxu0
    %vm688 = vcmp.gt.f32.partialorder %v674, 0.0
    %vm689 = vcmp.gt.f32.partialorder %v677, 0.0
    %vm690 = vcmp.gt.f32.partialorder %v682, 0.0
    %vm691 = vcmp.gt.f32.partialorder %v685, 0.0
    %v692 = vmul.f32 %v674, 0.2
    %v693 = vmul.f32 %v677, 0.2
    %v694 = vmul.f32 %v682, 0.2
    %v695 = vmul.f32 %v685, 0.2
    %v696 = vsel %vm688, %v674, %v692
    %v697 = vsel %vm689, %v677, %v693
    %v698 = vsel %vm690, %v682, %v694
    %v699 = vsel %vm691, %v685, %v695
    %v700 = vld [vmem:[#allocation2 + $0x100] sm:$0xf]
    %v701 = vld [vmem:[#allocation2 + $0x104] sm:$0xf]
    %v702 = vld [vmem:[#allocation2 + $0x108] sm:$0xf]
    %v703 = vld [vmem:[#allocation2 + $0x10c] sm:$0xf]
    %v704 = vld [vmem:[#allocation2 + $0x110] sm:$0xf]
    %v705 = vld [vmem:[#allocation2 + $0x114] sm:$0xf]
    %v706 = vld [vmem:[#allocation2 + $0x118] sm:$0xf]
    %v707 = vld [vmem:[#allocation2 + $0x11c] sm:$0xf]
    %v708 = vld [vmem:[#allocation2 + $0x120] sm:$0xf]
    %v709 = vld [vmem:[#allocation2 + $0x124] sm:$0xf]
    %v710 = vld [vmem:[#allocation2 + $0x128] sm:$0xf]
    %v711 = vld [vmem:[#allocation2 + $0x12c] sm:$0xf]
    %v712 = vld [vmem:[#allocation2 + $0x130] sm:$0xf]
    %v713 = vld [vmem:[#allocation2 + $0x134] sm:$0xf]
    %v714 = vld [vmem:[#allocation2 + $0x138] sm:$0xf]
    %v715 = vld [vmem:[#allocation2 + $0x13c] sm:$0xf]
    %v716 = vpack.c.bf16 %v697, %v696
    %v717 = vpack.c.bf16 %v699, %v698
    %v718 = vlaneseq
    %v719 = vshrl.u32 %v718, 7
    %v720 = vsub.s32 4, %v719
    %v721 = vrot.slane %v46, %v720
    %v738 = vunpack.c.l.b16 %v700
    %v739 = vunpack.c.l.b16 %v701
    %v740 = vunpack.c.l.b16 %v702
    %v741 = vunpack.c.l.b16 %v703
    %v742 = vunpack.c.l.b16 %v704
    %v743 = vunpack.c.l.b16 %v705
    %v744 = vunpack.c.l.b16 %v706
    %v745 = vunpack.c.l.b16 %v707
    %v746 = vunpack.c.l.b16 %v708
    %v747 = vunpack.c.l.b16 %v709
    %v748 = vunpack.c.l.b16 %v710
    %v749 = vunpack.c.l.b16 %v711
    %v750 = vunpack.c.l.b16 %v712
    %v751 = vunpack.c.l.b16 %v713
    %v752 = vunpack.c.l.b16 %v714
    %v753 = vunpack.c.l.b16 %v715
    %v754 = vpack.c.b16 %v739, %v738
    %v755 = vpack.c.b16 %v741, %v740
    %v756 = vpack.c.b16 %v743, %v742
    %v757 = vpack.c.b16 %v745, %v744
    %v758 = vpack.c.b16 %v747, %v746
    %v759 = vpack.c.b16 %v749, %v748
    %v760 = vpack.c.b16 %v751, %v750
    %v761 = vpack.c.b16 %v753, %v752
    %770 = vmatprep.subr.bf16.mxu0 0
    %771 = vmatpush1.bf16.msra.mxu0 %v754
    %772 = vmatprep.subr.bf16.mxu0 0
    %773 = vmatpush1.bf16.msra.mxu0 %v755
    %774 = vmatprep.subr.bf16.mxu0 0
    %775 = vmatpush1.bf16.msra.mxu0 %v756
    %776 = vmatprep.subr.bf16.mxu0 0
    %777 = vmatpush1.bf16.msra.mxu0 %v757
    %778 = vmatprep.subr.bf16.mxu0 0
    %779 = vmatpush1.bf16.msra.mxu0 %v758
    %780 = vmatprep.subr.bf16.mxu0 0
    %781 = vmatpush1.bf16.msra.mxu0 %v759
    %782 = vmatprep.subr.bf16.mxu0 0
    %783 = vmatpush1.bf16.msra.mxu0 %v760
    %784 = vmatprep.subr.bf16.mxu0 0
    %785 = vmatpush1.bf16.msra.mxu0 %v761
    %786 = vmatprep.subr.bf16.mxu0 0
    %787 = vmatpush1.bf16.msra.mxu0 0
    %788 = vmatprep.subr.bf16.mxu0 0
    %789 = vmatpush1.bf16.msra.mxu0 0
    %790 = vmatprep.subr.bf16.mxu0 0
    %791 = vmatpush1.bf16.msra.mxu0 0
    %792 = vmatprep.subr.bf16.mxu0 0
    %793 = vmatpush1.bf16.msra.mxu0 0
    %794 = vmatprep.subr.bf16.mxu0 0
    %795 = vmatpush1.bf16.msra.mxu0 0
    %796 = vmatprep.subr.bf16.mxu0 0
    %797 = vmatpush1.bf16.msra.mxu0 0
    %798 = vmatprep.subr.bf16.mxu0 0
    %799 = vmatpush1.bf16.msra.mxu0 0
    %800 = vmatprep.subr.bf16.mxu0 0
    %801 = vmatpush1.bf16.msra.mxu0 0
    %802 = vmatprep.mubr.bf16.mxu0 0
    %803 = vmatmul.mubr.bf16.gmra.mrb[0].mxu0 %v716
    %v804 = vpop.f32.mrb[0].mxu0
    %v805 = vadd.f32 %v721, %v804
    %v806 = vpop.f32.mrb[0].mxu0
    %v807 = vpop.f32.mrb[0].mxu0
    %v808 = vadd.f32 %v721, %v807
    %v809 = vpop.f32.mrb[0].mxu0
    %810 = vmatprep.mubr.bf16.mxu0 0
    %811 = vmatmul.mubr.bf16.gmra.mrb[0].mxu0 %v717
    %v812 = vpop.f32.mrb[0].mxu0
    %v813 = vadd.f32 %v721, %v812
    %v814 = vpop.f32.mrb[0].mxu0
    %v815 = vpop.f32.mrb[0].mxu0
    %v816 = vadd.f32 %v721, %v815
    %v817 = vpop.f32.mrb[0].mxu0
    %818 = vdwg.mxu0
    %vm819 = vcmp.gt.f32.partialorder %v805, 0.0
    %vm820 = vcmp.gt.f32.partialorder %v808, 0.0
    %vm821 = vcmp.gt.f32.partialorder %v813, 0.0
    %vm822 = vcmp.gt.f32.partialorder %v816, 0.0
    %v823 = vmul.f32 %v805, 0.2
    %v824 = vmul.f32 %v808, 0.2
    %v825 = vmul.f32 %v813, 0.2
    %v826 = vmul.f32 %v816, 0.2
    %v827 = vsel %vm819, %v805, %v823
    %v828 = vsel %vm820, %v808, %v824
    %v829 = vsel %vm821, %v813, %v825
    %v830 = vsel %vm822, %v816, %v826
    %v831 = vld [vmem:[#allocation2 + $0x140] sm:$0xf]
    %v832 = vld [vmem:[#allocation2 + $0x144] sm:$0xf]
    %v833 = vld [vmem:[#allocation2 + $0x148] sm:$0xf]
    %v834 = vld [vmem:[#allocation2 + $0x14c] sm:$0xf]
    %v835 = vld [vmem:[#allocation2 + $0x150] sm:$0xf]
    %v836 = vld [vmem:[#allocation2 + $0x154] sm:$0xf]
    %v837 = vld [vmem:[#allocation2 + $0x158] sm:$0xf]
    %v838 = vld [vmem:[#allocation2 + $0x15c] sm:$0xf]
    %v839 = vld [vmem:[#allocation2 + $0x160] sm:$0xf]
    %v840 = vld [vmem:[#allocation2 + $0x164] sm:$0xf]
    %v841 = vld [vmem:[#allocation2 + $0x168] sm:$0xf]
    %v842 = vld [vmem:[#allocation2 + $0x16c] sm:$0xf]
    %v843 = vld [vmem:[#allocation2 + $0x170] sm:$0xf]
    %v844 = vld [vmem:[#allocation2 + $0x174] sm:$0xf]
    %v845 = vld [vmem:[#allocation2 + $0x178] sm:$0xf]
    %v846 = vld [vmem:[#allocation2 + $0x17c] sm:$0xf]
    %v847 = vpack.c.bf16 %v828, %v827
    %v848 = vpack.c.bf16 %v830, %v829
    %v849 = vlaneseq
    %v850 = vshrl.u32 %v849, 7
    %v851 = vsub.s32 5, %v850
    %v852 = vrot.slane %v46, %v851
    %v869 = vunpack.c.l.b16 %v831
    %v870 = vunpack.c.l.b16 %v832
    %v871 = vunpack.c.l.b16 %v833
    %v872 = vunpack.c.l.b16 %v834
    %v873 = vunpack.c.l.b16 %v835
    %v874 = vunpack.c.l.b16 %v836
    %v875 = vunpack.c.l.b16 %v837
    %v876 = vunpack.c.l.b16 %v838
    %v877 = vunpack.c.l.b16 %v839
    %v878 = vunpack.c.l.b16 %v840
    %v879 = vunpack.c.l.b16 %v841
    %v880 = vunpack.c.l.b16 %v842
    %v881 = vunpack.c.l.b16 %v843
    %v882 = vunpack.c.l.b16 %v844
    %v883 = vunpack.c.l.b16 %v845
    %v884 = vunpack.c.l.b16 %v846
    %v885 = vpack.c.b16 %v870, %v869
    %v886 = vpack.c.b16 %v872, %v871
    %v887 = vpack.c.b16 %v874, %v873
    %v888 = vpack.c.b16 %v876, %v875
    %v889 = vpack.c.b16 %v878, %v877
    %v890 = vpack.c.b16 %v880, %v879
    %v891 = vpack.c.b16 %v882, %v881
    %v892 = vpack.c.b16 %v884, %v883
    %901 = vmatprep.subr.bf16.mxu0 0
    %902 = vmatpush1.bf16.msra.mxu0 %v885
    %903 = vmatprep.subr.bf16.mxu0 0
    %904 = vmatpush1.bf16.msra.mxu0 %v886
    %905 = vmatprep.subr.bf16.mxu0 0
    %906 = vmatpush1.bf16.msra.mxu0 %v887
    %907 = vmatprep.subr.bf16.mxu0 0
    %908 = vmatpush1.bf16.msra.mxu0 %v888
    %909 = vmatprep.subr.bf16.mxu0 0
    %910 = vmatpush1.bf16.msra.mxu0 %v889
    %911 = vmatprep.subr.bf16.mxu0 0
    %912 = vmatpush1.bf16.msra.mxu0 %v890
    %913 = vmatprep.subr.bf16.mxu0 0
    %914 = vmatpush1.bf16.msra.mxu0 %v891
    %915 = vmatprep.subr.bf16.mxu0 0
    %916 = vmatpush1.bf16.msra.mxu0 %v892
    %917 = vmatprep.subr.bf16.mxu0 0
    %918 = vmatpush1.bf16.msra.mxu0 0
    %919 = vmatprep.subr.bf16.mxu0 0
    %920 = vmatpush1.bf16.msra.mxu0 0
    %921 = vmatprep.subr.bf16.mxu0 0
    %922 = vmatpush1.bf16.msra.mxu0 0
    %923 = vmatprep.subr.bf16.mxu0 0
    %924 = vmatpush1.bf16.msra.mxu0 0
    %925 = vmatprep.subr.bf16.mxu0 0
    %926 = vmatpush1.bf16.msra.mxu0 0
    %927 = vmatprep.subr.bf16.mxu0 0
    %928 = vmatpush1.bf16.msra.mxu0 0
    %929 = vmatprep.subr.bf16.mxu0 0
    %930 = vmatpush1.bf16.msra.mxu0 0
    %931 = vmatprep.subr.bf16.mxu0 0
    %932 = vmatpush1.bf16.msra.mxu0 0
    %933 = vmatprep.mubr.bf16.mxu0 0
    %934 = vmatmul.mubr.bf16.gmra.mrb[0].mxu0 %v847
    %v935 = vpop.f32.mrb[0].mxu0
    %v936 = vadd.f32 %v852, %v935
    %v937 = vpop.f32.mrb[0].mxu0
    %v938 = vpop.f32.mrb[0].mxu0
    %v939 = vadd.f32 %v852, %v938
    %v940 = vpop.f32.mrb[0].mxu0
    %941 = vmatprep.mubr.bf16.mxu0 0
    %942 = vmatmul.mubr.bf16.gmra.mrb[0].mxu0 %v848
    %v943 = vpop.f32.mrb[0].mxu0
    %v944 = vadd.f32 %v852, %v943
    %v945 = vpop.f32.mrb[0].mxu0
    %v946 = vpop.f32.mrb[0].mxu0
    %v947 = vadd.f32 %v852, %v946
    %v948 = vpop.f32.mrb[0].mxu0
    %949 = vdwg.mxu0
    %vm950 = vcmp.gt.f32.partialorder %v936, 0.0
    %vm951 = vcmp.gt.f32.partialorder %v939, 0.0
    %vm952 = vcmp.gt.f32.partialorder %v944, 0.0
    %vm953 = vcmp.gt.f32.partialorder %v947, 0.0
    %v954 = vmul.f32 %v936, 0.2
    %v955 = vmul.f32 %v939, 0.2
    %v956 = vmul.f32 %v944, 0.2
    %v957 = vmul.f32 %v947, 0.2
    %v958 = vsel %vm950, %v936, %v954
    %v959 = vsel %vm951, %v939, %v955
    %v960 = vsel %vm952, %v944, %v956
    %v961 = vsel %vm953, %v947, %v957
    %v962 = vld [vmem:[#allocation2 + $0x180] sm:$0xf]
    %v963 = vld [vmem:[#allocation2 + $0x184] sm:$0xf]
    %v964 = vld [vmem:[#allocation2 + $0x188] sm:$0xf]
    %v965 = vld [vmem:[#allocation2 + $0x18c] sm:$0xf]
    %v966 = vld [vmem:[#allocation2 + $0x190] sm:$0xf]
    %v967 = vld [vmem:[#allocation2 + $0x194] sm:$0xf]
    %v968 = vld [vmem:[#allocation2 + $0x198] sm:$0xf]
    %v969 = vld [vmem:[#allocation2 + $0x19c] sm:$0xf]
    %v970 = vld [vmem:[#allocation2 + $0x1a0] sm:$0xf]
    %v971 = vld [vmem:[#allocation2 + $0x1a4] sm:$0xf]
    %v972 = vld [vmem:[#allocation2 + $0x1a8] sm:$0xf]
    %v973 = vld [vmem:[#allocation2 + $0x1ac] sm:$0xf]
    %v974 = vld [vmem:[#allocation2 + $0x1b0] sm:$0xf]
    %v975 = vld [vmem:[#allocation2 + $0x1b4] sm:$0xf]
    %v976 = vld [vmem:[#allocation2 + $0x1b8] sm:$0xf]
    %v977 = vld [vmem:[#allocation2 + $0x1bc] sm:$0xf]
    %v978 = vpack.c.bf16 %v959, %v958
    %v979 = vpack.c.bf16 %v961, %v960
    %v980 = vlaneseq
    %v981 = vshrl.u32 %v980, 7
    %v982 = vsub.s32 6, %v981
    %v983 = vrot.slane %v46, %v982
    %v1000 = vunpack.c.l.b16 %v962
    %v1001 = vunpack.c.l.b16 %v963
    %v1002 = vunpack.c.l.b16 %v964
    %v1003 = vunpack.c.l.b16 %v965
    %v1004 = vunpack.c.l.b16 %v966
    %v1005 = vunpack.c.l.b16 %v967
    %v1006 = vunpack.c.l.b16 %v968
    %v1007 = vunpack.c.l.b16 %v969
    %v1008 = vunpack.c.l.b16 %v970
    %v1009 = vunpack.c.l.b16 %v971
    %v1010 = vunpack.c.l.b16 %v972
    %v1011 = vunpack.c.l.b16 %v973
    %v1012 = vunpack.c.l.b16 %v974
    %v1013 = vunpack.c.l.b16 %v975
    %v1014 = vunpack.c.l.b16 %v976
    %v1015 = vunpack.c.l.b16 %v977
    %v1016 = vpack.c.b16 %v1001, %v1000
    %v1017 = vpack.c.b16 %v1003, %v1002
    %v1018 = vpack.c.b16 %v1005, %v1004
    %v1019 = vpack.c.b16 %v1007, %v1006
    %v1020 = vpack.c.b16 %v1009, %v1008
    %v1021 = vpack.c.b16 %v1011, %v1010
    %v1022 = vpack.c.b16 %v1013, %v1012
    %v1023 = vpack.c.b16 %v1015, %v1014
    %1032 = vmatprep.subr.bf16.mxu0 0
    %1033 = vmatpush1.bf16.msra.mxu0 %v1016
    %1034 = vmatprep.subr.bf16.mxu0 0
    %1035 = vmatpush1.bf16.msra.mxu0 %v1017
    %1036 = vmatprep.subr.bf16.mxu0 0
    %1037 = vmatpush1.bf16.msra.mxu0 %v1018
    %1038 = vmatprep.subr.bf16.mxu0 0
    %1039 = vmatpush1.bf16.msra.mxu0 %v1019
    %1040 = vmatprep.subr.bf16.mxu0 0
    %1041 = vmatpush1.bf16.msra.mxu0 %v1020
    %1042 = vmatprep.subr.bf16.mxu0 0
    %1043 = vmatpush1.bf16.msra.mxu0 %v1021
    %1044 = vmatprep.subr.bf16.mxu0 0
    %1045 = vmatpush1.bf16.msra.mxu0 %v1022
    %1046 = vmatprep.subr.bf16.mxu0 0
    %1047 = vmatpush1.bf16.msra.mxu0 %v1023
    %1048 = vmatprep.subr.bf16.mxu0 0
    %1049 = vmatpush1.bf16.msra.mxu0 0
    %1050 = vmatprep.subr.bf16.mxu0 0
    %1051 = vmatpush1.bf16.msra.mxu0 0
    %1052 = vmatprep.subr.bf16.mxu0 0
    %1053 = vmatpush1.bf16.msra.mxu0 0
    %1054 = vmatprep.subr.bf16.mxu0 0
    %1055 = vmatpush1.bf16.msra.mxu0 0
    %1056 = vmatprep.subr.bf16.mxu0 0
    %1057 = vmatpush1.bf16.msra.mxu0 0
    %1058 = vmatprep.subr.bf16.mxu0 0
    %1059 = vmatpush1.bf16.msra.mxu0 0
    %1060 = vmatprep.subr.bf16.mxu0 0
    %1061 = vmatpush1.bf16.msra.mxu0 0
    %1062 = vmatprep.subr.bf16.mxu0 0
    %1063 = vmatpush1.bf16.msra.mxu0 0
    %1064 = vmatprep.mubr.bf16.mxu0 0
    %1065 = vmatmul.mubr.bf16.gmra.mrb[0].mxu0 %v978
    %v1066 = vpop.f32.mrb[0].mxu0
    %v1067 = vadd.f32 %v983, %v1066
    %v1068 = vpop.f32.mrb[0].mxu0
    %v1069 = vpop.f32.mrb[0].mxu0
    %v1070 = vadd.f32 %v983, %v1069
    %v1071 = vpop.f32.mrb[0].mxu0
    %1072 = vmatprep.mubr.bf16.mxu0 0
    %1073 = vmatmul.mubr.bf16.gmra.mrb[0].mxu0 %v979
    %v1074 = vpop.f32.mrb[0].mxu0
    %v1075 = vadd.f32 %v983, %v1074
    %v1076 = vpop.f32.mrb[0].mxu0
    %v1077 = vpop.f32.mrb[0].mxu0
    %v1078 = vadd.f32 %v983, %v1077
    %v1079 = vpop.f32.mrb[0].mxu0
    %1080 = vdwg.mxu0
    %vm1081 = vcmp.gt.f32.partialorder %v1067, 0.0
    %vm1082 = vcmp.gt.f32.partialorder %v1070, 0.0
    %vm1083 = vcmp.gt.f32.partialorder %v1075, 0.0
    %vm1084 = vcmp.gt.f32.partialorder %v1078, 0.0
    %v1085 = vmul.f32 %v1067, 0.2
    %v1086 = vmul.f32 %v1070, 0.2
    %v1087 = vmul.f32 %v1075, 0.2
    %v1088 = vmul.f32 %v1078, 0.2
    %v1089 = vsel %vm1081, %v1067, %v1085
    %v1090 = vsel %vm1082, %v1070, %v1086
    %v1091 = vsel %vm1083, %v1075, %v1087
    %v1092 = vsel %vm1084, %v1078, %v1088
    %v1093 = vld [vmem:[#allocation2 + $0x1c0] sm:$0xf]
    %v1094 = vld [vmem:[#allocation2 + $0x1c4] sm:$0xf]
    %v1095 = vld [vmem:[#allocation2 + $0x1c8] sm:$0xf]
    %v1096 = vld [vmem:[#allocation2 + $0x1cc] sm:$0xf]
    %v1097 = vld [vmem:[#allocation2 + $0x1d0] sm:$0xf]
    %v1098 = vld [vmem:[#allocation2 + $0x1d4] sm:$0xf]
    %v1099 = vld [vmem:[#allocation2 + $0x1d8] sm:$0xf]
    %v1100 = vld [vmem:[#allocation2 + $0x1dc] sm:$0xf]
    %v1101 = vld [vmem:[#allocation2 + $0x1e0] sm:$0xf]
    %v1102 = vld [vmem:[#allocation2 + $0x1e4] sm:$0xf]
    %v1103 = vld [vmem:[#allocation2 + $0x1e8] sm:$0xf]
    %v1104 = vld [vmem:[#allocation2 + $0x1ec] sm:$0xf]
    %v1105 = vld [vmem:[#allocation2 + $0x1f0] sm:$0xf]
    %v1106 = vld [vmem:[#allocation2 + $0x1f4] sm:$0xf]
    %v1107 = vld [vmem:[#allocation2 + $0x1f8] sm:$0xf]
    %v1108 = vld [vmem:[#allocation2 + $0x1fc] sm:$0xf]
    %v1109 = vpack.c.bf16 %v1090, %v1089
    %v1110 = vpack.c.bf16 %v1092, %v1091
    %v1111 = vlaneseq
    %v1112 = vshrl.u32 %v1111, 7
    %v1113 = vsub.s32 7, %v1112
    %v1114 = vrot.slane %v46, %v1113
    %v1131 = vunpack.c.l.b16 %v1093
    %v1132 = vunpack.c.l.b16 %v1094
    %v1133 = vunpack.c.l.b16 %v1095
    %v1134 = vunpack.c.l.b16 %v1096
    %v1135 = vunpack.c.l.b16 %v1097
    %v1136 = vunpack.c.l.b16 %v1098
    %v1137 = vunpack.c.l.b16 %v1099
    %v1138 = vunpack.c.l.b16 %v1100
    %v1139 = vunpack.c.l.b16 %v1101
    %v1140 = vunpack.c.l.b16 %v1102
    %v1141 = vunpack.c.l.b16 %v1103
    %v1142 = vunpack.c.l.b16 %v1104
    %v1143 = vunpack.c.l.b16 %v1105
    %v1144 = vunpack.c.l.b16 %v1106
    %v1145 = vunpack.c.l.b16 %v1107
    %v1146 = vunpack.c.l.b16 %v1108
    %v1147 = vpack.c.b16 %v1132, %v1131
    %v1148 = vpack.c.b16 %v1134, %v1133
    %v1149 = vpack.c.b16 %v1136, %v1135
    %v1150 = vpack.c.b16 %v1138, %v1137
    %v1151 = vpack.c.b16 %v1140, %v1139
    %v1152 = vpack.c.b16 %v1142, %v1141
    %v1153 = vpack.c.b16 %v1144, %v1143
    %v1154 = vpack.c.b16 %v1146, %v1145
    %1163 = vmatprep.subr.bf16.mxu0 0
    %1164 = vmatpush1.bf16.msra.mxu0 %v1147
    %1165 = vmatprep.subr.bf16.mxu0 0
    %1166 = vmatpush1.bf16.msra.mxu0 %v1148
    %1167 = vmatprep.subr.bf16.mxu0 0
    %1168 = vmatpush1.bf16.msra.mxu0 %v1149
    %1169 = vmatprep.subr.bf16.mxu0 0
    %1170 = vmatpush1.bf16.msra.mxu0 %v1150
    %1171 = vmatprep.subr.bf16.mxu0 0
    %1172 = vmatpush1.bf16.msra.mxu0 %v1151
    %1173 = vmatprep.subr.bf16.mxu0 0
    %1174 = vmatpush1.bf16.msra.mxu0 %v1152
    %1175 = vmatprep.subr.bf16.mxu0 0
    %1176 = vmatpush1.bf16.msra.mxu0 %v1153
    %1177 = vmatprep.subr.bf16.mxu0 0
    %1178 = vmatpush1.bf16.msra.mxu0 %v1154
    %1179 = vmatprep.subr.bf16.mxu0 0
    %1180 = vmatpush1.bf16.msra.mxu0 0
    %1181 = vmatprep.subr.bf16.mxu0 0
    %1182 = vmatpush1.bf16.msra.mxu0 0
    %1183 = vmatprep.subr.bf16.mxu0 0
    %1184 = vmatpush1.bf16.msra.mxu0 0
    %1185 = vmatprep.subr.bf16.mxu0 0
    %1186 = vmatpush1.bf16.msra.mxu0 0
    %1187 = vmatprep.subr.bf16.mxu0 0
    %1188 = vmatpush1.bf16.msra.mxu0 0
    %1189 = vmatprep.subr.bf16.mxu0 0
    %1190 = vmatpush1.bf16.msra.mxu0 0
    %1191 = vmatprep.subr.bf16.mxu0 0
    %1192 = vmatpush1.bf16.msra.mxu0 0
    %1193 = vmatprep.subr.bf16.mxu0 0
    %1194 = vmatpush1.bf16.msra.mxu0 0
    %1195 = vmatprep.mubr.bf16.mxu0 0
    %1196 = vmatmul.mubr.bf16.gmra.mrb[0].mxu0 %v1109
    %v1197 = vpop.f32.mrb[0].mxu0
    %v1198 = vadd.f32 %v1114, %v1197
    %v1199 = vpop.f32.mrb[0].mxu0
    %v1200 = vpop.f32.mrb[0].mxu0
    %v1201 = vadd.f32 %v1114, %v1200
    %v1202 = vpop.f32.mrb[0].mxu0
    %1203 = vmatprep.mubr.bf16.mxu0 0
    %1204 = vmatmul.mubr.bf16.gmra.mrb[0].mxu0 %v1110
    %v1205 = vpop.f32.mrb[0].mxu0
    %v1206 = vadd.f32 %v1114, %v1205
    %v1207 = vpop.f32.mrb[0].mxu0
    %v1208 = vpop.f32.mrb[0].mxu0
    %v1209 = vadd.f32 %v1114, %v1208
    %v1210 = vpop.f32.mrb[0].mxu0
    %1211 = vdwg.mxu0
    %v1212 = vtanh.pop %v1198
    %v1213 = vtanh.pop %v1201
    %v1214 = vtanh.pop %v1206
    %v1215 = vtanh.pop %v1209
    %v1216 = vld [vmem:[#allocation2 + $0x200] sm:$0xf]
    %v1217 = vld [vmem:[#allocation2 + $0x204] sm:$0xf]
    %v1218 = vld [vmem:[#allocation2 + $0x208] sm:$0xf]
    %v1219 = vld [vmem:[#allocation2 + $0x20c] sm:$0xf]
    %v1220 = vld [vmem:[#allocation2 + $0x210] sm:$0xf]
    %v1221 = vld [vmem:[#allocation2 + $0x214] sm:$0xf]
    %v1222 = vld [vmem:[#allocation2 + $0x218] sm:$0xf]
    %v1223 = vld [vmem:[#allocation2 + $0x21c] sm:$0xf]
    %v1224 = vld [vmem:[#allocation2 + $0x220] sm:$0xf]
    %v1225 = vld [vmem:[#allocation2 + $0x224] sm:$0xf]
    %v1226 = vld [vmem:[#allocation2 + $0x228] sm:$0xf]
    %v1227 = vld [vmem:[#allocation2 + $0x22c] sm:$0xf]
    %v1228 = vld [vmem:[#allocation2 + $0x230] sm:$0xf]
    %v1229 = vld [vmem:[#allocation2 + $0x234] sm:$0xf]
    %v1230 = vld [vmem:[#allocation2 + $0x238] sm:$0xf]
    %v1231 = vld [vmem:[#allocation2 + $0x23c] sm:$0xf]
    %v1232 = vpack.c.bf16 %v1213, %v1212
    %v1233 = vpack.c.bf16 %v1215, %v1214
    %v1234 = vlaneseq
    %v1235 = vshrl.u32 %v1234, 7
    %v1236 = vsub.s32 0, %v1235
    %v1237 = vrot.slane %v48, %v1236
    %v1254 = vunpack.c.l.b16 %v1216
    %v1255 = vunpack.c.l.b16 %v1217
    %v1256 = vunpack.c.l.b16 %v1218
    %v1257 = vunpack.c.l.b16 %v1219
    %v1258 = vunpack.c.l.b16 %v1220
    %v1259 = vunpack.c.l.b16 %v1221
    %v1260 = vunpack.c.l.b16 %v1222
    %v1261 = vunpack.c.l.b16 %v1223
    %v1262 = vunpack.c.l.b16 %v1224
    %v1263 = vunpack.c.l.b16 %v1225
    %v1264 = vunpack.c.l.b16 %v1226
    %v1265 = vunpack.c.l.b16 %v1227
    %v1266 = vunpack.c.l.b16 %v1228
    %v1267 = vunpack.c.l.b16 %v1229
    %v1268 = vunpack.c.l.b16 %v1230
    %v1269 = vunpack.c.l.b16 %v1231
    %v1270 = vpack.c.b16 %v1255, %v1254
    %v1271 = vpack.c.b16 %v1257, %v1256
    %v1272 = vpack.c.b16 %v1259, %v1258
    %v1273 = vpack.c.b16 %v1261, %v1260
    %v1274 = vpack.c.b16 %v1263, %v1262
    %v1275 = vpack.c.b16 %v1265, %v1264
    %v1276 = vpack.c.b16 %v1267, %v1266
    %v1277 = vpack.c.b16 %v1269, %v1268
    %1286 = vmatprep.subr.bf16.mxu0 0
    %1287 = vmatpush1.bf16.msra.mxu0 %v1270
    %1288 = vmatprep.subr.bf16.mxu0 0
    %1289 = vmatpush1.bf16.msra.mxu0 %v1271
    %1290 = vmatprep.subr.bf16.mxu0 0
    %1291 = vmatpush1.bf16.msra.mxu0 %v1272
    %1292 = vmatprep.subr.bf16.mxu0 0
    %1293 = vmatpush1.bf16.msra.mxu0 %v1273
    %1294 = vmatprep.subr.bf16.mxu0 0
    %1295 = vmatpush1.bf16.msra.mxu0 %v1274
    %1296 = vmatprep.subr.bf16.mxu0 0
    %1297 = vmatpush1.bf16.msra.mxu0 %v1275
    %1298 = vmatprep.subr.bf16.mxu0 0
    %1299 = vmatpush1.bf16.msra.mxu0 %v1276
    %1300 = vmatprep.subr.bf16.mxu0 0
    %1301 = vmatpush1.bf16.msra.mxu0 %v1277
    %1302 = vmatprep.subr.bf16.mxu0 0
    %1303 = vmatpush1.bf16.msra.mxu0 0
    %1304 = vmatprep.subr.bf16.mxu0 0
    %1305 = vmatpush1.bf16.msra.mxu0 0
    %1306 = vmatprep.subr.bf16.mxu0 0
    %1307 = vmatpush1.bf16.msra.mxu0 0
    %1308 = vmatprep.subr.bf16.mxu0 0
    %1309 = vmatpush1.bf16.msra.mxu0 0
    %1310 = vmatprep.subr.bf16.mxu0 0
    %1311 = vmatpush1.bf16.msra.mxu0 0
    %1312 = vmatprep.subr.bf16.mxu0 0
    %1313 = vmatpush1.bf16.msra.mxu0 0
    %1314 = vmatprep.subr.bf16.mxu0 0
    %1315 = vmatpush1.bf16.msra.mxu0 0
    %1316 = vmatprep.subr.bf16.mxu0 0
    %1317 = vmatpush1.bf16.msra.mxu0 0
    %1318 = vmatprep.mubr.bf16.mxu0 0
    %1319 = vmatmul.mubr.bf16.gmra.mrb[0].mxu0 %v1232
    %v1320 = vpop.f32.mrb[0].mxu0
    %v1321 = vadd.f32 %v1237, %v1320
    %v1322 = vpop.f32.mrb[0].mxu0
    %v1323 = vpop.f32.mrb[0].mxu0
    %v1324 = vadd.f32 %v1237, %v1323
    %v1325 = vpop.f32.mrb[0].mxu0
    %1326 = vmatprep.mubr.bf16.mxu0 0
    %1327 = vmatmul.mubr.bf16.gmra.mrb[0].mxu0 %v1233
    %v1328 = vpop.f32.mrb[0].mxu0
    %v1329 = vadd.f32 %v1237, %v1328
    %v1330 = vpop.f32.mrb[0].mxu0
    %v1331 = vpop.f32.mrb[0].mxu0
    %v1332 = vadd.f32 %v1237, %v1331
    %v1333 = vpop.f32.mrb[0].mxu0
    %1334 = vdwg.mxu0
    %vm1335 = vcmp.gt.f32.partialorder %v1321, 0.0
    %vm1336 = vcmp.gt.f32.partialorder %v1324, 0.0
    %vm1337 = vcmp.gt.f32.partialorder %v1329, 0.0
    %vm1338 = vcmp.gt.f32.partialorder %v1332, 0.0
    %v1339 = vmul.f32 %v1321, 0.2
    %v1340 = vmul.f32 %v1324, 0.2
    %v1341 = vmul.f32 %v1329, 0.2
    %v1342 = vmul.f32 %v1332, 0.2
    %v1343 = vsel %vm1335, %v1321, %v1339
    %v1344 = vsel %vm1336, %v1324, %v1340
    %v1345 = vsel %vm1337, %v1329, %v1341
    %v1346 = vsel %vm1338, %v1332, %v1342
    %v1347 = vld [vmem:[#allocation2 + $0x240] sm:$0xf]
    %v1348 = vld [vmem:[#allocation2 + $0x244] sm:$0xf]
    %v1349 = vld [vmem:[#allocation2 + $0x248] sm:$0xf]
    %v1350 = vld [vmem:[#allocation2 + $0x24c] sm:$0xf]
    %v1351 = vld [vmem:[#allocation2 + $0x250] sm:$0xf]
    %v1352 = vld [vmem:[#allocation2 + $0x254] sm:$0xf]
    %v1353 = vld [vmem:[#allocation2 + $0x258] sm:$0xf]
    %v1354 = vld [vmem:[#allocation2 + $0x25c] sm:$0xf]
    %v1355 = vld [vmem:[#allocation2 + $0x260] sm:$0xf]
    %v1356 = vld [vmem:[#allocation2 + $0x264] sm:$0xf]
    %v1357 = vld [vmem:[#allocation2 + $0x268] sm:$0xf]
    %v1358 = vld [vmem:[#allocation2 + $0x26c] sm:$0xf]
    %v1359 = vld [vmem:[#allocation2 + $0x270] sm:$0xf]
    %v1360 = vld [vmem:[#allocation2 + $0x274] sm:$0xf]
    %v1361 = vld [vmem:[#allocation2 + $0x278] sm:$0xf]
    %v1362 = vld [vmem:[#allocation2 + $0x27c] sm:$0xf]
    %v1363 = vpack.c.bf16 %v1344, %v1343
    %v1364 = vpack.c.bf16 %v1346, %v1345
    %v1365 = vlaneseq
    %v1366 = vshrl.u32 %v1365, 7
    %v1367 = vsub.s32 1, %v1366
    %v1368 = vrot.slane %v48, %v1367
    %v1385 = vunpack.c.l.b16 %v1347
    %v1386 = vunpack.c.l.b16 %v1348
    %v1387 = vunpack.c.l.b16 %v1349
    %v1388 = vunpack.c.l.b16 %v1350
    %v1389 = vunpack.c.l.b16 %v1351
    %v1390 = vunpack.c.l.b16 %v1352
    %v1391 = vunpack.c.l.b16 %v1353
    %v1392 = vunpack.c.l.b16 %v1354
    %v1393 = vunpack.c.l.b16 %v1355
    %v1394 = vunpack.c.l.b16 %v1356
    %v1395 = vunpack.c.l.b16 %v1357
    %v1396 = vunpack.c.l.b16 %v1358
    %v1397 = vunpack.c.l.b16 %v1359
    %v1398 = vunpack.c.l.b16 %v1360
    %v1399 = vunpack.c.l.b16 %v1361
    %v1400 = vunpack.c.l.b16 %v1362
    %v1401 = vpack.c.b16 %v1386, %v1385
    %v1402 = vpack.c.b16 %v1388, %v1387
    %v1403 = vpack.c.b16 %v1390, %v1389
    %v1404 = vpack.c.b16 %v1392, %v1391
    %v1405 = vpack.c.b16 %v1394, %v1393
    %v1406 = vpack.c.b16 %v1396, %v1395
    %v1407 = vpack.c.b16 %v1398, %v1397
    %v1408 = vpack.c.b16 %v1400, %v1399
    %1417 = vmatprep.subr.bf16.mxu0 0
    %1418 = vmatpush1.bf16.msra.mxu0 %v1401
    %1419 = vmatprep.subr.bf16.mxu0 0
    %1420 = vmatpush1.bf16.msra.mxu0 %v1402
    %1421 = vmatprep.subr.bf16.mxu0 0
    %1422 = vmatpush1.bf16.msra.mxu0 %v1403
    %1423 = vmatprep.subr.bf16.mxu0 0
    %1424 = vmatpush1.bf16.msra.mxu0 %v1404
    %1425 = vmatprep.subr.bf16.mxu0 0
    %1426 = vmatpush1.bf16.msra.mxu0 %v1405
    %1427 = vmatprep.subr.bf16.mxu0 0
    %1428 = vmatpush1.bf16.msra.mxu0 %v1406
    %1429 = vmatprep.subr.bf16.mxu0 0
    %1430 = vmatpush1.bf16.msra.mxu0 %v1407
    %1431 = vmatprep.subr.bf16.mxu0 0
    %1432 = vmatpush1.bf16.msra.mxu0 %v1408
    %1433 = vmatprep.subr.bf16.mxu0 0
    %1434 = vmatpush1.bf16.msra.mxu0 0
    %1435 = vmatprep.subr.bf16.mxu0 0
    %1436 = vmatpush1.bf16.msra.mxu0 0
    %1437 = vmatprep.subr.bf16.mxu0 0
    %1438 = vmatpush1.bf16.msra.mxu0 0
    %1439 = vmatprep.subr.bf16.mxu0 0
    %1440 = vmatpush1.bf16.msra.mxu0 0
    %1441 = vmatprep.subr.bf16.mxu0 0
    %1442 = vmatpush1.bf16.msra.mxu0 0
    %1443 = vmatprep.subr.bf16.mxu0 0
    %1444 = vmatpush1.bf16.msra.mxu0 0
    %1445 = vmatprep.subr.bf16.mxu0 0
    %1446 = vmatpush1.bf16.msra.mxu0 0
    %1447 = vmatprep.subr.bf16.mxu0 0
    %1448 = vmatpush1.bf16.msra.mxu0 0
    %1449 = vmatprep.mubr.bf16.mxu0 0
    %1450 = vmatmul.mubr.bf16.gmra.mrb[0].mxu0 %v1363
    %v1451 = vpop.f32.mrb[0].mxu0
    %v1452 = vadd.f32 %v1368, %v1451
    %v1453 = vpop.f32.mrb[0].mxu0
    %v1454 = vpop.f32.mrb[0].mxu0
    %v1455 = vadd.f32 %v1368, %v1454
    %v1456 = vpop.f32.mrb[0].mxu0
    %1457 = vmatprep.mubr.bf16.mxu0 0
    %1458 = vmatmul.mubr.bf16.gmra.mrb[0].mxu0 %v1364
    %v1459 = vpop.f32.mrb[0].mxu0
    %v1460 = vadd.f32 %v1368, %v1459
    %v1461 = vpop.f32.mrb[0].mxu0
    %v1462 = vpop.f32.mrb[0].mxu0
    %v1463 = vadd.f32 %v1368, %v1462
    %v1464 = vpop.f32.mrb[0].mxu0
    %1465 = vdwg.mxu0
    %v1466 = vadd.f32 %v1452, %v1455
    %v1467 = vadd.f32 %v1466, %v1460
    %v1468 = vadd.f32 %v1467, %v1463
    %v1469 = vrot.slane %v1468, 4
    %v1470 = vadd.f32 %v1468, %v1469
    %v1471 = vrot.slane %v1470, 2
    %v1472 = vadd.f32 %v1470, %v1471
    %v1473 = vrot.slane %v1472, 1
    %v1474 = vadd.f32 %v1472, %v1473
    %v1475 = vmul.f32 %v1474, 0.03125
    %v1476 = vsub.f32 %v1452, %v1475
    %v1477 = vsub.f32 %v1455, %v1475
    %v1478 = vsub.f32 %v1460, %v1475
    %v1479 = vsub.f32 %v1463, %v1475
    %v1480 = vmul.f32 %v1476, %v1476
    %v1481 = vmul.f32 %v1477, %v1477
    %v1482 = vmul.f32 %v1478, %v1478
    %v1483 = vmul.f32 %v1479, %v1479
    %v1484 = vadd.f32 %v1480, %v1481
    %v1485 = vadd.f32 %v1484, %v1482
    %v1486 = vadd.f32 %v1485, %v1483
    %v1487 = vrot.slane %v1486, 4
    %v1488 = vadd.f32 %v1486, %v1487
    %v1489 = vrot.slane %v1488, 2
    %v1490 = vadd.f32 %v1488, %v1489
    %v1491 = vrot.slane %v1490, 1
    %v1492 = vadd.f32 %v1490, %v1491
    %v1493 = vmul.f32 %v1492, 0.03125
    %v1494 = vadd.f32 %v1493, 0.8
    %v1495 = vrsqrt.pop %v1494
    %v1496 = vmul.f32 %v1476, %v1495
    %v1497 = vmul.f32 %v1477, %v1495
    %v1498 = vmul.f32 %v1478, %v1495
    %v1499 = vmul.f32 %v1479, %v1495
    %v1500 = vlaneseq
    %v1501 = vshrl.u32 %v1500, 7
    %v1502 = vsub.s32 0, %v1501
    %v1503 = vrot.slane %v50, %v1502
    %v1504 = vmul.f32 %v1496, %v1503
    %v1505 = vmul.f32 %v1497, %v1503
    %v1506 = vmul.f32 %v1498, %v1503
    %v1507 = vmul.f32 %v1499, %v1503
    %v1508 = vlaneseq
    %v1509 = vshrl.u32 %v1508, 7
    %v1510 = vsub.s32 6, %v1509
    %v1511 = vrot.slane %v50, %v1510
    %v1512 = vadd.f32 %v1504, %v1511
    %v1513 = vadd.f32 %v1505, %v1511
    %v1514 = vadd.f32 %v1506, %v1511
    %v1515 = vadd.f32 %v1507, %v1511
    %vm1516 = vcmp.gt.f32.partialorder %v1512, 0.0
    %vm1517 = vcmp.gt.f32.partialorder %v1513, 0.0
    %vm1518 = vcmp.gt.f32.partialorder %v1514, 0.0
    %vm1519 = vcmp.gt.f32.partialorder %v1515, 0.0
    %v1520 = vmul.f32 %v1512, 0.2
    %v1521 = vmul.f32 %v1513, 0.2
    %v1522 = vmul.f32 %v1514, 0.2
    %v1523 = vmul.f32 %v1515, 0.2
    %v1524 = vsel %vm1516, %v1512, %v1520
    %v1525 = vsel %vm1517, %v1513, %v1521
    %v1526 = vsel %vm1518, %v1514, %v1522
    %v1527 = vsel %vm1519, %v1515, %v1523
    %v1528 = vld [vmem:[#allocation2 + $0x280] sm:$0xf]
    %v1529 = vld [vmem:[#allocation2 + $0x284] sm:$0xf]
    %v1530 = vld [vmem:[#allocation2 + $0x288] sm:$0xf]
    %v1531 = vld [vmem:[#allocation2 + $0x28c] sm:$0xf]
    %v1532 = vld [vmem:[#allocation2 + $0x290] sm:$0xf]
    %v1533 = vld [vmem:[#allocation2 + $0x294] sm:$0xf]
    %v1534 = vld [vmem:[#allocation2 + $0x298] sm:$0xf]
    %v1535 = vld [vmem:[#allocation2 + $0x29c] sm:$0xf]
    %v1536 = vld [vmem:[#allocation2 + $0x2a0] sm:$0xf]
    %v1537 = vld [vmem:[#allocation2 + $0x2a4] sm:$0xf]
    %v1538 = vld [vmem:[#allocation2 + $0x2a8] sm:$0xf]
    %v1539 = vld [vmem:[#allocation2 + $0x2ac] sm:$0xf]
    %v1540 = vld [vmem:[#allocation2 + $0x2b0] sm:$0xf]
    %v1541 = vld [vmem:[#allocation2 + $0x2b4] sm:$0xf]
    %v1542 = vld [vmem:[#allocation2 + $0x2b8] sm:$0xf]
    %v1543 = vld [vmem:[#allocation2 + $0x2bc] sm:$0xf]
    %v1544 = vpack.c.bf16 %v1525, %v1524
    %v1545 = vpack.c.bf16 %v1527, %v1526
    %v1546 = vlaneseq
    %v1547 = vshrl.u32 %v1546, 7
    %v1548 = vsub.s32 2, %v1547
    %v1549 = vrot.slane %v48, %v1548
    %v1566 = vunpack.c.l.b16 %v1528
    %v1567 = vunpack.c.l.b16 %v1529
    %v1568 = vunpack.c.l.b16 %v1530
    %v1569 = vunpack.c.l.b16 %v1531
    %v1570 = vunpack.c.l.b16 %v1532
    %v1571 = vunpack.c.l.b16 %v1533
    %v1572 = vunpack.c.l.b16 %v1534
    %v1573 = vunpack.c.l.b16 %v1535
    %v1574 = vunpack.c.l.b16 %v1536
    %v1575 = vunpack.c.l.b16 %v1537
    %v1576 = vunpack.c.l.b16 %v1538
    %v1577 = vunpack.c.l.b16 %v1539
    %v1578 = vunpack.c.l.b16 %v1540
    %v1579 = vunpack.c.l.b16 %v1541
    %v1580 = vunpack.c.l.b16 %v1542
    %v1581 = vunpack.c.l.b16 %v1543
    %v1582 = vpack.c.b16 %v1567, %v1566
    %v1583 = vpack.c.b16 %v1569, %v1568
    %v1584 = vpack.c.b16 %v1571, %v1570
    %v1585 = vpack.c.b16 %v1573, %v1572
    %v1586 = vpack.c.b16 %v1575, %v1574
    %v1587 = vpack.c.b16 %v1577, %v1576
    %v1588 = vpack.c.b16 %v1579, %v1578
    %v1589 = vpack.c.b16 %v1581, %v1580
    %1598 = vmatprep.subr.bf16.mxu0 0
    %1599 = vmatpush1.bf16.msra.mxu0 %v1582
    %1600 = vmatprep.subr.bf16.mxu0 0
    %1601 = vmatpush1.bf16.msra.mxu0 %v1583
    %1602 = vmatprep.subr.bf16.mxu0 0
    %1603 = vmatpush1.bf16.msra.mxu0 %v1584
    %1604 = vmatprep.subr.bf16.mxu0 0
    %1605 = vmatpush1.bf16.msra.mxu0 %v1585
    %1606 = vmatprep.subr.bf16.mxu0 0
    %1607 = vmatpush1.bf16.msra.mxu0 %v1586
    %1608 = vmatprep.subr.bf16.mxu0 0
    %1609 = vmatpush1.bf16.msra.mxu0 %v1587
    %1610 = vmatprep.subr.bf16.mxu0 0
    %1611 = vmatpush1.bf16.msra.mxu0 %v1588
    %1612 = vmatprep.subr.bf16.mxu0 0
    %1613 = vmatpush1.bf16.msra.mxu0 %v1589
    %1614 = vmatprep.subr.bf16.mxu0 0
    %1615 = vmatpush1.bf16.msra.mxu0 0
    %1616 = vmatprep.subr.bf16.mxu0 0
    %1617 = vmatpush1.bf16.msra.mxu0 0
    %1618 = vmatprep.subr.bf16.mxu0 0
    %1619 = vmatpush1.bf16.msra.mxu0 0
    %1620 = vmatprep.subr.bf16.mxu0 0
    %1621 = vmatpush1.bf16.msra.mxu0 0
    %1622 = vmatprep.subr.bf16.mxu0 0
    %1623 = vmatpush1.bf16.msra.mxu0 0
    %1624 = vmatprep.subr.bf16.mxu0 0
    %1625 = vmatpush1.bf16.msra.mxu0 0
    %1626 = vmatprep.subr.bf16.mxu0 0
    %1627 = vmatpush1.bf16.msra.mxu0 0
    %1628 = vmatprep.subr.bf16.mxu0 0
    %1629 = vmatpush1.bf16.msra.mxu0 0
    %1630 = vmatprep.mubr.bf16.mxu0 0
    %1631 = vmatmul.mubr.bf16.gmra.mrb[0].mxu0 %v1544
    %v1632 = vpop.f32.mrb[0].mxu0
    %v1633 = vadd.f32 %v1549, %v1632
    %v1634 = vpop.f32.mrb[0].mxu0
    %v1635 = vpop.f32.mrb[0].mxu0
    %v1636 = vadd.f32 %v1549, %v1635
    %v1637 = vpop.f32.mrb[0].mxu0
    %1638 = vmatprep.mubr.bf16.mxu0 0
    %1639 = vmatmul.mubr.bf16.gmra.mrb[0].mxu0 %v1545
    %v1640 = vpop.f32.mrb[0].mxu0
    %v1641 = vadd.f32 %v1549, %v1640
    %v1642 = vpop.f32.mrb[0].mxu0
    %v1643 = vpop.f32.mrb[0].mxu0
    %v1644 = vadd.f32 %v1549, %v1643
    %v1645 = vpop.f32.mrb[0].mxu0
    %1646 = vdwg.mxu0
    %v1647 = vadd.f32 %v1633, %v1636
    %v1648 = vadd.f32 %v1647, %v1641
    %v1649 = vadd.f32 %v1648, %v1644
    %v1650 = vrot.slane %v1649, 4
    %v1651 = vadd.f32 %v1649, %v1650
    %v1652 = vrot.slane %v1651, 2
    %v1653 = vadd.f32 %v1651, %v1652
    %v1654 = vrot.slane %v1653, 1
    %v1655 = vadd.f32 %v1653, %v1654
    %v1656 = vmul.f32 %v1655, 0.03125
    %v1657 = vsub.f32 %v1633, %v1656
    %v1658 = vsub.f32 %v1636, %v1656
    %v1659 = vsub.f32 %v1641, %v1656
    %v1660 = vsub.f32 %v1644, %v1656
    %v1661 = vmul.f32 %v1657, %v1657
    %v1662 = vmul.f32 %v1658, %v1658
    %v1663 = vmul.f32 %v1659, %v1659
    %v1664 = vmul.f32 %v1660, %v1660
    %v1665 = vadd.f32 %v1661, %v1662
    %v1666 = vadd.f32 %v1665, %v1663
    %v1667 = vadd.f32 %v1666, %v1664
    %v1668 = vrot.slane %v1667, 4
    %v1669 = vadd.f32 %v1667, %v1668
    %v1670 = vrot.slane %v1669, 2
    %v1671 = vadd.f32 %v1669, %v1670
    %v1672 = vrot.slane %v1671, 1
    %v1673 = vadd.f32 %v1671, %v1672
    %v1674 = vmul.f32 %v1673, 0.03125
    %v1675 = vadd.f32 %v1674, 0.8
    %v1676 = vrsqrt.pop %v1675
    %v1677 = vmul.f32 %v1657, %v1676
    %v1678 = vmul.f32 %v1658, %v1676
    %v1679 = vmul.f32 %v1659, %v1676
    %v1680 = vmul.f32 %v1660, %v1676
    %v1681 = vlaneseq
    %v1682 = vshrl.u32 %v1681, 7
    %v1683 = vsub.s32 1, %v1682
    %v1684 = vrot.slane %v50, %v1683
    %v1685 = vmul.f32 %v1677, %v1684
    %v1686 = vmul.f32 %v1678, %v1684
    %v1687 = vmul.f32 %v1679, %v1684
    %v1688 = vmul.f32 %v1680, %v1684
    %v1689 = vlaneseq
    %v1690 = vshrl.u32 %v1689, 7
    %v1691 = vsub.s32 7, %v1690
    %v1692 = vrot.slane %v50, %v1691
    %v1693 = vadd.f32 %v1685, %v1692
    %v1694 = vadd.f32 %v1686, %v1692
    %v1695 = vadd.f32 %v1687, %v1692
    %v1696 = vadd.f32 %v1688, %v1692
    %vm1697 = vcmp.gt.f32.partialorder %v1693, 0.0
    %vm1698 = vcmp.gt.f32.partialorder %v1694, 0.0
    %vm1699 = vcmp.gt.f32.partialorder %v1695, 0.0
    %vm1700 = vcmp.gt.f32.partialorder %v1696, 0.0
    %v1701 = vmul.f32 %v1693, 0.2
    %v1702 = vmul.f32 %v1694, 0.2
    %v1703 = vmul.f32 %v1695, 0.2
    %v1704 = vmul.f32 %v1696, 0.2
    %v1705 = vsel %vm1697, %v1693, %v1701
    %v1706 = vsel %vm1698, %v1694, %v1702
    %v1707 = vsel %vm1699, %v1695, %v1703
    %v1708 = vsel %vm1700, %v1696, %v1704
    %v1709 = vld [vmem:[#allocation2 + $0x2c0] sm:$0xf]
    %v1710 = vld [vmem:[#allocation2 + $0x2c4] sm:$0xf]
    %v1711 = vld [vmem:[#allocation2 + $0x2c8] sm:$0xf]
    %v1712 = vld [vmem:[#allocation2 + $0x2cc] sm:$0xf]
    %v1713 = vld [vmem:[#allocation2 + $0x2d0] sm:$0xf]
    %v1714 = vld [vmem:[#allocation2 + $0x2d4] sm:$0xf]
    %v1715 = vld [vmem:[#allocation2 + $0x2d8] sm:$0xf]
    %v1716 = vld [vmem:[#allocation2 + $0x2dc] sm:$0xf]
    %v1717 = vld [vmem:[#allocation2 + $0x2e0] sm:$0xf]
    %v1718 = vld [vmem:[#allocation2 + $0x2e4] sm:$0xf]
    %v1719 = vld [vmem:[#allocation2 + $0x2e8] sm:$0xf]
    %v1720 = vld [vmem:[#allocation2 + $0x2ec] sm:$0xf]
    %v1721 = vld [vmem:[#allocation2 + $0x2f0] sm:$0xf]
    %v1722 = vld [vmem:[#allocation2 + $0x2f4] sm:$0xf]
    %v1723 = vld [vmem:[#allocation2 + $0x2f8] sm:$0xf]
    %v1724 = vld [vmem:[#allocation2 + $0x2fc] sm:$0xf]
    %v1725 = vpack.c.bf16 %v1706, %v1705
    %v1726 = vpack.c.bf16 %v1708, %v1707
    %v1727 = vlaneseq
    %v1728 = vshrl.u32 %v1727, 7
    %v1729 = vsub.s32 3, %v1728
    %v1730 = vrot.slane %v48, %v1729
    %v1747 = vunpack.c.l.b16 %v1709
    %v1748 = vunpack.c.l.b16 %v1710
    %v1749 = vunpack.c.l.b16 %v1711
    %v1750 = vunpack.c.l.b16 %v1712
    %v1751 = vunpack.c.l.b16 %v1713
    %v1752 = vunpack.c.l.b16 %v1714
    %v1753 = vunpack.c.l.b16 %v1715
    %v1754 = vunpack.c.l.b16 %v1716
    %v1755 = vunpack.c.l.b16 %v1717
    %v1756 = vunpack.c.l.b16 %v1718
    %v1757 = vunpack.c.l.b16 %v1719
    %v1758 = vunpack.c.l.b16 %v1720
    %v1759 = vunpack.c.l.b16 %v1721
    %v1760 = vunpack.c.l.b16 %v1722
    %v1761 = vunpack.c.l.b16 %v1723
    %v1762 = vunpack.c.l.b16 %v1724
    %v1763 = vpack.c.b16 %v1748, %v1747
    %v1764 = vpack.c.b16 %v1750, %v1749
    %v1765 = vpack.c.b16 %v1752, %v1751
    %v1766 = vpack.c.b16 %v1754, %v1753
    %v1767 = vpack.c.b16 %v1756, %v1755
    %v1768 = vpack.c.b16 %v1758, %v1757
    %v1769 = vpack.c.b16 %v1760, %v1759
    %v1770 = vpack.c.b16 %v1762, %v1761
    %1779 = vmatprep.subr.bf16.mxu0 0
    %1780 = vmatpush1.bf16.msra.mxu0 %v1763
    %1781 = vmatprep.subr.bf16.mxu0 0
    %1782 = vmatpush1.bf16.msra.mxu0 %v1764
    %1783 = vmatprep.subr.bf16.mxu0 0
    %1784 = vmatpush1.bf16.msra.mxu0 %v1765
    %1785 = vmatprep.subr.bf16.mxu0 0
    %1786 = vmatpush1.bf16.msra.mxu0 %v1766
    %1787 = vmatprep.subr.bf16.mxu0 0
    %1788 = vmatpush1.bf16.msra.mxu0 %v1767
    %1789 = vmatprep.subr.bf16.mxu0 0
    %1790 = vmatpush1.bf16.msra.mxu0 %v1768
    %1791 = vmatprep.subr.bf16.mxu0 0
    %1792 = vmatpush1.bf16.msra.mxu0 %v1769
    %1793 = vmatprep.subr.bf16.mxu0 0
    %1794 = vmatpush1.bf16.msra.mxu0 %v1770
    %1795 = vmatprep.subr.bf16.mxu0 0
    %1796 = vmatpush1.bf16.msra.mxu0 0
    %1797 = vmatprep.subr.bf16.mxu0 0
    %1798 = vmatpush1.bf16.msra.mxu0 0
    %1799 = vmatprep.subr.bf16.mxu0 0
    %1800 = vmatpush1.bf16.msra.mxu0 0
    %1801 = vmatprep.subr.bf16.mxu0 0
    %1802 = vmatpush1.bf16.msra.mxu0 0
    %1803 = vmatprep.subr.bf16.mxu0 0
    %1804 = vmatpush1.bf16.msra.mxu0 0
    %1805 = vmatprep.subr.bf16.mxu0 0
    %1806 = vmatpush1.bf16.msra.mxu0 0
    %1807 = vmatprep.subr.bf16.mxu0 0
    %1808 = vmatpush1.bf16.msra.mxu0 0
    %1809 = vmatprep.subr.bf16.mxu0 0
    %1810 = vmatpush1.bf16.msra.mxu0 0
    %1811 = vmatprep.mubr.bf16.mxu0 0
    %1812 = vmatmul.mubr.bf16.gmra.mrb[0].mxu0 %v1725
    %v1813 = vpop.f32.mrb[0].mxu0
    %v1814 = vadd.f32 %v1730, %v1813
    %v1815 = vpop.f32.mrb[0].mxu0
    %v1816 = vpop.f32.mrb[0].mxu0
    %v1817 = vadd.f32 %v1730, %v1816
    %v1818 = vpop.f32.mrb[0].mxu0
    %1819 = vmatprep.mubr.bf16.mxu0 0
    %1820 = vmatmul.mubr.bf16.gmra.mrb[0].mxu0 %v1726
    %v1821 = vpop.f32.mrb[0].mxu0
    %v1822 = vadd.f32 %v1730, %v1821
    %v1823 = vpop.f32.mrb[0].mxu0
    %v1824 = vpop.f32.mrb[0].mxu0
    %v1825 = vadd.f32 %v1730, %v1824
    %v1826 = vpop.f32.mrb[0].mxu0
    %1827 = vdwg.mxu0
    %v1828 = vadd.f32 %v1814, %v1817
    %v1829 = vadd.f32 %v1828, %v1822
    %v1830 = vadd.f32 %v1829, %v1825
    %v1831 = vrot.slane %v1830, 4
    %v1832 = vadd.f32 %v1830, %v1831
    %v1833 = vrot.slane %v1832, 2
    %v1834 = vadd.f32 %v1832, %v1833
    %v1835 = vrot.slane %v1834, 1
    %v1836 = vadd.f32 %v1834, %v1835
    %v1837 = vmul.f32 %v1836, 0.03125
    %v1838 = vsub.f32 %v1814, %v1837
    %v1839 = vsub.f32 %v1817, %v1837
    %v1840 = vsub.f32 %v1822, %v1837
    %v1841 = vsub.f32 %v1825, %v1837
    %v1842 = vmul.f32 %v1838, %v1838
    %v1843 = vmul.f32 %v1839, %v1839
    %v1844 = vmul.f32 %v1840, %v1840
    %v1845 = vmul.f32 %v1841, %v1841
    %v1846 = vadd.f32 %v1842, %v1843
    %v1847 = vadd.f32 %v1846, %v1844
    %v1848 = vadd.f32 %v1847, %v1845
    %v1849 = vrot.slane %v1848, 4
    %v1850 = vadd.f32 %v1848, %v1849
    %v1851 = vrot.slane %v1850, 2
    %v1852 = vadd.f32 %v1850, %v1851
    %v1853 = vrot.slane %v1852, 1
    %v1854 = vadd.f32 %v1852, %v1853
    %v1855 = vmul.f32 %v1854, 0.03125
    %v1856 = vadd.f32 %v1855, 0.8
    %v1857 = vrsqrt.pop %v1856
    %v1858 = vmul.f32 %v1838, %v1857
    %v1859 = vmul.f32 %v1839, %v1857
    %v1860 = vmul.f32 %v1840, %v1857
    %v1861 = vmul.f32 %v1841, %v1857
    %v1862 = vlaneseq
    %v1863 = vshrl.u32 %v1862, 7
    %v1864 = vsub.s32 2, %v1863
    %v1865 = vrot.slane %v50, %v1864
    %v1866 = vmul.f32 %v1858, %v1865
    %v1867 = vmul.f32 %v1859, %v1865
    %v1868 = vmul.f32 %v1860, %v1865
    %v1869 = vmul.f32 %v1861, %v1865
    %v1870 = vlaneseq
    %v1871 = vshrl.u32 %v1870, 7
    %v1872 = vsub.s32 0, %v1871
    %v1873 = vrot.slane %v52, %v1872
    %v1874 = vadd.f32 %v1866, %v1873
    %v1875 = vadd.f32 %v1867, %v1873
    %v1876 = vadd.f32 %v1868, %v1873
    %v1877 = vadd.f32 %v1869, %v1873
    %vm1878 = vcmp.gt.f32.partialorder %v1874, 0.0
    %vm1879 = vcmp.gt.f32.partialorder %v1875, 0.0
    %vm1880 = vcmp.gt.f32.partialorder %v1876, 0.0
    %vm1881 = vcmp.gt.f32.partialorder %v1877, 0.0
    %v1882 = vmul.f32 %v1874, 0.2
    %v1883 = vmul.f32 %v1875, 0.2
    %v1884 = vmul.f32 %v1876, 0.2
    %v1885 = vmul.f32 %v1877, 0.2
    %v1886 = vsel %vm1878, %v1874, %v1882
    %v1887 = vsel %vm1879, %v1875, %v1883
    %v1888 = vsel %vm1880, %v1876, %v1884
    %v1889 = vsel %vm1881, %v1877, %v1885
    %v1890 = vld [vmem:[#allocation2 + $0x300] sm:$0xf]
    %v1891 = vld [vmem:[#allocation2 + $0x304] sm:$0xf]
    %v1892 = vld [vmem:[#allocation2 + $0x308] sm:$0xf]
    %v1893 = vld [vmem:[#allocation2 + $0x30c] sm:$0xf]
    %v1894 = vld [vmem:[#allocation2 + $0x310] sm:$0xf]
    %v1895 = vld [vmem:[#allocation2 + $0x314] sm:$0xf]
    %v1896 = vld [vmem:[#allocation2 + $0x318] sm:$0xf]
    %v1897 = vld [vmem:[#allocation2 + $0x31c] sm:$0xf]
    %v1898 = vld [vmem:[#allocation2 + $0x320] sm:$0xf]
    %v1899 = vld [vmem:[#allocation2 + $0x324] sm:$0xf]
    %v1900 = vld [vmem:[#allocation2 + $0x328] sm:$0xf]
    %v1901 = vld [vmem:[#allocation2 + $0x32c] sm:$0xf]
    %v1902 = vld [vmem:[#allocation2 + $0x330] sm:$0xf]
    %v1903 = vld [vmem:[#allocation2 + $0x334] sm:$0xf]
    %v1904 = vld [vmem:[#allocation2 + $0x338] sm:$0xf]
    %v1905 = vld [vmem:[#allocation2 + $0x33c] sm:$0xf]
    %v1906 = vpack.c.bf16 %v1887, %v1886
    %v1907 = vpack.c.bf16 %v1889, %v1888
    %v1908 = vlaneseq
    %v1909 = vshrl.u32 %v1908, 7
    %v1910 = vsub.s32 4, %v1909
    %v1911 = vrot.slane %v48, %v1910
    %v1928 = vunpack.c.l.b16 %v1890
    %v1929 = vunpack.c.l.b16 %v1891
    %v1930 = vunpack.c.l.b16 %v1892
    %v1931 = vunpack.c.l.b16 %v1893
    %v1932 = vunpack.c.l.b16 %v1894
    %v1933 = vunpack.c.l.b16 %v1895
    %v1934 = vunpack.c.l.b16 %v1896
    %v1935 = vunpack.c.l.b16 %v1897
    %v1936 = vunpack.c.l.b16 %v1898
    %v1937 = vunpack.c.l.b16 %v1899
    %v1938 = vunpack.c.l.b16 %v1900
    %v1939 = vunpack.c.l.b16 %v1901
    %v1940 = vunpack.c.l.b16 %v1902
    %v1941 = vunpack.c.l.b16 %v1903
    %v1942 = vunpack.c.l.b16 %v1904
    %v1943 = vunpack.c.l.b16 %v1905
    %v1944 = vpack.c.b16 %v1929, %v1928
    %v1945 = vpack.c.b16 %v1931, %v1930
    %v1946 = vpack.c.b16 %v1933, %v1932
    %v1947 = vpack.c.b16 %v1935, %v1934
    %v1948 = vpack.c.b16 %v1937, %v1936
    %v1949 = vpack.c.b16 %v1939, %v1938
    %v1950 = vpack.c.b16 %v1941, %v1940
    %v1951 = vpack.c.b16 %v1943, %v1942
    %1960 = vmatprep.subr.bf16.mxu0 0
    %1961 = vmatpush1.bf16.msra.mxu0 %v1944
    %1962 = vmatprep.subr.bf16.mxu0 0
    %1963 = vmatpush1.bf16.msra.mxu0 %v1945
    %1964 = vmatprep.subr.bf16.mxu0 0
    %1965 = vmatpush1.bf16.msra.mxu0 %v1946
    %1966 = vmatprep.subr.bf16.mxu0 0
    %1967 = vmatpush1.bf16.msra.mxu0 %v1947
    %1968 = vmatprep.subr.bf16.mxu0 0
    %1969 = vmatpush1.bf16.msra.mxu0 %v1948
    %1970 = vmatprep.subr.bf16.mxu0 0
    %1971 = vmatpush1.bf16.msra.mxu0 %v1949
    %1972 = vmatprep.subr.bf16.mxu0 0
    %1973 = vmatpush1.bf16.msra.mxu0 %v1950
    %1974 = vmatprep.subr.bf16.mxu0 0
    %1975 = vmatpush1.bf16.msra.mxu0 %v1951
    %1976 = vmatprep.subr.bf16.mxu0 0
    %1977 = vmatpush1.bf16.msra.mxu0 0
    %1978 = vmatprep.subr.bf16.mxu0 0
    %1979 = vmatpush1.bf16.msra.mxu0 0
    %1980 = vmatprep.subr.bf16.mxu0 0
    %1981 = vmatpush1.bf16.msra.mxu0 0
    %1982 = vmatprep.subr.bf16.mxu0 0
    %1983 = vmatpush1.bf16.msra.mxu0 0
    %1984 = vmatprep.subr.bf16.mxu0 0
    %1985 = vmatpush1.bf16.msra.mxu0 0
    %1986 = vmatprep.subr.bf16.mxu0 0
    %1987 = vmatpush1.bf16.msra.mxu0 0
    %1988 = vmatprep.subr.bf16.mxu0 0
    %1989 = vmatpush1.bf16.msra.mxu0 0
    %1990 = vmatprep.subr.bf16.mxu0 0
    %1991 = vmatpush1.bf16.msra.mxu0 0
    %1992 = vmatprep.mubr.bf16.mxu0 0
    %1993 = vmatmul.mubr.bf16.gmra.mrb[0].mxu0 %v1906
    %v1994 = vpop.f32.mrb[0].mxu0
    %v1995 = vadd.f32 %v1911, %v1994
    %v1996 = vpop.f32.mrb[0].mxu0
    %v1997 = vpop.f32.mrb[0].mxu0
    %v1998 = vadd.f32 %v1911, %v1997
    %v1999 = vpop.f32.mrb[0].mxu0
    %2000 = vmatprep.mubr.bf16.mxu0 0
    %2001 = vmatmul.mubr.bf16.gmra.mrb[0].mxu0 %v1907
    %v2002 = vpop.f32.mrb[0].mxu0
    %v2003 = vadd.f32 %v1911, %v2002
    %v2004 = vpop.f32.mrb[0].mxu0
    %v2005 = vpop.f32.mrb[0].mxu0
    %v2006 = vadd.f32 %v1911, %v2005
    %v2007 = vpop.f32.mrb[0].mxu0
    %2008 = vdwg.mxu0
    %v2009 = vadd.f32 %v1995, %v1998
    %v2010 = vadd.f32 %v2009, %v2003
    %v2011 = vadd.f32 %v2010, %v2006
    %v2012 = vrot.slane %v2011, 4
    %v2013 = vadd.f32 %v2011, %v2012
    %v2014 = vrot.slane %v2013, 2
    %v2015 = vadd.f32 %v2013, %v2014
    %v2016 = vrot.slane %v2015, 1
    %v2017 = vadd.f32 %v2015, %v2016
    %v2018 = vmul.f32 %v2017, 0.03125
    %v2019 = vsub.f32 %v1995, %v2018
    %v2020 = vsub.f32 %v1998, %v2018
    %v2021 = vsub.f32 %v2003, %v2018
    %v2022 = vsub.f32 %v2006, %v2018
    %v2023 = vmul.f32 %v2019, %v2019
    %v2024 = vmul.f32 %v2020, %v2020
    %v2025 = vmul.f32 %v2021, %v2021
    %v2026 = vmul.f32 %v2022, %v2022
    %v2027 = vadd.f32 %v2023, %v2024
    %v2028 = vadd.f32 %v2027, %v2025
    %v2029 = vadd.f32 %v2028, %v2026
    %v2030 = vrot.slane %v2029, 4
    %v2031 = vadd.f32 %v2029, %v2030
    %v2032 = vrot.slane %v2031, 2
    %v2033 = vadd.f32 %v2031, %v2032
    %v2034 = vrot.slane %v2033, 1
    %v2035 = vadd.f32 %v2033, %v2034
    %v2036 = vmul.f32 %v2035, 0.03125
    %v2037 = vadd.f32 %v2036, 0.8
    %v2038 = vrsqrt.pop %v2037
    %v2039 = vmul.f32 %v2019, %v2038
    %v2040 = vmul.f32 %v2020, %v2038
    %v2041 = vmul.f32 %v2021, %v2038
    %v2042 = vmul.f32 %v2022, %v2038
    %v2043 = vlaneseq
    %v2044 = vshrl.u32 %v2043, 7
    %v2045 = vsub.s32 3, %v2044
    %v2046 = vrot.slane %v50, %v2045
    %v2047 = vmul.f32 %v2039, %v2046
    %v2048 = vmul.f32 %v2040, %v2046
    %v2049 = vmul.f32 %v2041, %v2046
    %v2050 = vmul.f32 %v2042, %v2046
    %v2051 = vlaneseq
    %v2052 = vshrl.u32 %v2051, 7
    %v2053 = vsub.s32 1, %v2052
    %v2054 = vrot.slane %v52, %v2053
    %v2055 = vadd.f32 %v2047, %v2054
    %v2056 = vadd.f32 %v2048, %v2054
    %v2057 = vadd.f32 %v2049, %v2054
    %v2058 = vadd.f32 %v2050, %v2054
    %vm2059 = vcmp.gt.f32.partialorder %v2055, 0.0
    %vm2060 = vcmp.gt.f32.partialorder %v2056, 0.0
    %vm2061 = vcmp.gt.f32.partialorder %v2057, 0.0
    %vm2062 = vcmp.gt.f32.partialorder %v2058, 0.0
    %v2063 = vmul.f32 %v2055, 0.2
    %v2064 = vmul.f32 %v2056, 0.2
    %v2065 = vmul.f32 %v2057, 0.2
    %v2066 = vmul.f32 %v2058, 0.2
    %v2067 = vsel %vm2059, %v2055, %v2063
    %v2068 = vsel %vm2060, %v2056, %v2064
    %v2069 = vsel %vm2061, %v2057, %v2065
    %v2070 = vsel %vm2062, %v2058, %v2066
    %v2071 = vld [vmem:[#allocation2 + $0x340] sm:$0xf]
    %v2072 = vld [vmem:[#allocation2 + $0x344] sm:$0xf]
    %v2073 = vld [vmem:[#allocation2 + $0x348] sm:$0xf]
    %v2074 = vld [vmem:[#allocation2 + $0x34c] sm:$0xf]
    %v2075 = vld [vmem:[#allocation2 + $0x350] sm:$0xf]
    %v2076 = vld [vmem:[#allocation2 + $0x354] sm:$0xf]
    %v2077 = vld [vmem:[#allocation2 + $0x358] sm:$0xf]
    %v2078 = vld [vmem:[#allocation2 + $0x35c] sm:$0xf]
    %v2079 = vld [vmem:[#allocation2 + $0x360] sm:$0xf]
    %v2080 = vld [vmem:[#allocation2 + $0x364] sm:$0xf]
    %v2081 = vld [vmem:[#allocation2 + $0x368] sm:$0xf]
    %v2082 = vld [vmem:[#allocation2 + $0x36c] sm:$0xf]
    %v2083 = vld [vmem:[#allocation2 + $0x370] sm:$0xf]
    %v2084 = vld [vmem:[#allocation2 + $0x374] sm:$0xf]
    %v2085 = vld [vmem:[#allocation2 + $0x378] sm:$0xf]
    %v2086 = vld [vmem:[#allocation2 + $0x37c] sm:$0xf]
    %v2087 = vpack.c.bf16 %v2068, %v2067
    %v2088 = vpack.c.bf16 %v2070, %v2069
    %v2089 = vlaneseq
    %v2090 = vshrl.u32 %v2089, 7
    %v2091 = vsub.s32 5, %v2090
    %v2092 = vrot.slane %v48, %v2091
    %v2109 = vunpack.c.l.b16 %v2071
    %v2110 = vunpack.c.l.b16 %v2072
    %v2111 = vunpack.c.l.b16 %v2073
    %v2112 = vunpack.c.l.b16 %v2074
    %v2113 = vunpack.c.l.b16 %v2075
    %v2114 = vunpack.c.l.b16 %v2076
    %v2115 = vunpack.c.l.b16 %v2077
    %v2116 = vunpack.c.l.b16 %v2078
    %v2117 = vunpack.c.l.b16 %v2079
    %v2118 = vunpack.c.l.b16 %v2080
    %v2119 = vunpack.c.l.b16 %v2081
    %v2120 = vunpack.c.l.b16 %v2082
    %v2121 = vunpack.c.l.b16 %v2083
    %v2122 = vunpack.c.l.b16 %v2084
    %v2123 = vunpack.c.l.b16 %v2085
    %v2124 = vunpack.c.l.b16 %v2086
    %v2125 = vpack.c.b16 %v2110, %v2109
    %v2126 = vpack.c.b16 %v2112, %v2111
    %v2127 = vpack.c.b16 %v2114, %v2113
    %v2128 = vpack.c.b16 %v2116, %v2115
    %v2129 = vpack.c.b16 %v2118, %v2117
    %v2130 = vpack.c.b16 %v2120, %v2119
    %v2131 = vpack.c.b16 %v2122, %v2121
    %v2132 = vpack.c.b16 %v2124, %v2123
    %2141 = vmatprep.subr.bf16.mxu0 0
    %2142 = vmatpush1.bf16.msra.mxu0 %v2125
    %2143 = vmatprep.subr.bf16.mxu0 0
    %2144 = vmatpush1.bf16.msra.mxu0 %v2126
    %2145 = vmatprep.subr.bf16.mxu0 0
    %2146 = vmatpush1.bf16.msra.mxu0 %v2127
    %2147 = vmatprep.subr.bf16.mxu0 0
    %2148 = vmatpush1.bf16.msra.mxu0 %v2128
    %2149 = vmatprep.subr.bf16.mxu0 0
    %2150 = vmatpush1.bf16.msra.mxu0 %v2129
    %2151 = vmatprep.subr.bf16.mxu0 0
    %2152 = vmatpush1.bf16.msra.mxu0 %v2130
    %2153 = vmatprep.subr.bf16.mxu0 0
    %2154 = vmatpush1.bf16.msra.mxu0 %v2131
    %2155 = vmatprep.subr.bf16.mxu0 0
    %2156 = vmatpush1.bf16.msra.mxu0 %v2132
    %2157 = vmatprep.subr.bf16.mxu0 0
    %2158 = vmatpush1.bf16.msra.mxu0 0
    %2159 = vmatprep.subr.bf16.mxu0 0
    %2160 = vmatpush1.bf16.msra.mxu0 0
    %2161 = vmatprep.subr.bf16.mxu0 0
    %2162 = vmatpush1.bf16.msra.mxu0 0
    %2163 = vmatprep.subr.bf16.mxu0 0
    %2164 = vmatpush1.bf16.msra.mxu0 0
    %2165 = vmatprep.subr.bf16.mxu0 0
    %2166 = vmatpush1.bf16.msra.mxu0 0
    %2167 = vmatprep.subr.bf16.mxu0 0
    %2168 = vmatpush1.bf16.msra.mxu0 0
    %2169 = vmatprep.subr.bf16.mxu0 0
    %2170 = vmatpush1.bf16.msra.mxu0 0
    %2171 = vmatprep.subr.bf16.mxu0 0
    %2172 = vmatpush1.bf16.msra.mxu0 0
    %2173 = vmatprep.mubr.bf16.mxu0 0
    %2174 = vmatmul.mubr.bf16.gmra.mrb[0].mxu0 %v2087
    %v2175 = vpop.f32.mrb[0].mxu0
    %v2176 = vadd.f32 %v2092, %v2175
    %v2177 = vpop.f32.mrb[0].mxu0
    %v2178 = vpop.f32.mrb[0].mxu0
    %v2179 = vadd.f32 %v2092, %v2178
    %v2180 = vpop.f32.mrb[0].mxu0
    %2181 = vmatprep.mubr.bf16.mxu0 0
    %2182 = vmatmul.mubr.bf16.gmra.mrb[0].mxu0 %v2088
    %v2183 = vpop.f32.mrb[0].mxu0
    %v2184 = vadd.f32 %v2092, %v2183
    %v2185 = vpop.f32.mrb[0].mxu0
    %v2186 = vpop.f32.mrb[0].mxu0
    %v2187 = vadd.f32 %v2092, %v2186
    %v2188 = vpop.f32.mrb[0].mxu0
    %2189 = vdwg.mxu0
    %v2190 = vadd.f32 %v2176, %v2179
    %v2191 = vadd.f32 %v2190, %v2184
    %v2192 = vadd.f32 %v2191, %v2187
    %v2193 = vrot.slane %v2192, 4
    %v2194 = vadd.f32 %v2192, %v2193
    %v2195 = vrot.slane %v2194, 2
    %v2196 = vadd.f32 %v2194, %v2195
    %v2197 = vrot.slane %v2196, 1
    %v2198 = vadd.f32 %v2196, %v2197
    %v2199 = vmul.f32 %v2198, 0.03125
    %v2200 = vsub.f32 %v2176, %v2199
    %v2201 = vsub.f32 %v2179, %v2199
    %v2202 = vsub.f32 %v2184, %v2199
    %v2203 = vsub.f32 %v2187, %v2199
    %v2204 = vmul.f32 %v2200, %v2200
    %v2205 = vmul.f32 %v2201, %v2201
    %v2206 = vmul.f32 %v2202, %v2202
    %v2207 = vmul.f32 %v2203, %v2203
    %v2208 = vadd.f32 %v2204, %v2205
    %v2209 = vadd.f32 %v2208, %v2206
    %v2210 = vadd.f32 %v2209, %v2207
    %v2211 = vrot.slane %v2210, 4
    %v2212 = vadd.f32 %v2210, %v2211
    %v2213 = vrot.slane %v2212, 2
    %v2214 = vadd.f32 %v2212, %v2213
    %v2215 = vrot.slane %v2214, 1
    %v2216 = vadd.f32 %v2214, %v2215
    %v2217 = vmul.f32 %v2216, 0.03125
    %v2218 = vadd.f32 %v2217, 0.8
    %v2219 = vrsqrt.pop %v2218
    %v2220 = vmul.f32 %v2200, %v2219
    %v2221 = vmul.f32 %v2201, %v2219
    %v2222 = vmul.f32 %v2202, %v2219
    %v2223 = vmul.f32 %v2203, %v2219
    %v2224 = vlaneseq
    %v2225 = vshrl.u32 %v2224, 7
    %v2226 = vsub.s32 4, %v2225
    %v2227 = vrot.slane %v50, %v2226
    %v2228 = vmul.f32 %v2220, %v2227
    %v2229 = vmul.f32 %v2221, %v2227
    %v2230 = vmul.f32 %v2222, %v2227
    %v2231 = vmul.f32 %v2223, %v2227
    %v2232 = vlaneseq
    %v2233 = vshrl.u32 %v2232, 7
    %v2234 = vsub.s32 2, %v2233
    %v2235 = vrot.slane %v52, %v2234
    %v2236 = vadd.f32 %v2228, %v2235
    %v2237 = vadd.f32 %v2229, %v2235
    %v2238 = vadd.f32 %v2230, %v2235
    %v2239 = vadd.f32 %v2231, %v2235
    %vm2240 = vcmp.gt.f32.partialorder %v2236, 0.0
    %vm2241 = vcmp.gt.f32.partialorder %v2237, 0.0
    %vm2242 = vcmp.gt.f32.partialorder %v2238, 0.0
    %vm2243 = vcmp.gt.f32.partialorder %v2239, 0.0
    %v2244 = vmul.f32 %v2236, 0.2
    %v2245 = vmul.f32 %v2237, 0.2
    %v2246 = vmul.f32 %v2238, 0.2
    %v2247 = vmul.f32 %v2239, 0.2
    %v2248 = vsel %vm2240, %v2236, %v2244
    %v2249 = vsel %vm2241, %v2237, %v2245
    %v2250 = vsel %vm2242, %v2238, %v2246
    %v2251 = vsel %vm2243, %v2239, %v2247
    %v2252 = vld [vmem:[#allocation4 + $0x80] sm:$0xff]
    %v2253 = vld [vmem:[#allocation4 + $0x88] sm:$0xff]
    %v2254 = vld [vmem:[#allocation4 + $0x90] sm:$0xff]
    %v2255 = vld [vmem:[#allocation4 + $0x98] sm:$0xff]
    %v2256 = vld [vmem:[#allocation4 + $0xa0] sm:$0xff]
    %v2257 = vld [vmem:[#allocation4 + $0xa8] sm:$0xff]
    %v2258 = vld [vmem:[#allocation4 + $0xb0] sm:$0xff]
    %v2259 = vld [vmem:[#allocation4 + $0xb8] sm:$0xff]
    %v2260 = vld [vmem:[#allocation4 + $0xc0] sm:$0xff]
    %v2261 = vld [vmem:[#allocation4 + $0xc8] sm:$0xff]
    %v2262 = vld [vmem:[#allocation4 + $0xd0] sm:$0xff]
    %v2263 = vld [vmem:[#allocation4 + $0xd8] sm:$0xff]
    %v2264 = vld [vmem:[#allocation4 + $0xe0] sm:$0xff]
    %v2265 = vld [vmem:[#allocation4 + $0xe8] sm:$0xff]
    %v2266 = vld [vmem:[#allocation4 + $0xf0] sm:$0xff]
    %v2267 = vld [vmem:[#allocation4 + $0xf8] sm:$0xff]
    %v2268 = vpack.c.bf16 %v2249, %v2248
    %v2269 = vpack.c.bf16 %v2251, %v2250
    %v2270 = vlaneseq
    %v2271 = vshrl.u32 %v2270, 7
    %v2272 = vsub.s32 6, %v2271
    %v2273 = vrot.slane %v48, %v2272
    %v2274 = vlaneseq
    %v2275 = vshrl.u32 %v2274, 7
    %v2276 = vsub.s32 6, %v2275
    %v2277 = vrot.slane %v49, %v2276
    %v2294 = vunpack.c.l.b16 %v2252
    %v2295 = vunpack.c.h.b16 %v2252
    %v2296 = vunpack.c.l.b16 %v2253
    %v2297 = vunpack.c.h.b16 %v2253
    %v2298 = vunpack.c.l.b16 %v2254
    %v2299 = vunpack.c.h.b16 %v2254
    %v2300 = vunpack.c.l.b16 %v2255
    %v2301 = vunpack.c.h.b16 %v2255
    %v2302 = vunpack.c.l.b16 %v2256
    %v2303 = vunpack.c.h.b16 %v2256
    %v2304 = vunpack.c.l.b16 %v2257
    %v2305 = vunpack.c.h.b16 %v2257
    %v2306 = vunpack.c.l.b16 %v2258
    %v2307 = vunpack.c.h.b16 %v2258
    %v2308 = vunpack.c.l.b16 %v2259
    %v2309 = vunpack.c.h.b16 %v2259
    %v2310 = vunpack.c.l.b16 %v2260
    %v2311 = vunpack.c.h.b16 %v2260
    %v2312 = vunpack.c.l.b16 %v2261
    %v2313 = vunpack.c.h.b16 %v2261
    %v2314 = vunpack.c.l.b16 %v2262
    %v2315 = vunpack.c.h.b16 %v2262
    %v2316 = vunpack.c.l.b16 %v2263
    %v2317 = vunpack.c.h.b16 %v2263
    %v2318 = vunpack.c.l.b16 %v2264
    %v2319 = vunpack.c.h.b16 %v2264
    %v2320 = vunpack.c.l.b16 %v2265
    %v2321 = vunpack.c.h.b16 %v2265
    %v2322 = vunpack.c.l.b16 %v2266
    %v2323 = vunpack.c.h.b16 %v2266
    %v2324 = vunpack.c.l.b16 %v2267
    %v2325 = vunpack.c.h.b16 %v2267
    %v2326 = vpack.c.b16 %v2296, %v2294
    %v2327 = vpack.c.b16 %v2297, %v2295
    %v2328 = vpack.c.b16 %v2300, %v2298
    %v2329 = vpack.c.b16 %v2301, %v2299
    %v2330 = vpack.c.b16 %v2304, %v2302
    %v2331 = vpack.c.b16 %v2305, %v2303
    %v2332 = vpack.c.b16 %v2308, %v2306
    %v2333 = vpack.c.b16 %v2309, %v2307
    %v2334 = vpack.c.b16 %v2312, %v2310
    %v2335 = vpack.c.b16 %v2313, %v2311
    %v2336 = vpack.c.b16 %v2316, %v2314
    %v2337 = vpack.c.b16 %v2317, %v2315
    %v2338 = vpack.c.b16 %v2320, %v2318
    %v2339 = vpack.c.b16 %v2321, %v2319
    %v2340 = vpack.c.b16 %v2324, %v2322
    %v2341 = vpack.c.b16 %v2325, %v2323
    %2358 = vmatprep.subr.bf16.mxu0 %v2327
    %2359 = vmatpush1.bf16.msra.mxu0 %v2326
    %2360 = vmatprep.subr.bf16.mxu0 %v2329
    %2361 = vmatpush1.bf16.msra.mxu0 %v2328
    %2362 = vmatprep.subr.bf16.mxu0 %v2331
    %2363 = vmatpush1.bf16.msra.mxu0 %v2330
    %2364 = vmatprep.subr.bf16.mxu0 %v2333
    %2365 = vmatpush1.bf16.msra.mxu0 %v2332
    %2366 = vmatprep.subr.bf16.mxu0 %v2335
    %2367 = vmatpush1.bf16.msra.mxu0 %v2334
    %2368 = vmatprep.subr.bf16.mxu0 %v2337
    %2369 = vmatpush1.bf16.msra.mxu0 %v2336
    %2370 = vmatprep.subr.bf16.mxu0 %v2339
    %2371 = vmatpush1.bf16.msra.mxu0 %v2338
    %2372 = vmatprep.subr.bf16.mxu0 %v2341
    %2373 = vmatpush1.bf16.msra.mxu0 %v2340
    %2374 = vmatprep.subr.bf16.mxu0 0
    %2375 = vmatpush1.bf16.msra.mxu0 0
    %2376 = vmatprep.subr.bf16.mxu0 0
    %2377 = vmatpush1.bf16.msra.mxu0 0
    %2378 = vmatprep.subr.bf16.mxu0 0
    %2379 = vmatpush1.bf16.msra.mxu0 0
    %2380 = vmatprep.subr.bf16.mxu0 0
    %2381 = vmatpush1.bf16.msra.mxu0 0
    %2382 = vmatprep.subr.bf16.mxu0 0
    %2383 = vmatpush1.bf16.msra.mxu0 0
    %2384 = vmatprep.subr.bf16.mxu0 0
    %2385 = vmatpush1.bf16.msra.mxu0 0
    %2386 = vmatprep.subr.bf16.mxu0 0
    %2387 = vmatpush1.bf16.msra.mxu0 0
    %2388 = vmatprep.subr.bf16.mxu0 0
    %2389 = vmatpush1.bf16.msra.mxu0 0
    %2390 = vmatprep.mubr.bf16.mxu0 0
    %2391 = vmatmul.mubr.bf16.gmra.mrb[0].mxu0 %v2268
    %v2392 = vpop.f32.mrb[0].mxu0
    %v2393 = vadd.f32 %v2273, %v2392
    %v2394 = vpop.f32.mrb[0].mxu0
    %v2395 = vadd.f32 %v2277, %v2394
    %v2396 = vpop.f32.mrb[0].mxu0
    %v2397 = vadd.f32 %v2273, %v2396
    %v2398 = vpop.f32.mrb[0].mxu0
    %v2399 = vadd.f32 %v2277, %v2398
    %2400 = vmatprep.mubr.bf16.mxu0 0
    %2401 = vmatmul.mubr.bf16.gmra.mrb[0].mxu0 %v2269
    %v2402 = vpop.f32.mrb[0].mxu0
    %v2403 = vadd.f32 %v2273, %v2402
    %v2404 = vpop.f32.mrb[0].mxu0
    %v2405 = vadd.f32 %v2277, %v2404
    %v2406 = vpop.f32.mrb[0].mxu0
    %v2407 = vadd.f32 %v2273, %v2406
    %v2408 = vpop.f32.mrb[0].mxu0
    %v2409 = vadd.f32 %v2277, %v2408
    %2410 = vdwg.mxu0
    %v2411 = vadd.f32 %v2393, %v2397
    %v2412 = vadd.f32 %v2411, %v2403
    %v2413 = vadd.f32 %v2412, %v2407
    %v2414 = vrot.slane %v2413, 4
    %v2415 = vadd.f32 %v2413, %v2414
    %v2416 = vrot.slane %v2415, 2
    %v2417 = vadd.f32 %v2415, %v2416
    %v2418 = vrot.slane %v2417, 1
    %v2419 = vadd.f32 %v2417, %v2418
    %v2420 = vadd.f32 %v2395, %v2399
    %v2421 = vadd.f32 %v2420, %v2405
    %v2422 = vadd.f32 %v2421, %v2409
    %v2423 = vrot.slane %v2422, 4
    %v2424 = vadd.f32 %v2422, %v2423
    %v2425 = vrot.slane %v2424, 2
    %v2426 = vadd.f32 %v2424, %v2425
    %v2427 = vrot.slane %v2426, 1
    %v2428 = vadd.f32 %v2426, %v2427
    %v2429 = vmul.f32 %v2419, 0.03125
    %v2430 = vmul.f32 %v2428, 0.03125
    %v2431 = vsub.f32 %v2393, %v2429
    %v2432 = vsub.f32 %v2395, %v2430
    %v2433 = vsub.f32 %v2397, %v2429
    %v2434 = vsub.f32 %v2399, %v2430
    %v2435 = vsub.f32 %v2403, %v2429
    %v2436 = vsub.f32 %v2405, %v2430
    %v2437 = vsub.f32 %v2407, %v2429
    %v2438 = vsub.f32 %v2409, %v2430
    %v2439 = vmul.f32 %v2431, %v2431
    %v2440 = vmul.f32 %v2432, %v2432
    %v2441 = vmul.f32 %v2433, %v2433
    %v2442 = vmul.f32 %v2434, %v2434
    %v2443 = vmul.f32 %v2435, %v2435
    %v2444 = vmul.f32 %v2436, %v2436
    %v2445 = vmul.f32 %v2437, %v2437
    %v2446 = vmul.f32 %v2438, %v2438
    %v2447 = vadd.f32 %v2439, %v2441
    %v2448 = vadd.f32 %v2447, %v2443
    %v2449 = vadd.f32 %v2448, %v2445
    %v2450 = vrot.slane %v2449, 4
    %v2451 = vadd.f32 %v2449, %v2450
    %v2452 = vrot.slane %v2451, 2
    %v2453 = vadd.f32 %v2451, %v2452
    %v2454 = vrot.slane %v2453, 1
    %v2455 = vadd.f32 %v2453, %v2454
    %v2456 = vadd.f32 %v2440, %v2442
    %v2457 = vadd.f32 %v2456, %v2444
    %v2458 = vadd.f32 %v2457, %v2446
    %v2459 = vrot.slane %v2458, 4
    %v2460 = vadd.f32 %v2458, %v2459
    %v2461 = vrot.slane %v2460, 2
    %v2462 = vadd.f32 %v2460, %v2461
    %v2463 = vrot.slane %v2462, 1
    %v2464 = vadd.f32 %v2462, %v2463
    %v2465 = vmul.f32 %v2455, 0.03125
    %v2466 = vmul.f32 %v2464, 0.03125
    %v2467 = vadd.f32 %v2465, 0.8
    %v2468 = vadd.f32 %v2466, 0.8
    %v2469 = vrsqrt.pop %v2467
    %v2470 = vrsqrt.pop %v2468
    %v2471 = vmul.f32 %v2431, %v2469
    %v2472 = vmul.f32 %v2432, %v2470
    %v2473 = vmul.f32 %v2433, %v2469
    %v2474 = vmul.f32 %v2434, %v2470
    %v2475 = vmul.f32 %v2435, %v2469
    %v2476 = vmul.f32 %v2436, %v2470
    %v2477 = vmul.f32 %v2437, %v2469
    %v2478 = vmul.f32 %v2438, %v2470
    %v2479 = vlaneseq
    %v2480 = vshrl.u32 %v2479, 7
    %v2481 = vsub.s32 5, %v2480
    %v2482 = vrot.slane %v50, %v2481
    %v2483 = vlaneseq
    %v2484 = vshrl.u32 %v2483, 7
    %v2485 = vsub.s32 5, %v2484
    %v2486 = vrot.slane %v51, %v2485
    %v2487 = vmul.f32 %v2471, %v2482
    %v2488 = vmul.f32 %v2472, %v2486
    %v2489 = vmul.f32 %v2473, %v2482
    %v2490 = vmul.f32 %v2474, %v2486
    %v2491 = vmul.f32 %v2475, %v2482
    %v2492 = vmul.f32 %v2476, %v2486
    %v2493 = vmul.f32 %v2477, %v2482
    %v2494 = vmul.f32 %v2478, %v2486
    %v2495 = vlaneseq
    %v2496 = vshrl.u32 %v2495, 7
    %v2497 = vsub.s32 3, %v2496
    %v2498 = vrot.slane %v52, %v2497
    %v2499 = vlaneseq
    %v2500 = vshrl.u32 %v2499, 7
    %v2501 = vsub.s32 3, %v2500
    %v2502 = vrot.slane %v53, %v2501
    %v2503 = vadd.f32 %v2487, %v2498
    %v2504 = vadd.f32 %v2488, %v2502
    %v2505 = vadd.f32 %v2489, %v2498
    %v2506 = vadd.f32 %v2490, %v2502
    %v2507 = vadd.f32 %v2491, %v2498
    %v2508 = vadd.f32 %v2492, %v2502
    %v2509 = vadd.f32 %v2493, %v2498
    %v2510 = vadd.f32 %v2494, %v2502
    %vm2511 = vcmp.gt.f32.partialorder %v2503, 0.0
    %vm2512 = vcmp.gt.f32.partialorder %v2504, 0.0
    %vm2513 = vcmp.gt.f32.partialorder %v2505, 0.0
    %vm2514 = vcmp.gt.f32.partialorder %v2506, 0.0
    %vm2515 = vcmp.gt.f32.partialorder %v2507, 0.0
    %vm2516 = vcmp.gt.f32.partialorder %v2508, 0.0
    %vm2517 = vcmp.gt.f32.partialorder %v2509, 0.0
    %vm2518 = vcmp.gt.f32.partialorder %v2510, 0.0
    %v2519 = vmul.f32 %v2503, 0.2
    %v2520 = vmul.f32 %v2504, 0.2
    %v2521 = vmul.f32 %v2505, 0.2
    %v2522 = vmul.f32 %v2506, 0.2
    %v2523 = vmul.f32 %v2507, 0.2
    %v2524 = vmul.f32 %v2508, 0.2
    %v2525 = vmul.f32 %v2509, 0.2
    %v2526 = vmul.f32 %v2510, 0.2
    %v2527 = vsel %vm2511, %v2503, %v2519
    %v2528 = vsel %vm2512, %v2504, %v2520
    %v2529 = vsel %vm2513, %v2505, %v2521
    %v2530 = vsel %vm2514, %v2506, %v2522
    %v2531 = vsel %vm2515, %v2507, %v2523
    %v2532 = vsel %vm2516, %v2508, %v2524
    %v2533 = vsel %vm2517, %v2509, %v2525
    %v2534 = vsel %vm2518, %v2510, %v2526
    %v2535 = vld [vmem:[#allocation2 + $0x380] sm:$0xf]
    %v2536 = vld [vmem:[#allocation2 + $0x384] sm:$0xf]
    %v2537 = vld [vmem:[#allocation2 + $0x388] sm:$0xf]
    %v2538 = vld [vmem:[#allocation2 + $0x38c] sm:$0xf]
    %v2539 = vld [vmem:[#allocation2 + $0x390] sm:$0xf]
    %v2540 = vld [vmem:[#allocation2 + $0x394] sm:$0xf]
    %v2541 = vld [vmem:[#allocation2 + $0x398] sm:$0xf]
    %v2542 = vld [vmem:[#allocation2 + $0x39c] sm:$0xf]
    %v2543 = vld [vmem:[#allocation2 + $0x3a0] sm:$0xf]
    %v2544 = vld [vmem:[#allocation2 + $0x3a4] sm:$0xf]
    %v2545 = vld [vmem:[#allocation2 + $0x3a8] sm:$0xf]
    %v2546 = vld [vmem:[#allocation2 + $0x3ac] sm:$0xf]
    %v2547 = vld [vmem:[#allocation2 + $0x3b0] sm:$0xf]
    %v2548 = vld [vmem:[#allocation2 + $0x3b4] sm:$0xf]
    %v2549 = vld [vmem:[#allocation2 + $0x3b8] sm:$0xf]
    %v2550 = vld [vmem:[#allocation2 + $0x3bc] sm:$0xf]
    %v2551 = vld [vmem:[#allocation2 + $0x3c0] sm:$0xf]
    %v2552 = vld [vmem:[#allocation2 + $0x3c4] sm:$0xf]
    %v2553 = vld [vmem:[#allocation2 + $0x3c8] sm:$0xf]
    %v2554 = vld [vmem:[#allocation2 + $0x3cc] sm:$0xf]
    %v2555 = vld [vmem:[#allocation2 + $0x3d0] sm:$0xf]
    %v2556 = vld [vmem:[#allocation2 + $0x3d4] sm:$0xf]
    %v2557 = vld [vmem:[#allocation2 + $0x3d8] sm:$0xf]
    %v2558 = vld [vmem:[#allocation2 + $0x3dc] sm:$0xf]
    %v2559 = vld [vmem:[#allocation2 + $0x3e0] sm:$0xf]
    %v2560 = vld [vmem:[#allocation2 + $0x3e4] sm:$0xf]
    %v2561 = vld [vmem:[#allocation2 + $0x3e8] sm:$0xf]
    %v2562 = vld [vmem:[#allocation2 + $0x3ec] sm:$0xf]
    %v2563 = vld [vmem:[#allocation2 + $0x3f0] sm:$0xf]
    %v2564 = vld [vmem:[#allocation2 + $0x3f4] sm:$0xf]
    %v2565 = vld [vmem:[#allocation2 + $0x3f8] sm:$0xf]
    %v2566 = vld [vmem:[#allocation2 + $0x3fc] sm:$0xf]
    %v2567 = vpack.c.bf16 %v2529, %v2527
    %v2568 = vpack.c.bf16 %v2530, %v2528
    %v2569 = vpack.c.bf16 %v2533, %v2531
    %v2570 = vpack.c.bf16 %v2534, %v2532
    %v2571 = vlaneseq
    %v2572 = vshrl.u32 %v2571, 7
    %v2573 = vsub.s32 7, %v2572
    %v2574 = vrot.slane %v48, %v2573
    %v2607 = vunpack.c.l.b16 %v2535
    %v2608 = vunpack.c.l.b16 %v2536
    %v2609 = vunpack.c.l.b16 %v2537
    %v2610 = vunpack.c.l.b16 %v2538
    %v2611 = vunpack.c.l.b16 %v2539
    %v2612 = vunpack.c.l.b16 %v2540
    %v2613 = vunpack.c.l.b16 %v2541
    %v2614 = vunpack.c.l.b16 %v2542
    %v2615 = vunpack.c.l.b16 %v2543
    %v2616 = vunpack.c.l.b16 %v2544
    %v2617 = vunpack.c.l.b16 %v2545
    %v2618 = vunpack.c.l.b16 %v2546
    %v2619 = vunpack.c.l.b16 %v2547
    %v2620 = vunpack.c.l.b16 %v2548
    %v2621 = vunpack.c.l.b16 %v2549
    %v2622 = vunpack.c.l.b16 %v2550
    %v2623 = vunpack.c.l.b16 %v2551
    %v2624 = vunpack.c.l.b16 %v2552
    %v2625 = vunpack.c.l.b16 %v2553
    %v2626 = vunpack.c.l.b16 %v2554
    %v2627 = vunpack.c.l.b16 %v2555
    %v2628 = vunpack.c.l.b16 %v2556
    %v2629 = vunpack.c.l.b16 %v2557
    %v2630 = vunpack.c.l.b16 %v2558
    %v2631 = vunpack.c.l.b16 %v2559
    %v2632 = vunpack.c.l.b16 %v2560
    %v2633 = vunpack.c.l.b16 %v2561
    %v2634 = vunpack.c.l.b16 %v2562
    %v2635 = vunpack.c.l.b16 %v2563
    %v2636 = vunpack.c.l.b16 %v2564
    %v2637 = vunpack.c.l.b16 %v2565
    %v2638 = vunpack.c.l.b16 %v2566
    %v2639 = vpack.c.b16 %v2608, %v2607
    %v2640 = vpack.c.b16 %v2610, %v2609
    %v2641 = vpack.c.b16 %v2612, %v2611
    %v2642 = vpack.c.b16 %v2614, %v2613
    %v2643 = vpack.c.b16 %v2616, %v2615
    %v2644 = vpack.c.b16 %v2618, %v2617
    %v2645 = vpack.c.b16 %v2620, %v2619
    %v2646 = vpack.c.b16 %v2622, %v2621
    %v2647 = vpack.c.b16 %v2624, %v2623
    %v2648 = vpack.c.b16 %v2626, %v2625
    %v2649 = vpack.c.b16 %v2628, %v2627
    %v2650 = vpack.c.b16 %v2630, %v2629
    %v2651 = vpack.c.b16 %v2632, %v2631
    %v2652 = vpack.c.b16 %v2634, %v2633
    %v2653 = vpack.c.b16 %v2636, %v2635
    %v2654 = vpack.c.b16 %v2638, %v2637
    %2671 = vmatprep.subr.bf16.mxu0 0
    %2672 = vmatpush1.bf16.msra.mxu0 %v2639
    %2673 = vmatprep.subr.bf16.mxu0 0
    %2674 = vmatpush1.bf16.msra.mxu0 %v2640
    %2675 = vmatprep.subr.bf16.mxu0 0
    %2676 = vmatpush1.bf16.msra.mxu0 %v2641
    %2677 = vmatprep.subr.bf16.mxu0 0
    %2678 = vmatpush1.bf16.msra.mxu0 %v2642
    %2679 = vmatprep.subr.bf16.mxu0 0
    %2680 = vmatpush1.bf16.msra.mxu0 %v2643
    %2681 = vmatprep.subr.bf16.mxu0 0
    %2682 = vmatpush1.bf16.msra.mxu0 %v2644
    %2683 = vmatprep.subr.bf16.mxu0 0
    %2684 = vmatpush1.bf16.msra.mxu0 %v2645
    %2685 = vmatprep.subr.bf16.mxu0 0
    %2686 = vmatpush1.bf16.msra.mxu0 %v2646
    %2687 = vmatprep.subr.bf16.mxu0 0
    %2688 = vmatpush1.bf16.msra.mxu0 %v2647
    %2689 = vmatprep.subr.bf16.mxu0 0
    %2690 = vmatpush1.bf16.msra.mxu0 %v2648
    %2691 = vmatprep.subr.bf16.mxu0 0
    %2692 = vmatpush1.bf16.msra.mxu0 %v2649
    %2693 = vmatprep.subr.bf16.mxu0 0
    %2694 = vmatpush1.bf16.msra.mxu0 %v2650
    %2695 = vmatprep.subr.bf16.mxu0 0
    %2696 = vmatpush1.bf16.msra.mxu0 %v2651
    %2697 = vmatprep.subr.bf16.mxu0 0
    %2698 = vmatpush1.bf16.msra.mxu0 %v2652
    %2699 = vmatprep.subr.bf16.mxu0 0
    %2700 = vmatpush1.bf16.msra.mxu0 %v2653
    %2701 = vmatprep.subr.bf16.mxu0 0
    %2702 = vmatpush1.bf16.msra.mxu0 %v2654
    %2703 = vmatprep.mubr.bf16.mxu0 %v2568
    %2704 = vmatmul.mubr.bf16.gmra.mrb[0].mxu0 %v2567
    %v2705 = vpop.f32.mrb[0].mxu0
    %v2706 = vadd.f32 %v2574, %v2705
    %v2707 = vpop.f32.mrb[0].mxu0
    %v2708 = vpop.f32.mrb[0].mxu0
    %v2709 = vadd.f32 %v2574, %v2708
    %v2710 = vpop.f32.mrb[0].mxu0
    %2711 = vmatprep.mubr.bf16.mxu0 %v2570
    %2712 = vmatmul.mubr.bf16.gmra.mrb[0].mxu0 %v2569
    %v2713 = vpop.f32.mrb[0].mxu0
    %v2714 = vadd.f32 %v2574, %v2713
    %v2715 = vpop.f32.mrb[0].mxu0
    %v2716 = vpop.f32.mrb[0].mxu0
    %v2717 = vadd.f32 %v2574, %v2716
    %v2718 = vpop.f32.mrb[0].mxu0
    %2719 = vdwg.mxu0
    %v2720 = vtanh.pop %v2706
    %v2721 = vtanh.pop %v2709
    %v2722 = vtanh.pop %v2714
    %v2723 = vtanh.pop %v2717
    %2724 = vst [vmem:[%s4] sm:$0xff] %v2720
    %2725 = vst [vmem:[%s4 + $0x8] sm:$0xff] %v2721
    %2726 = vst [vmem:[%s4 + $0x10] sm:$0xff] %v2722
    %2727 = vst [vmem:[%s4 + $0x18] sm:$0xff] %v2723
    // Predicated region
    $region26: #{_forward_impl.1} parent=1 // pred_check
      _
    $region27: #{_forward_impl.1} parent=1 // pred_check_branch
      %2729 = sbr.rel (0) target = $region29
    $region28: #{_forward_impl.1} parent=1 // pred_region
      _
    $region29: #{_forward_impl.1} parent=1 // pred_fallthru
      _
    // Predicated region
    $region30: #{_forward_impl.1} parent=1 // pred_check
      _
    $region31: #{_forward_impl.1} parent=1 // pred_check_branch
      %2731 = sbr.rel (0) target = $region33
    $region32: #{_forward_impl.1} parent=1 // pred_region
      _
    $region33: #{_forward_impl.1} parent=1 // pred_fallthru
      _
    %2732 = vsyncpa [#allocation3], 1
    %2733 = vsyncpa [#allocation5], 1

</llo_original>
